<compile_context>
chip_gen: v7x
topology: tpu7x:2x2x1
jax: 0.10.0
libtpu: 0.0.40
codegen_flags: <defaults>
</compile_context>

<pallas_src>
import jax
import jax.numpy as jnp
from jax.experimental import pallas as pl
from jax.experimental.pallas import tpu as pltpu

_HALO = 8  # halo blocks are 8 rows (second-minor blocks must be multiples of 8)


# ---------------------------------------------------------------------------
# helpers
# ---------------------------------------------------------------------------
def _row_tile(h, target):
    """Largest multiple-of-8 divisor of h that is <= target (fallback: h)."""
    t = min(h, max(8, target))
    t -= t % 8
    while t >= 8:
        if h % t == 0:
            return t
        t -= 8
    return h


# ---------------------------------------------------------------------------
# Kernel A: ConvTranspose2d(k=2, s=2) in folded-NHWC layout.
#   Per row tile: two matmuls x1[T, W*Cin] @ M_kh[W*Cin, 2W*Chalf] + bias,
#   one per output-row parity kh.  Output block [T, 2, 2W*Chalf] reshapes
#   (free) to the upsampled [2T, 2W*Chalf] rows.
# ---------------------------------------------------------------------------
def _deconv_matrices(w_up, b_up, w_in):
    """w_up: [Cin, Chalf, 2, 2] (torch ConvTranspose2d layout), b_up: [Chalf]."""
    cin, chalf = w_up.shape[0], w_up.shape[1]
    eye = jnp.eye(w_in, dtype=w_up.dtype)                  # [w', w]
    ms = []
    for kh in range(2):
        a = jnp.transpose(w_up[:, :, kh, :], (0, 2, 1))    # [Cin, kw, Chalf]
        a = a.reshape(cin, 2 * chalf)                      # col = kw*Chalf + c
        m4 = eye[:, None, :, None] * a[None, :, None, :]   # [w', Cin, w, 2*Chalf]
        ms.append(m4.reshape(w_in * cin, w_in * 2 * chalf))
    m = jnp.stack(ms, axis=0)                              # [2, W*Cin, 2W*Chalf]
    bias = jnp.tile(b_up, 2 * w_in).reshape(1, 2 * w_in * chalf)
    return m, bias


def _deconv_kernel(x_ref, m_ref, b_ref, o_ref):
    # x_ref: [T, W*Cin]; m_ref: [2, W*Cin, F_up]; b_ref: [1, F_up]
    # o_ref: [T, 2, F_up]  (middle dim = output-row parity kh)
    x = x_ref[...]
    b = b_ref[...]
    o_ref[:, 0, :] = jnp.dot(x, m_ref[0], preferred_element_type=jnp.float32) + b
    o_ref[:, 1, :] = jnp.dot(x, m_ref[1], preferred_element_type=jnp.float32) + b


def conv_transpose_2x2_s2(x1f, w_up, b_up, *, width, row_tile=8):
    """x1f: folded NHWC [N, H, W*Cin] -> up, folded NHWC [N, 2H, 2W*Chalf]."""
    n, h, f_in = x1f.shape
    chalf = w_up.shape[1]
    f_up = 2 * width * chalf
    t1 = _row_tile(h, row_tile)
    m, bias = _deconv_matrices(w_up, b_up, width)

    out4 = pl.pallas_call(
        _deconv_kernel,
        grid=(n, h // t1),
        in_specs=[
            pl.BlockSpec((None, t1, f_in), lambda i, r: (i, r, 0)),
            pl.BlockSpec(m.shape, lambda i, r: (0, 0, 0)),
            pl.BlockSpec((1, f_up), lambda i, r: (0, 0)),
        ],
        out_specs=pl.BlockSpec((None, t1, 2, f_up), lambda i, r: (i, r, 0, 0)),
        out_shape=jax.ShapeDtypeStruct((n, h, 2, f_up), jnp.float32),
        compiler_params=pltpu.CompilerParams(
            dimension_semantics=("parallel", "parallel")),
    )(x1f, m, bias)
    # [N, H, 2, F_up] -> [N, 2H, F_up] is metadata-only ((h, kh) -> 2h+kh).
    return out4.reshape(n, 2 * h, f_up)


# ---------------------------------------------------------------------------
# Kernel B: fused Conv2d(3x3, pad=1, bias=False) + BatchNorm2d(eval) + ELU.
# ---------------------------------------------------------------------------
def _conv3x3_toeplitz(w_conv, c_lo, c_hi, width):
    """Weights for input-channel group [c_lo, c_hi) as three block-Toeplitz
    matrices [W*Ci, W*Cout] (one per kh); W-direction zero padding is encoded
    in the matrix so activations never need to be padded."""
    cout = w_conv.shape[0]
    wg = w_conv[:, c_lo:c_hi]                              # [Cout, Ci, 3, 3]
    ci = wg.shape[1]
    wp = jnp.arange(width)[:, None]                        # w' (input col)
    wq = jnp.arange(width)[None, :]                        # w  (output col)
    dw = wp - wq + 1                                       # kw tap index
    valid = (dw >= 0) & (dw <= 2)
    dwc = jnp.clip(dw, 0, 2)
    ts = []
    for kh in range(3):
        wk = jnp.transpose(wg[:, :, kh, :], (1, 0, 2))     # [Ci, Cout, 3]
        g = wk[:, :, dwc]                                  # [Ci, Cout, w', w]
        t4 = jnp.transpose(g, (2, 0, 3, 1))                # [w', Ci, w, Cout]
        t4 = jnp.where(valid[:, None, :, None], t4, 0.0)
        ts.append(t4.reshape(width * ci, width * cout))
    return jnp.stack(ts, axis=0)                           # [3, W*Ci, W*Cout]


def _bn_fold(gamma, beta, mean, var, width, eps=1e-5):
    inv_std = 1.0 / jnp.sqrt(var + eps)
    scale = gamma * inv_std
    shift = beta - mean * scale
    return (jnp.tile(scale, width).reshape(1, -1),
            jnp.tile(shift, width).reshape(1, -1))


def _make_conv_kernel(n_in, th):
    """Conv3x3 (3 matmuls vs Toeplitz weights, summed over channel groups)
    + BN(eval, folded to scale/shift) + ELU, all on lane-dense [rows, W*C]."""

    def kernel(*refs):
        x_refs = refs[:3 * n_in]           # per input: (mid, top-halo, bot-halo)
        t_refs = refs[3 * n_in:4 * n_in]   # per input: [3, W*Ci, W*Cout]
        scale_ref = refs[4 * n_in]
        shift_ref = refs[4 * n_in + 1]
        o_ref = refs[4 * n_in + 2]

        r = pl.program_id(1)
        nr = pl.num_programs(1)
        top_ok = (r > 0).astype(jnp.float32)       # zero-pad above the image
        bot_ok = (r < nr - 1).astype(jnp.float32)  # zero-pad below the image

        acc = None
        for i in range(n_in):
            mid = x_refs[3 * i][...]                               # [TH, W*Ci]
            top = x_refs[3 * i + 1][_HALO - 1:_HALO, :] * top_ok   # row tile_start-1
            bot = x_refs[3 * i + 2][0:1, :] * bot_ok               # row tile_end
            rows = jnp.concatenate([top, mid, bot], axis=0)        # [TH+2, W*Ci]
            for kh in range(3):
                part = jnp.dot(rows[kh:kh + th, :], t_refs[i][kh],
                               preferred_element_type=jnp.float32)
                acc = part if acc is None else acc + part

        y = acc * scale_ref[...] + shift_ref[...]                  # BatchNorm (eval)
        # ELU(alpha=1): y if y > 0 else expm1(y).  expm1 computed via the exact
        # identity tanh(y/2) * (exp(y) + 1): avoids exp(y)-1 cancellation near 0
        # using only EUP ops that are guaranteed to lower (exp, tanh).
        neg = jnp.tanh(0.5 * y) * (jnp.exp(y) + 1.0)
        o_ref[...] = jnp.where(y > 0, y, neg)

    return kernel


def conv3x3_bn_elu(xs, w_conv, gamma, beta, mean, var, *, width,
                   eps=1e-5, row_tile=16):
    """Fused Conv2d(3x3, pad=1, bias=False) + BatchNorm2d(eval) + ELU.

    xs: list of folded-NHWC activations [N, H, W*Ci]; they are consumed as the
    channel-concatenation (in list order) of the conv input, i.e. torch.cat is
    fused away by splitting the conv weight into channel groups.
    """
    n, h, _ = xs[0].shape
    cout = w_conv.shape[0]
    c_sizes = [x.shape[-1] // width for x in xs]
    assert sum(c_sizes) == w_conv.shape[1]
    assert h % 8 == 0, "row-halo BlockSpecs assume H is a multiple of 8"
    th = _row_tile(h, row_tile)
    tb = th // _HALO       # tile height measured in 8-row halo blocks
    hb = h // _HALO
    f_out = width * cout

    t_mats, off = [], 0
    for ci in c_sizes:
        t_mats.append(_conv3x3_toeplitz(w_conv, off, off + ci, width))
        off += ci
    scale, shift = _bn_fold(gamma, beta, mean, var, width, eps)

    in_specs, args = [], []
    for x in xs:
        f_i = x.shape[-1]
        in_specs += [
            # TH body rows of this tile
            pl.BlockSpec((None, th, f_i), lambda i, r: (i, r, 0)),
            # 8 rows ending just above the tile (clamped at the top border)
            pl.BlockSpec((None, _HALO, f_i),
                         lambda i, r: (i, jnp.maximum(r * tb - 1, 0), 0)),
            # 8 rows starting just below the tile (clamped at the bottom border)
            pl.BlockSpec((None, _HALO, f_i),
                         lambda i, r: (i, jnp.minimum(r * tb + tb, hb - 1), 0)),
        ]
        args += [x, x, x]
    for t in t_mats:
        in_specs.append(pl.BlockSpec(t.shape, lambda i, r: (0, 0, 0)))
    in_specs.append(pl.BlockSpec((1, f_out), lambda i, r: (0, 0)))  # scale
    in_specs.append(pl.BlockSpec((1, f_out), lambda i, r: (0, 0)))  # shift
    args += t_mats + [scale, shift]

    return pl.pallas_call(
        _make_conv_kernel(len(xs), th),
        grid=(n, h // th),
        in_specs=in_specs,
        out_specs=pl.BlockSpec((None, th, f_out), lambda i, r: (i, r, 0)),
        out_shape=jax.ShapeDtypeStruct((n, h, f_out), jnp.float32),
        compiler_params=pltpu.CompilerParams(
            dimension_semantics=("parallel", "parallel")),
    )(*args)


# ---------------------------------------------------------------------------
# Parameters (deterministic, shapes exactly as the torch module would create)
# ---------------------------------------------------------------------------
def init_params(key, in_channels, out_channels):
    c_half = in_channels // 2
    ks = jax.random.split(key, 8)
    return {
        # nn.ConvTranspose2d(in_channels, in_channels//2, 2, 2)
        "up_w": 0.1 * jax.random.normal(ks[0], (in_channels, c_half, 2, 2), jnp.float32),
        "up_b": 0.1 * jax.random.normal(ks[1], (c_half,), jnp.float32),
        # ConvLayer: Conv2d(in_channels, out_channels, 3, pad=1, bias=False) + BN
        "conv1_w": 0.1 * jax.random.normal(ks[2], (out_channels, in_channels, 3, 3), jnp.float32),
        "bn1_gamma": 1.0 + 0.1 * jax.random.normal(ks[3], (out_channels,), jnp.float32),
        "bn1_beta": 0.1 * jax.random.normal(ks[4], (out_channels,), jnp.float32),
        "bn1_mean": jnp.zeros((out_channels,), jnp.float32),
        "bn1_var": jnp.ones((out_channels,), jnp.float32),
        #            Conv2d(out_channels, out_channels, 3, pad=1, bias=False) + BN
        "conv2_w": 0.1 * jax.random.normal(ks[5], (out_channels, out_channels, 3, 3), jnp.float32),
        "bn2_gamma": 1.0 + 0.1 * jax.random.normal(ks[6], (out_channels,), jnp.float32),
        "bn2_beta": 0.1 * jax.random.normal(ks[7], (out_channels,), jnp.float32),
        "bn2_mean": jnp.zeros((out_channels,), jnp.float32),
        "bn2_var": jnp.ones((out_channels,), jnp.float32),
    }


def upsampling_layer_forward(params, x1_nchw, x2_nchw):
    n, c_in, h1, w1 = x1_nchw.shape
    c_half = c_in // 2
    c_out = params["conv1_w"].shape[0]
    w2 = 2 * w1

    # NCHW -> folded NHWC ([N, H, W*C]).
    # TODO(synk): a model kept in NHWC end-to-end would drop these boundary
    # transposes (and the one at the exit) entirely.
    x1 = jnp.transpose(x1_nchw, (0, 2, 3, 1)).reshape(n, h1, w1 * c_in)
    x2 = jnp.transpose(x2_nchw, (0, 2, 3, 1)).reshape(n, 2 * h1, w2 * c_half)

    up = conv_transpose_2x2_s2(x1, params["up_w"], params["up_b"], width=w1)

    # torch.cat([x2, x1_up], dim=1) is fused into conv1's channel-group split.
    h = conv3x3_bn_elu([x2, up], params["conv1_w"],
                       params["bn1_gamma"], params["bn1_beta"],
                       params["bn1_mean"], params["bn1_var"], width=w2)
    # TODO(synk): Dropout(p=0.2) is stochastic only in training; identity here (eval).
    h = conv3x3_bn_elu([h], params["conv2_w"],
                       params["bn2_gamma"], params["bn2_beta"],
                       params["bn2_mean"], params["bn2_var"], width=w2)

    out = h.reshape(n, 2 * h1, w2, c_out)        # unfold (free, metadata-only)
    return jnp.transpose(out, (0, 3, 1, 2))      # back to NCHW


if __name__ == "__main__":
    key = jax.random.PRNGKey(0)
    k_params, k1, k2 = jax.random.split(key, 3)

    N, C_IN, H, W = 2, 8, 16, 16
    C_OUT = 4

    params = init_params(k_params, C_IN, C_OUT)
    x1 = jax.random.normal(k1, (N, C_IN, H, W), jnp.float32)               # NCHW
    x2 = jax.random.normal(k2, (N, C_IN // 2, 2 * H, 2 * W), jnp.float32)

    fwd = jax.jit(upsampling_layer_forward)
    out = fwd(params, x1, x2)
    jax.block_until_ready(out)

    assert out.shape == (N, C_OUT, 2 * H, 2 * W), out.shape
    assert bool(jnp.all(jnp.isfinite(out)))
    print("KERNEL_OK")
</pallas_src>

<mosaic_0001>
module attributes {stable_mosaic.version = 11 : i64} {
  func.func @_deconv_kernel(%arg0: i32, %arg1: i32, %arg2: memref<1x8x128xf32, #tpu.memory_space<vmem>>, %arg3: memref<2x128x128xf32, #tpu.memory_space<vmem>>, %arg4: memref<1x128xf32, #tpu.memory_space<vmem>>, %arg5: memref<1x8x2x128xf32, #tpu.memory_space<vmem>>) attributes {dimension_semantics = [#tpu.dimension_semantics<parallel>, #tpu.dimension_semantics<parallel>], iteration_bounds = array<i64: 2, 2>, scalar_prefetch = 0 : i64, scratch_operands = 0 : i64, tpu.core_type = #tpu.core_type<tc>, window_params = [{transform_indices = @transform_0, window_bounds = array<i64: 1, 8, 128>}, {pipeline_mode = #tpu.pipeline_mode<synchronous>, transform_indices = @transform_1, window_bounds = array<i64: 2, 128, 128>}, {pipeline_mode = #tpu.pipeline_mode<synchronous>, transform_indices = @transform_2, window_bounds = array<i64: 1, 128>}, {transform_indices = @transform_3, window_bounds = array<i64: 1, 8, 2, 128>}]} {
    %c0 = arith.constant 0 : index
    %c0_0 = arith.constant 0 : index
    %c0_1 = arith.constant 0 : index
    %0 = vector.load %arg2[%c0, %c0_0, %c0_1] : memref<1x8x128xf32, #tpu.memory_space<vmem>>, vector<1x8x128xf32>
    %1 = vector.shape_cast %0 : vector<1x8x128xf32> to vector<8x128xf32>
    %c0_2 = arith.constant 0 : index
    %c0_3 = arith.constant 0 : index
    %2 = vector.load %arg4[%c0_2, %c0_3] : memref<1x128xf32, #tpu.memory_space<vmem>>, vector<1x128xf32>
    %c0_4 = arith.constant 0 : index
    %c0_5 = arith.constant 0 : index
    %c0_6 = arith.constant 0 : index
    %3 = vector.load %arg3[%c0_4, %c0_5, %c0_6] : memref<2x128x128xf32, #tpu.memory_space<vmem>>, vector<1x128x128xf32>
    %4 = vector.shape_cast %3 : vector<1x128x128xf32> to vector<128x128xf32>
    %cst = arith.constant dense<0.000000e+00> : vector<8x128xf32>
    %5 = tpu.matmul %1, %4, %cst {dimension_numbers = #tpu.dot_dimension_numbers<[1], [0], [0], [1], [0, 0, 1, 1], [], []>} : vector<8x128xf32>, vector<128x128xf32>, vector<8x128xf32> -> vector<8x128xf32>
    %6 = vector.broadcast %2 : vector<1x128xf32> to vector<8x128xf32>
    %7 = arith.addf %5, %6 : vector<8x128xf32>
    %c0_7 = arith.constant 0 : index
    %c0_8 = arith.constant 0 : index
    %c0_9 = arith.constant 0 : index
    %c0_10 = arith.constant 0 : index
    %8 = vector.load %arg5[%c0_7, %c0_8, %c0_9, %c0_10] : memref<1x8x2x128xf32, #tpu.memory_space<vmem>>, vector<1x8x1x128xf32>
    %9 = vector.shape_cast %8 : vector<1x8x1x128xf32> to vector<8x128xf32>
    %10 = vector.shape_cast %7 : vector<8x128xf32> to vector<1x8x1x128xf32>
    tpu.vector_store %arg5[%c0_7, %c0_8, %c0_9, %c0_10], %10 {strides = array<i32>} : memref<1x8x2x128xf32, #tpu.memory_space<vmem>>, vector<1x8x1x128xf32>,
    %c1 = arith.constant 1 : index
    %c0_11 = arith.constant 0 : index
    %c0_12 = arith.constant 0 : index
    %11 = vector.load %arg3[%c1, %c0_11, %c0_12] : memref<2x128x128xf32, #tpu.memory_space<vmem>>, vector<1x128x128xf32>
    %12 = vector.shape_cast %11 : vector<1x128x128xf32> to vector<128x128xf32>
    %cst_13 = arith.constant dense<0.000000e+00> : vector<8x128xf32>
    %13 = tpu.matmul %1, %12, %cst_13 {dimension_numbers = #tpu.dot_dimension_numbers<[1], [0], [0], [1], [0, 0, 1, 1], [], []>} : vector<8x128xf32>, vector<128x128xf32>, vector<8x128xf32> -> vector<8x128xf32>
    %14 = vector.broadcast %2 : vector<1x128xf32> to vector<8x128xf32>
    %15 = arith.addf %13, %14 : vector<8x128xf32>
    %c0_14 = arith.constant 0 : index
    %c0_15 = arith.constant 0 : index
    %c1_16 = arith.constant 1 : index
    %c0_17 = arith.constant 0 : index
    %16 = vector.load %arg5[%c0_14, %c0_15, %c1_16, %c0_17] : memref<1x8x2x128xf32, #tpu.memory_space<vmem>>, vector<1x8x1x128xf32>
    %17 = vector.shape_cast %16 : vector<1x8x1x128xf32> to vector<8x128xf32>
    %18 = vector.shape_cast %15 : vector<8x128xf32> to vector<1x8x1x128xf32>
    tpu.vector_store %arg5[%c0_14, %c0_15, %c1_16, %c0_17], %18 {strides = array<i32>} : memref<1x8x2x128xf32, #tpu.memory_space<vmem>>, vector<1x8x1x128xf32>,
    return
  }
  func.func @transform_0(%arg0: i32, %arg1: i32) -> (i32, i32, i32) {
    %c0_i32 = arith.constant 0 : i32
    %c0_i32_0 = arith.constant 0 : i32
    return %arg0, %arg1, %c0_i32 : i32, i32, i32
  }
  func.func @transform_1(%arg0: i32, %arg1: i32) -> (i32, i32, i32) {
    %c0_i32 = arith.constant 0 : i32
    %c0_i32_0 = arith.constant 0 : i32
    %c0_i32_1 = arith.constant 0 : i32
    %c0_i32_2 = arith.constant 0 : i32
    return %c0_i32, %c0_i32_0, %c0_i32_1 : i32, i32, i32
  }
  func.func @transform_2(%arg0: i32, %arg1: i32) -> (i32, i32) {
    %c0_i32 = arith.constant 0 : i32
    %c0_i32_0 = arith.constant 0 : i32
    %c0_i32_1 = arith.constant 0 : i32
    return %c0_i32, %c0_i32_0 : i32, i32
  }
  func.func @transform_3(%arg0: i32, %arg1: i32) -> (i32, i32, i32, i32) {
    %c0_i32 = arith.constant 0 : i32
    %c0_i32_0 = arith.constant 0 : i32
    %c0_i32_1 = arith.constant 0 : i32
    return %arg0, %arg1, %c0_i32, %c0_i32_0 : i32, i32, i32, i32
  }
}

module attributes {stable_mosaic.version = 11 : i64} {
  func.func @kernel(%arg0: i32, %arg1: i32, %arg2: memref<1x16x128xf32, #tpu.memory_space<vmem>>, %arg3: memref<1x8x128xf32, #tpu.memory_space<vmem>>, %arg4: memref<1x8x128xf32, #tpu.memory_space<vmem>>, %arg5: memref<1x16x128xf32, #tpu.memory_space<vmem>>, %arg6: memref<1x8x128xf32, #tpu.memory_space<vmem>>, %arg7: memref<1x8x128xf32, #tpu.memory_space<vmem>>, %arg8: memref<3x128x128xf32, #tpu.memory_space<vmem>>, %arg9: memref<3x128x128xf32, #tpu.memory_space<vmem>>, %arg10: memref<1x128xf32, #tpu.memory_space<vmem>>, %arg11: memref<1x128xf32, #tpu.memory_space<vmem>>, %arg12: memref<1x16x128xf32, #tpu.memory_space<vmem>>) attributes {dimension_semantics = [#tpu.dimension_semantics<parallel>, #tpu.dimension_semantics<parallel>], iteration_bounds = array<i64: 2, 2>, scalar_prefetch = 0 : i64, scratch_operands = 0 : i64, tpu.core_type = #tpu.core_type<tc>, window_params = [{transform_indices = @transform_0, window_bounds = array<i64: 1, 16, 128>}, {transform_indices = @transform_1, window_bounds = array<i64: 1, 8, 128>}, {transform_indices = @transform_2, window_bounds = array<i64: 1, 8, 128>}, {transform_indices = @transform_3, window_bounds = array<i64: 1, 16, 128>}, {transform_indices = @transform_4, window_bounds = array<i64: 1, 8, 128>}, {transform_indices = @transform_5, window_bounds = array<i64: 1, 8, 128>}, {pipeline_mode = #tpu.pipeline_mode<synchronous>, transform_indices = @transform_6, window_bounds = array<i64: 3, 128, 128>}, {pipeline_mode = #tpu.pipeline_mode<synchronous>, transform_indices = @transform_7, window_bounds = array<i64: 3, 128, 128>}, {pipeline_mode = #tpu.pipeline_mode<synchronous>, transform_indices = @transform_8, window_bounds = array<i64: 1, 128>}, {pipeline_mode = #tpu.pipeline_mode<synchronous>, transform_indices = @transform_9, window_bounds = array<i64: 1, 128>}, {transform_indices = @transform_10, window_bounds = array<i64: 1, 16, 128>}]} {
    %c0_i32 = arith.constant 0 : i32
    %0 = arith.cmpi sgt, %arg1, %c0_i32 : i32
    %1 = arith.extui %0 : i1 to i32
    %2 = arith.sitofp %1 : i32 to f32
    %c1_i32 = arith.constant 1 : i32
    %3 = arith.cmpi slt, %arg1, %c1_i32 : i32
    %4 = arith.extui %3 : i1 to i32
    %5 = arith.sitofp %4 : i32 to f32
    %c0 = arith.constant 0 : index
    %c0_0 = arith.constant 0 : index
    %c0_1 = arith.constant 0 : index
    %6 = vector.load %arg2[%c0, %c0_0, %c0_1] : memref<1x16x128xf32, #tpu.memory_space<vmem>>, vector<1x16x128xf32>
    %7 = vector.shape_cast %6 : vector<1x16x128xf32> to vector<16x128xf32>
    %c0_2 = arith.constant 0 : index
    %c7 = arith.constant 7 : index
    %c0_3 = arith.constant 0 : index
    %8 = vector.load %arg3[%c0_2, %c7, %c0_3] : memref<1x8x128xf32, #tpu.memory_space<vmem>>, vector<1x1x128xf32>
    %9 = vector.shape_cast %8 : vector<1x1x128xf32> to vector<1x128xf32>
    %10 = vector.broadcast %2 : f32 to vector<1x128xf32>
    %11 = arith.mulf %9, %10 : vector<1x128xf32>
    %c0_4 = arith.constant 0 : index
    %c0_5 = arith.constant 0 : index
    %c0_6 = arith.constant 0 : index
    %12 = vector.load %arg4[%c0_4, %c0_5, %c0_6] : memref<1x8x128xf32, #tpu.memory_space<vmem>>, vector<1x1x128xf32>
    %13 = vector.shape_cast %12 : vector<1x1x128xf32> to vector<1x128xf32>
    %14 = vector.broadcast %5 : f32 to vector<1x128xf32>
    %15 = arith.mulf %13, %14 : vector<1x128xf32>
    %16 = tpu.concatenate %11, %7, %15 in 0 : vector<1x128xf32>, vector<16x128xf32>, vector<1x128xf32> -> vector<18x128xf32>
    %17 = vector.extract_strided_slice %16 {offsets = [0, 0], sizes = [16, 128], strides = [1, 1]} : vector<18x128xf32> to vector<16x128xf32>
    %c0_7 = arith.constant 0 : index
    %c0_8 = arith.constant 0 : index
    %c0_9 = arith.constant 0 : index
    %18 = vector.load %arg8[%c0_7, %c0_8, %c0_9] : memref<3x128x128xf32, #tpu.memory_space<vmem>>, vector<1x128x128xf32>
    %19 = vector.shape_cast %18 : vector<1x128x128xf32> to vector<128x128xf32>
    %cst = arith.constant dense<0.000000e+00> : vector<16x128xf32>
    %20 = tpu.matmul %17, %19, %cst {dimension_numbers = #tpu.dot_dimension_numbers<[1], [0], [0], [1], [0, 0, 1, 1], [], []>} : vector<16x128xf32>, vector<128x128xf32>, vector<16x128xf32> -> vector<16x128xf32>
    %21 = vector.extract_strided_slice %16 {offsets = [1, 0], sizes = [16, 128], strides = [1, 1]} : vector<18x128xf32> to vector<16x128xf32>
    %c1 = arith.constant 1 : index
    %c0_10 = arith.constant 0 : index
    %c0_11 = arith.constant 0 : index
    %22 = vector.load %arg8[%c1, %c0_10, %c0_11] : memref<3x128x128xf32, #tpu.memory_space<vmem>>, vector<1x128x128xf32>
    %23 = vector.shape_cast %22 : vector<1x128x128xf32> to vector<128x128xf32>
    %cst_12 = arith.constant dense<0.000000e+00> : vector<16x128xf32>
    %24 = tpu.matmul %21, %23, %cst_12 {dimension_numbers = #tpu.dot_dimension_numbers<[1], [0], [0], [1], [0, 0, 1, 1], [], []>} : vector<16x128xf32>, vector<128x128xf32>, vector<16x128xf32> -> vector<16x128xf32>
    %25 = arith.addf %20, %24 : vector<16x128xf32>
    %26 = vector.extract_strided_slice %16 {offsets = [2, 0], sizes = [16, 128], strides = [1, 1]} : vector<18x128xf32> to vector<16x128xf32>
    %c2 = arith.constant 2 : index
    %c0_13 = arith.constant 0 : index
    %c0_14 = arith.constant 0 : index
    %27 = vector.load %arg8[%c2, %c0_13, %c0_14] : memref<3x128x128xf32, #tpu.memory_space<vmem>>, vector<1x128x128xf32>
    %28 = vector.shape_cast %27 : vector<1x128x128xf32> to vector<128x128xf32>
    %cst_15 = arith.constant dense<0.000000e+00> : vector<16x128xf32>
    %29 = tpu.matmul %26, %28, %cst_15 {dimension_numbers = #tpu.dot_dimension_numbers<[1], [0], [0], [1], [0, 0, 1, 1], [], []>} : vector<16x128xf32>, vector<128x128xf32>, vector<16x128xf32> -> vector<16x128xf32>
    %30 = arith.addf %25, %29 : vector<16x128xf32>
    %c0_16 = arith.constant 0 : index
    %c0_17 = arith.constant 0 : index
    %c0_18 = arith.constant 0 : index
    %31 = vector.load %arg5[%c0_16, %c0_17, %c0_18] : memref<1x16x128xf32, #tpu.memory_space<vmem>>, vector<1x16x128xf32>
    %32 = vector.shape_cast %31 : vector<1x16x128xf32> to vector<16x128xf32>
    %c0_19 = arith.constant 0 : index
    %c7_20 = arith.constant 7 : index
    %c0_21 = arith.constant 0 : index
    %33 = vector.load %arg6[%c0_19, %c7_20, %c0_21] : memref<1x8x128xf32, #tpu.memory_space<vmem>>, vector<1x1x128xf32>
    %34 = vector.shape_cast %33 : vector<1x1x128xf32> to vector<1x128xf32>
    %35 = vector.broadcast %2 : f32 to vector<1x128xf32>
    %36 = arith.mulf %34, %35 : vector<1x128xf32>
    %c0_22 = arith.constant 0 : index
    %c0_23 = arith.constant 0 : index
    %c0_24 = arith.constant 0 : index
    %37 = vector.load %arg7[%c0_22, %c0_23, %c0_24] : memref<1x8x128xf32, #tpu.memory_space<vmem>>, vector<1x1x128xf32>
    %38 = vector.shape_cast %37 : vector<1x1x128xf32> to vector<1x128xf32>
    %39 = vector.broadcast %5 : f32 to vector<1x128xf32>
    %40 = arith.mulf %38, %39 : vector<1x128xf32>
    %41 = tpu.concatenate %36, %32, %40 in 0 : vector<1x128xf32>, vector<16x128xf32>, vector<1x128xf32> -> vector<18x128xf32>
    %42 = vector.extract_strided_slice %41 {offsets = [0, 0], sizes = [16, 128], strides = [1, 1]} : vector<18x128xf32> to vector<16x128xf32>
    %c0_25 = arith.constant 0 : index
    %c0_26 = arith.constant 0 : index
    %c0_27 = arith.constant 0 : index
    %43 = vector.load %arg9[%c0_25, %c0_26, %c0_27] : memref<3x128x128xf32, #tpu.memory_space<vmem>>, vector<1x128x128xf32>
    %44 = vector.shape_cast %43 : vector<1x128x128xf32> to vector<128x128xf32>
    %cst_28 = arith.constant dense<0.000000e+00> : vector<16x128xf32>
    %45 = tpu.matmul %42, %44, %cst_28 {dimension_numbers = #tpu.dot_dimension_numbers<[1], [0], [0], [1], [0, 0, 1, 1], [], []>} : vector<16x128xf32>, vector<128x128xf32>, vector<16x128xf32> -> vector<16x128xf32>
    %46 = arith.addf %30, %45 : vector<16x128xf32>
    %47 = vector.extract_strided_slice %41 {offsets = [1, 0], sizes = [16, 128], strides = [1, 1]} : vector<18x128xf32> to vector<16x128xf32>
    %c1_29 = arith.constant 1 : index
    %c0_30 = arith.constant 0 : index
    %c0_31 = arith.constant 0 : index
    %48 = vector.load %arg9[%c1_29, %c0_30, %c0_31] : memref<3x128x128xf32, #tpu.memory_space<vmem>>, vector<1x128x128xf32>
    %49 = vector.shape_cast %48 : vector<1x128x128xf32> to vector<128x128xf32>
    %cst_32 = arith.constant dense<0.000000e+00> : vector<16x128xf32>
    %50 = tpu.matmul %47, %49, %cst_32 {dimension_numbers = #tpu.dot_dimension_numbers<[1], [0], [0], [1], [0, 0, 1, 1], [], []>} : vector<16x128xf32>, vector<128x128xf32>, vector<16x128xf32> -> vector<16x128xf32>
    %51 = arith.addf %46, %50 : vector<16x128xf32>
    %52 = vector.extract_strided_slice %41 {offsets = [2, 0], sizes = [16, 128], strides = [1, 1]} : vector<18x128xf32> to vector<16x128xf32>
    %c2_33 = arith.constant 2 : index
    %c0_34 = arith.constant 0 : index
    %c0_35 = arith.constant 0 : index
    %53 = vector.load %arg9[%c2_33, %c0_34, %c0_35] : memref<3x128x128xf32, #tpu.memory_space<vmem>>, vector<1x128x128xf32>
    %54 = vector.shape_cast %53 : vector<1x128x128xf32> to vector<128x128xf32>
    %cst_36 = arith.constant dense<0.000000e+00> : vector<16x128xf32>
    %55 = tpu.matmul %52, %54, %cst_36 {dimension_numbers = #tpu.dot_dimension_numbers<[1], [0], [0], [1], [0, 0, 1, 1], [], []>} : vector<16x128xf32>, vector<128x128xf32>, vector<16x128xf32> -> vector<16x128xf32>
    %56 = arith.addf %51, %55 : vector<16x128xf32>
    %c0_37 = arith.constant 0 : index
    %c0_38 = arith.constant 0 : index
    %57 = vector.load %arg10[%c0_37, %c0_38] : memref<1x128xf32, #tpu.memory_space<vmem>>, vector<1x128xf32>
    %58 = vector.broadcast %57 : vector<1x128xf32> to vector<16x128xf32>
    %59 = arith.mulf %56, %58 : vector<16x128xf32>
    %c0_39 = arith.constant 0 : index
    %c0_40 = arith.constant 0 : index
    %60 = vector.load %arg11[%c0_39, %c0_40] : memref<1x128xf32, #tpu.memory_space<vmem>>, vector<1x128xf32>
    %61 = vector.broadcast %60 : vector<1x128xf32> to vector<16x128xf32>
    %62 = arith.addf %59, %61 : vector<16x128xf32>
    %cst_41 = arith.constant 5.000000e-01 : f32
    %63 = vector.broadcast %cst_41 : f32 to vector<16x128xf32>
    %64 = arith.mulf %63, %62 : vector<16x128xf32>
    %65 = math.tanh %64 : vector<16x128xf32>
    %66 = math.exp %62 : vector<16x128xf32>
    %cst_42 = arith.constant 1.000000e+00 : f32
    %67 = vector.broadcast %cst_42 : f32 to vector<16x128xf32>
    %68 = arith.addf %66, %67 : vector<16x128xf32>
    %69 = arith.mulf %65, %68 : vector<16x128xf32>
    %cst_43 = arith.constant 0.000000e+00 : f32
    %70 = vector.broadcast %cst_43 : f32 to vector<16x128xf32>
    %71 = arith.cmpf ogt, %62, %70 : vector<16x128xf32>
    %72 = arith.select %71, %62, %69 : vector<16x128xi1>, vector<16x128xf32>
    %c0_44 = arith.constant 0 : index
    %c0_45 = arith.constant 0 : index
    %c0_46 = arith.constant 0 : index
    %73 = vector.load %arg12[%c0_44, %c0_45, %c0_46] : memref<1x16x128xf32, #tpu.memory_space<vmem>>, vector<1x16x128xf32>
    %74 = vector.shape_cast %73 : vector<1x16x128xf32> to vector<16x128xf32>
    %75 = vector.shape_cast %72 : vector<16x128xf32> to vector<1x16x128xf32>
    tpu.vector_store %arg12[%c0_44, %c0_45, %c0_46], %75 {strides = array<i32>} : memref<1x16x128xf32, #tpu.memory_space<vmem>>, vector<1x16x128xf32>,
    return
  }
  func.func @transform_0(%arg0: i32, %arg1: i32) -> (i32, i32, i32) {
    %c0_i32 = arith.constant 0 : i32
    %c0_i32_0 = arith.constant 0 : i32
    return %arg0, %arg1, %c0_i32 : i32, i32, i32
  }
  func.func @transform_1(%arg0: i32, %arg1: i32) -> (i32, i32, i32) {
    %c2_i32 = arith.constant 2 : i32
    %0 = arith.muli %arg1, %c2_i32 : i32
    %c1_i32 = arith.constant 1 : i32
    %1 = arith.subi %0, %c1_i32 : i32
    %c0_i32 = arith.constant 0 : i32
    %2 = arith.maxsi %1, %c0_i32 : i32
    %c0_i32_0 = arith.constant 0 : i32
    %c0_i32_1 = arith.constant 0 : i32
    return %arg0, %2, %c0_i32_0 : i32, i32, i32
  }
  func.func @transform_2(%arg0: i32, %arg1: i32) -> (i32, i32, i32) {
    %c2_i32 = arith.constant 2 : i32
    %0 = arith.muli %arg1, %c2_i32 : i32
    %c2_i32_0 = arith.constant 2 : i32
    %1 = arith.addi %0, %c2_i32_0 : i32
    %c3_i32 = arith.constant 3 : i32
    %2 = arith.minsi %1, %c3_i32 : i32
    %c0_i32 = arith.constant 0 : i32
    %c0_i32_1 = arith.constant 0 : i32
    return %arg0, %2, %c0_i32 : i32, i32, i32
  }
  func.func @transform_3(%arg0: i32, %arg1: i32) -> (i32, i32, i32) {
    %c0_i32 = arith.constant 0 : i32
    %c0_i32_0 = arith.constant 0 : i32
    return %arg0, %arg1, %c0_i32 : i32, i32, i32
  }
  func.func @transform_4(%arg0: i32, %arg1: i32) -> (i32, i32, i32) {
    %c2_i32 = arith.constant 2 : i32
    %0 = arith.muli %arg1, %c2_i32 : i32
    %c1_i32 = arith.constant 1 : i32
    %1 = arith.subi %0, %c1_i32 : i32
    %c0_i32 = arith.constant 0 : i32
    %2 = arith.maxsi %1, %c0_i32 : i32
    %c0_i32_0 = arith.constant 0 : i32
    %c0_i32_1 = arith.constant 0 : i32
    return %arg0, %2, %c0_i32_0 : i32, i32, i32
  }
  func.func @transform_5(%arg0: i32, %arg1: i32) -> (i32, i32, i32) {
    %c2_i32 = arith.constant 2 : i32
    %0 = arith.muli %arg1, %c2_i32 : i32
    %c2_i32_0 = arith.constant 2 : i32
    %1 = arith.addi %0, %c2_i32_0 : i32
    %c3_i32 = arith.constant 3 : i32
    %2 = arith.minsi %1, %c3_i32 : i32
    %c0_i32 = arith.constant 0 : i32
    %c0_i32_1 = arith.constant 0 : i32
    return %arg0, %2, %c0_i32 : i32, i32, i32
  }
  func.func @transform_6(%arg0: i32, %arg1: i32) -> (i32, i32, i32) {
    %c0_i32 = arith.constant 0 : i32
    %c0_i32_0 = arith.constant 0 : i32
    %c0_i32_1 = arith.constant 0 : i32
    %c0_i32_2 = arith.constant 0 : i32
    return %c0_i32, %c0_i32_0, %c0_i32_1 : i32, i32, i32
  }
  func.func @transform_7(%arg0: i32, %arg1: i32) -> (i32, i32, i32) {
    %c0_i32 = arith.constant 0 : i32
    %c0_i32_0 = arith.constant 0 : i32
    %c0_i32_1 = arith.constant 0 : i32
    %c0_i32_2 = arith.constant 0 : i32
    return %c0_i32, %c0_i32_0, %c0_i32_1 : i32, i32, i32
  }
  func.func @transform_8(%arg0: i32, %arg1: i32) -> (i32, i32) {
    %c0_i32 = arith.constant 0 : i32
    %c0_i32_0 = arith.constant 0 : i32
    %c0_i32_1 = arith.constant 0 : i32
    return %c0_i32, %c0_i32_0 : i32, i32
  }
  func.func @transform_9(%arg0: i32, %arg1: i32) -> (i32, i32) {
    %c0_i32 = arith.constant 0 : i32
    %c0_i32_0 = arith.constant 0 : i32
    %c0_i32_1 = arith.constant 0 : i32
    return %c0_i32, %c0_i32_0 : i32, i32
  }
  func.func @transform_10(%arg0: i32, %arg1: i32) -> (i32, i32, i32) {
    %c0_i32 = arith.constant 0 : i32
    %c0_i32_0 = arith.constant 0 : i32
    return %arg0, %arg1, %c0_i32 : i32, i32, i32
  }
}

module attributes {stable_mosaic.version = 11 : i64} {
  func.func @kernel(%arg0: i32, %arg1: i32, %arg2: memref<1x16x128xf32, #tpu.memory_space<vmem>>, %arg3: memref<1x8x128xf32, #tpu.memory_space<vmem>>, %arg4: memref<1x8x128xf32, #tpu.memory_space<vmem>>, %arg5: memref<3x128x128xf32, #tpu.memory_space<vmem>>, %arg6: memref<1x128xf32, #tpu.memory_space<vmem>>, %arg7: memref<1x128xf32, #tpu.memory_space<vmem>>, %arg8: memref<1x16x128xf32, #tpu.memory_space<vmem>>) attributes {dimension_semantics = [#tpu.dimension_semantics<parallel>, #tpu.dimension_semantics<parallel>], iteration_bounds = array<i64: 2, 2>, scalar_prefetch = 0 : i64, scratch_operands = 0 : i64, tpu.core_type = #tpu.core_type<tc>, window_params = [{transform_indices = @transform_0, window_bounds = array<i64: 1, 16, 128>}, {transform_indices = @transform_1, window_bounds = array<i64: 1, 8, 128>}, {transform_indices = @transform_2, window_bounds = array<i64: 1, 8, 128>}, {pipeline_mode = #tpu.pipeline_mode<synchronous>, transform_indices = @transform_3, window_bounds = array<i64: 3, 128, 128>}, {pipeline_mode = #tpu.pipeline_mode<synchronous>, transform_indices = @transform_4, window_bounds = array<i64: 1, 128>}, {pipeline_mode = #tpu.pipeline_mode<synchronous>, transform_indices = @transform_5, window_bounds = array<i64: 1, 128>}, {transform_indices = @transform_6, window_bounds = array<i64: 1, 16, 128>}]} {
    %c0_i32 = arith.constant 0 : i32
    %0 = arith.cmpi sgt, %arg1, %c0_i32 : i32
    %1 = arith.extui %0 : i1 to i32
    %2 = arith.sitofp %1 : i32 to f32
    %c1_i32 = arith.constant 1 : i32
    %3 = arith.cmpi slt, %arg1, %c1_i32 : i32
    %4 = arith.extui %3 : i1 to i32
    %5 = arith.sitofp %4 : i32 to f32
    %c0 = arith.constant 0 : index
    %c0_0 = arith.constant 0 : index
    %c0_1 = arith.constant 0 : index
    %6 = vector.load %arg2[%c0, %c0_0, %c0_1] : memref<1x16x128xf32, #tpu.memory_space<vmem>>, vector<1x16x128xf32>
    %7 = vector.shape_cast %6 : vector<1x16x128xf32> to vector<16x128xf32>
    %c0_2 = arith.constant 0 : index
    %c7 = arith.constant 7 : index
    %c0_3 = arith.constant 0 : index
    %8 = vector.load %arg3[%c0_2, %c7, %c0_3] : memref<1x8x128xf32, #tpu.memory_space<vmem>>, vector<1x1x128xf32>
    %9 = vector.shape_cast %8 : vector<1x1x128xf32> to vector<1x128xf32>
    %10 = vector.broadcast %2 : f32 to vector<1x128xf32>
    %11 = arith.mulf %9, %10 : vector<1x128xf32>
    %c0_4 = arith.constant 0 : index
    %c0_5 = arith.constant 0 : index
    %c0_6 = arith.constant 0 : index
    %12 = vector.load %arg4[%c0_4, %c0_5, %c0_6] : memref<1x8x128xf32, #tpu.memory_space<vmem>>, vector<1x1x128xf32>
    %13 = vector.shape_cast %12 : vector<1x1x128xf32> to vector<1x128xf32>
    %14 = vector.broadcast %5 : f32 to vector<1x128xf32>
    %15 = arith.mulf %13, %14 : vector<1x128xf32>
    %16 = tpu.concatenate %11, %7, %15 in 0 : vector<1x128xf32>, vector<16x128xf32>, vector<1x128xf32> -> vector<18x128xf32>
    %17 = vector.extract_strided_slice %16 {offsets = [0, 0], sizes = [16, 128], strides = [1, 1]} : vector<18x128xf32> to vector<16x128xf32>
    %c0_7 = arith.constant 0 : index
    %c0_8 = arith.constant 0 : index
    %c0_9 = arith.constant 0 : index
    %18 = vector.load %arg5[%c0_7, %c0_8, %c0_9] : memref<3x128x128xf32, #tpu.memory_space<vmem>>, vector<1x128x128xf32>
    %19 = vector.shape_cast %18 : vector<1x128x128xf32> to vector<128x128xf32>
    %cst = arith.constant dense<0.000000e+00> : vector<16x128xf32>
    %20 = tpu.matmul %17, %19, %cst {dimension_numbers = #tpu.dot_dimension_numbers<[1], [0], [0], [1], [0, 0, 1, 1], [], []>} : vector<16x128xf32>, vector<128x128xf32>, vector<16x128xf32> -> vector<16x128xf32>
    %21 = vector.extract_strided_slice %16 {offsets = [1, 0], sizes = [16, 128], strides = [1, 1]} : vector<18x128xf32> to vector<16x128xf32>
    %c1 = arith.constant 1 : index
    %c0_10 = arith.constant 0 : index
    %c0_11 = arith.constant 0 : index
    %22 = vector.load %arg5[%c1, %c0_10, %c0_11] : memref<3x128x128xf32, #tpu.memory_space<vmem>>, vector<1x128x128xf32>
    %23 = vector.shape_cast %22 : vector<1x128x128xf32> to vector<128x128xf32>
    %cst_12 = arith.constant dense<0.000000e+00> : vector<16x128xf32>
    %24 = tpu.matmul %21, %23, %cst_12 {dimension_numbers = #tpu.dot_dimension_numbers<[1], [0], [0], [1], [0, 0, 1, 1], [], []>} : vector<16x128xf32>, vector<128x128xf32>, vector<16x128xf32> -> vector<16x128xf32>
    %25 = arith.addf %20, %24 : vector<16x128xf32>
    %26 = vector.extract_strided_slice %16 {offsets = [2, 0], sizes = [16, 128], strides = [1, 1]} : vector<18x128xf32> to vector<16x128xf32>
    %c2 = arith.constant 2 : index
    %c0_13 = arith.constant 0 : index
    %c0_14 = arith.constant 0 : index
    %27 = vector.load %arg5[%c2, %c0_13, %c0_14] : memref<3x128x128xf32, #tpu.memory_space<vmem>>, vector<1x128x128xf32>
    %28 = vector.shape_cast %27 : vector<1x128x128xf32> to vector<128x128xf32>
    %cst_15 = arith.constant dense<0.000000e+00> : vector<16x128xf32>
    %29 = tpu.matmul %26, %28, %cst_15 {dimension_numbers = #tpu.dot_dimension_numbers<[1], [0], [0], [1], [0, 0, 1, 1], [], []>} : vector<16x128xf32>, vector<128x128xf32>, vector<16x128xf32> -> vector<16x128xf32>
    %30 = arith.addf %25, %29 : vector<16x128xf32>
    %c0_16 = arith.constant 0 : index
    %c0_17 = arith.constant 0 : index
    %31 = vector.load %arg6[%c0_16, %c0_17] : memref<1x128xf32, #tpu.memory_space<vmem>>, vector<1x128xf32>
    %32 = vector.broadcast %31 : vector<1x128xf32> to vector<16x128xf32>
    %33 = arith.mulf %30, %32 : vector<16x128xf32>
    %c0_18 = arith.constant 0 : index
    %c0_19 = arith.constant 0 : index
    %34 = vector.load %arg7[%c0_18, %c0_19] : memref<1x128xf32, #tpu.memory_space<vmem>>, vector<1x128xf32>
    %35 = vector.broadcast %34 : vector<1x128xf32> to vector<16x128xf32>
    %36 = arith.addf %33, %35 : vector<16x128xf32>
    %cst_20 = arith.constant 5.000000e-01 : f32
    %37 = vector.broadcast %cst_20 : f32 to vector<16x128xf32>
    %38 = arith.mulf %37, %36 : vector<16x128xf32>
    %39 = math.tanh %38 : vector<16x128xf32>
    %40 = math.exp %36 : vector<16x128xf32>
    %cst_21 = arith.constant 1.000000e+00 : f32
    %41 = vector.broadcast %cst_21 : f32 to vector<16x128xf32>
    %42 = arith.addf %40, %41 : vector<16x128xf32>
    %43 = arith.mulf %39, %42 : vector<16x128xf32>
    %cst_22 = arith.constant 0.000000e+00 : f32
    %44 = vector.broadcast %cst_22 : f32 to vector<16x128xf32>
    %45 = arith.cmpf ogt, %36, %44 : vector<16x128xf32>
    %46 = arith.select %45, %36, %43 : vector<16x128xi1>, vector<16x128xf32>
    %c0_23 = arith.constant 0 : index
    %c0_24 = arith.constant 0 : index
    %c0_25 = arith.constant 0 : index
    %47 = vector.load %arg8[%c0_23, %c0_24, %c0_25] : memref<1x16x128xf32, #tpu.memory_space<vmem>>, vector<1x16x128xf32>
    %48 = vector.shape_cast %47 : vector<1x16x128xf32> to vector<16x128xf32>
    %49 = vector.shape_cast %46 : vector<16x128xf32> to vector<1x16x128xf32>
    tpu.vector_store %arg8[%c0_23, %c0_24, %c0_25], %49 {strides = array<i32>} : memref<1x16x128xf32, #tpu.memory_space<vmem>>, vector<1x16x128xf32>,
    return
  }
  func.func @transform_0(%arg0: i32, %arg1: i32) -> (i32, i32, i32) {
    %c0_i32 = arith.constant 0 : i32
    %c0_i32_0 = arith.constant 0 : i32
    return %arg0, %arg1, %c0_i32 : i32, i32, i32
  }
  func.func @transform_1(%arg0: i32, %arg1: i32) -> (i32, i32, i32) {
    %c2_i32 = arith.constant 2 : i32
    %0 = arith.muli %arg1, %c2_i32 : i32
    %c1_i32 = arith.constant 1 : i32
    %1 = arith.subi %0, %c1_i32 : i32
    %c0_i32 = arith.constant 0 : i32
    %2 = arith.maxsi %1, %c0_i32 : i32
    %c0_i32_0 = arith.constant 0 : i32
    %c0_i32_1 = arith.constant 0 : i32
    return %arg0, %2, %c0_i32_0 : i32, i32, i32
  }
  func.func @transform_2(%arg0: i32, %arg1: i32) -> (i32, i32, i32) {
    %c2_i32 = arith.constant 2 : i32
    %0 = arith.muli %arg1, %c2_i32 : i32
    %c2_i32_0 = arith.constant 2 : i32
    %1 = arith.addi %0, %c2_i32_0 : i32
    %c3_i32 = arith.constant 3 : i32
    %2 = arith.minsi %1, %c3_i32 : i32
    %c0_i32 = arith.constant 0 : i32
    %c0_i32_1 = arith.constant 0 : i32
    return %arg0, %2, %c0_i32 : i32, i32, i32
  }
  func.func @transform_3(%arg0: i32, %arg1: i32) -> (i32, i32, i32) {
    %c0_i32 = arith.constant 0 : i32
    %c0_i32_0 = arith.constant 0 : i32
    %c0_i32_1 = arith.constant 0 : i32
    %c0_i32_2 = arith.constant 0 : i32
    return %c0_i32, %c0_i32_0, %c0_i32_1 : i32, i32, i32
  }
  func.func @transform_4(%arg0: i32, %arg1: i32) -> (i32, i32) {
    %c0_i32 = arith.constant 0 : i32
    %c0_i32_0 = arith.constant 0 : i32
    %c0_i32_1 = arith.constant 0 : i32
    return %c0_i32, %c0_i32_0 : i32, i32
  }
  func.func @transform_5(%arg0: i32, %arg1: i32) -> (i32, i32) {
    %c0_i32 = arith.constant 0 : i32
    %c0_i32_0 = arith.constant 0 : i32
    %c0_i32_1 = arith.constant 0 : i32
    return %c0_i32, %c0_i32_0 : i32, i32
  }
  func.func @transform_6(%arg0: i32, %arg1: i32) -> (i32, i32, i32) {
    %c0_i32 = arith.constant 0 : i32
    %c0_i32_0 = arith.constant 0 : i32
    return %arg0, %arg1, %c0_i32 : i32, i32, i32
  }
}

</mosaic_0001>

<llo_original>
// kernel: tile.28
$region0: #{tile.28}
  #allocation0 [shape = 's32[1]{0}', space=sflag, size = 0x4, scoped, tag = 'scoped memory for tile.28']
  %s0 = inlined_call_operand.vmem [shape: f32[4], index: 0, kind: input, shape index: {}]
  %s1 = inlined_call_operand.vmem [shape: f32[32,4], index: 1, kind: output, shape index: {}]
  // Predicated region
  $region2: #{tile.28} parent=0 // pred_check
    _
  $region3: #{tile.28} parent=0 // pred_check_branch
    %3 = sbr.rel (0) target = $region5
  $region4: #{tile.28} parent=0 // pred_region
    _
  $region5: #{tile.28} parent=0 // pred_fallthru
    _
  %v4 = vld [vmem:[%s0] ss:$0 sm:$0xff]
  %5 = vst [vmem:[%s1] sm:$0xff] %v4
  %s6 = scalar_lea.vmem %s1, 8
  %7 = vst [vmem:[%s6] sm:$0xff] %v4
  %s8 = scalar_lea.vmem %s1, 16
  %9 = vst [vmem:[%s8] sm:$0xff] %v4
  %s10 = scalar_lea.vmem %s1, 24
  %11 = vst [vmem:[%s10] sm:$0xff] %v4

// kernel: tile.29
$region0: #{tile.29}
  %s0 = inlined_call_operand.vmem [shape: f32[32,4], index: 0, kind: input, shape index: {}]
  %s1 = inlined_call_operand.vmem [shape: f32[1,128], index: 1, kind: output, shape index: {}]
  $region1: #{tile.29} parent=0
    #allocation0 [shape = 'u8[4096]{0}', space=vmem, size = 0x1000, scoped, tag = 'scoped mem for output reshape']
    %v2 = vld [vmem:[%s0] sm:$0x1]
    %vm3 = vcmask 31744
    %4 = vst.msk [vmem:[#allocation0] sm:$0x1] %vm3, %v2
    %s5 = scalar_lea.vmem %s0, 31
    %v6 = vld [vmem:[%s5] sm:$0x1]
    %7 = vrot.lane.b32.xlu0 %v6, 124
    %v8 = vpop.permute.xlu0 %7
    %vm9 = vcmask 1048544
    %10 = vst.msk [vmem:[#allocation0] sm:$0x1] %vm9, %v8
    %s11 = scalar_lea.vmem %s0, 30
    %v12 = vld [vmem:[%s11] sm:$0x1]
    %13 = vrot.lane.b32.xlu0 %v12, 120
    %v14 = vpop.permute.xlu0 %13
    %vm15 = vcmask 1015744
    %16 = vst.msk [vmem:[#allocation0] sm:$0x1] %vm15, %v14
    %s17 = scalar_lea.vmem %s0, 29
    %v18 = vld [vmem:[%s17] sm:$0x1]
    %19 = vrot.lane.b32.xlu0 %v18, 116
    %v20 = vpop.permute.xlu0 %19
    %vm21 = vcmask 982944
    %22 = vst.msk [vmem:[#allocation0] sm:$0x1] %vm21, %v20
    %s23 = scalar_lea.vmem %s0, 28
    %v24 = vld [vmem:[%s23] sm:$0x1]
    %25 = vrot.lane.b32.xlu0 %v24, 112
    %v26 = vpop.permute.xlu0 %25
    %vm27 = vcmask 950144
    %28 = vst.msk [vmem:[#allocation0] sm:$0x1] %vm27, %v26
    %s29 = scalar_lea.vmem %s0, 27
    %v30 = vld [vmem:[%s29] sm:$0x1]
    %31 = vrot.lane.b32.xlu0 %v30, 108
    %v32 = vpop.permute.xlu0 %31
    %vm33 = vcmask 917344
    %34 = vst.msk [vmem:[#allocation0] sm:$0x1] %vm33, %v32
    %s35 = scalar_lea.vmem %s0, 26
    %v36 = vld [vmem:[%s35] sm:$0x1]
    %37 = vrot.lane.b32.xlu0 %v36, 104
    %v38 = vpop.permute.xlu0 %37
    %vm39 = vcmask 884544
    %40 = vst.msk [vmem:[#allocation0] sm:$0x1] %vm39, %v38
    %s41 = scalar_lea.vmem %s0, 25
    %v42 = vld [vmem:[%s41] sm:$0x1]
    %43 = vrot.lane.b32.xlu0 %v42, 100
    %v44 = vpop.permute.xlu0 %43
    %vm45 = vcmask 851744
    %46 = vst.msk [vmem:[#allocation0] sm:$0x1] %vm45, %v44
    %s47 = scalar_lea.vmem %s0, 24
    %v48 = vld [vmem:[%s47] sm:$0x1]
    %49 = vrot.lane.b32.xlu0 %v48, 96
    %v50 = vpop.permute.xlu0 %49
    %vm51 = vcmask 818944
    %52 = vst.msk [vmem:[#allocation0] sm:$0x1] %vm51, %v50
    %s53 = scalar_lea.vmem %s0, 23
    %v54 = vld [vmem:[%s53] sm:$0x1]
    %55 = vrot.lane.b32.xlu0 %v54, 92
    %v56 = vpop.permute.xlu0 %55
    %vm57 = vcmask 786144
    %58 = vst.msk [vmem:[#allocation0] sm:$0x1] %vm57, %v56
    %s59 = scalar_lea.vmem %s0, 22
    %v60 = vld [vmem:[%s59] sm:$0x1]
    %61 = vrot.lane.b32.xlu0 %v60, 88
    %v62 = vpop.permute.xlu0 %61
    %vm63 = vcmask 753344
    %64 = vst.msk [vmem:[#allocation0] sm:$0x1] %vm63, %v62
    %s65 = scalar_lea.vmem %s0, 21
    %v66 = vld [vmem:[%s65] sm:$0x1]
    %67 = vrot.lane.b32.xlu0 %v66, 84
    %v68 = vpop.permute.xlu0 %67
    %vm69 = vcmask 720544
    %70 = vst.msk [vmem:[#allocation0] sm:$0x1] %vm69, %v68
    %s71 = scalar_lea.vmem %s0, 20
    %v72 = vld [vmem:[%s71] sm:$0x1]
    %73 = vrot.lane.b32.xlu0 %v72, 80
    %v74 = vpop.permute.xlu0 %73
    %vm75 = vcmask 687744
    %76 = vst.msk [vmem:[#allocation0] sm:$0x1] %vm75, %v74
    %s77 = scalar_lea.vmem %s0, 19
    %v78 = vld [vmem:[%s77] sm:$0x1]
    %79 = vrot.lane.b32.xlu0 %v78, 76
    %v80 = vpop.permute.xlu0 %79
    %vm81 = vcmask 654944
    %82 = vst.msk [vmem:[#allocation0] sm:$0x1] %vm81, %v80
    %s83 = scalar_lea.vmem %s0, 18
    %v84 = vld [vmem:[%s83] sm:$0x1]
    %85 = vrot.lane.b32.xlu0 %v84, 72
    %v86 = vpop.permute.xlu0 %85
    %vm87 = vcmask 622144
    %88 = vst.msk [vmem:[#allocation0] sm:$0x1] %vm87, %v86
    %s89 = scalar_lea.vmem %s0, 17
    %v90 = vld [vmem:[%s89] sm:$0x1]
    %91 = vrot.lane.b32.xlu0 %v90, 68
    %v92 = vpop.permute.xlu0 %91
    %vm93 = vcmask 589344
    %94 = vst.msk [vmem:[#allocation0] sm:$0x1] %vm93, %v92
    %s95 = scalar_lea.vmem %s0, 16
    %v96 = vld [vmem:[%s95] sm:$0x1]
    %97 = vrot.lane.b32.xlu0 %v96, 64
    %v98 = vpop.permute.xlu0 %97
    %vm99 = vcmask 556544
    %100 = vst.msk [vmem:[#allocation0] sm:$0x1] %vm99, %v98
    %s101 = scalar_lea.vmem %s0, 15
    %v102 = vld [vmem:[%s101] sm:$0x1]
    %103 = vrot.lane.b32.xlu0 %v102, 60
    %v104 = vpop.permute.xlu0 %103
    %vm105 = vcmask 523744
    %106 = vst.msk [vmem:[#allocation0] sm:$0x1] %vm105, %v104
    %s107 = scalar_lea.vmem %s0, 14
    %v108 = vld [vmem:[%s107] sm:$0x1]
    %109 = vrot.lane.b32.xlu0 %v108, 56
    %v110 = vpop.permute.xlu0 %109
    %vm111 = vcmask 490944
    %112 = vst.msk [vmem:[#allocation0] sm:$0x1] %vm111, %v110
    %s113 = scalar_lea.vmem %s0, 13
    %v114 = vld [vmem:[%s113] sm:$0x1]
    %115 = vrot.lane.b32.xlu0 %v114, 52
    %v116 = vpop.permute.xlu0 %115
    %vm117 = vcmask 458144
    %118 = vst.msk [vmem:[#allocation0] sm:$0x1] %vm117, %v116
    %s119 = scalar_lea.vmem %s0, 12
    %v120 = vld [vmem:[%s119] sm:$0x1]
    %121 = vrot.lane.b32.xlu0 %v120, 48
    %v122 = vpop.permute.xlu0 %121
    %vm123 = vcmask 425344
    %124 = vst.msk [vmem:[#allocation0] sm:$0x1] %vm123, %v122
    %s125 = scalar_lea.vmem %s0, 11
    %v126 = vld [vmem:[%s125] sm:$0x1]
    %127 = vrot.lane.b32.xlu0 %v126, 44
    %v128 = vpop.permute.xlu0 %127
    %vm129 = vcmask 392544
    %130 = vst.msk [vmem:[#allocation0] sm:$0x1] %vm129, %v128
    %s131 = scalar_lea.vmem %s0, 10
    %v132 = vld [vmem:[%s131] sm:$0x1]
    %133 = vrot.lane.b32.xlu0 %v132, 40
    %v134 = vpop.permute.xlu0 %133
    %vm135 = vcmask 359744
    %136 = vst.msk [vmem:[#allocation0] sm:$0x1] %vm135, %v134
    %s137 = scalar_lea.vmem %s0, 9
    %v138 = vld [vmem:[%s137] sm:$0x1]
    %139 = vrot.lane.b32.xlu0 %v138, 36
    %v140 = vpop.permute.xlu0 %139
    %vm141 = vcmask 326944
    %142 = vst.msk [vmem:[#allocation0] sm:$0x1] %vm141, %v140
    %s143 = scalar_lea.vmem %s0, 8
    %v144 = vld [vmem:[%s143] sm:$0x1]
    %145 = vrot.lane.b32.xlu0 %v144, 32
    %v146 = vpop.permute.xlu0 %145
    %vm147 = vcmask 294144
    %148 = vst.msk [vmem:[#allocation0] sm:$0x1] %vm147, %v146
    %s149 = scalar_lea.vmem %s0, 7
    %v150 = vld [vmem:[%s149] sm:$0x1]
    %151 = vrot.lane.b32.xlu0 %v150, 28
    %v152 = vpop.permute.xlu0 %151
    %vm153 = vcmask 261344
    %154 = vst.msk [vmem:[#allocation0] sm:$0x1] %vm153, %v152
    %s155 = scalar_lea.vmem %s0, 6
    %v156 = vld [vmem:[%s155] sm:$0x1]
    %157 = vrot.lane.b32.xlu0 %v156, 24
    %v158 = vpop.permute.xlu0 %157
    %vm159 = vcmask 228544
    %160 = vst.msk [vmem:[#allocation0] sm:$0x1] %vm159, %v158
    %s161 = scalar_lea.vmem %s0, 5
    %v162 = vld [vmem:[%s161] sm:$0x1]
    %163 = vrot.lane.b32.xlu0 %v162, 20
    %v164 = vpop.permute.xlu0 %163
    %vm165 = vcmask 195744
    %166 = vst.msk [vmem:[#allocation0] sm:$0x1] %vm165, %v164
    %s167 = scalar_lea.vmem %s0, 4
    %v168 = vld [vmem:[%s167] sm:$0x1]
    %169 = vrot.lane.b32.xlu0 %v168, 16
    %v170 = vpop.permute.xlu0 %169
    %vm171 = vcmask 162944
    %172 = vst.msk [vmem:[#allocation0] sm:$0x1] %vm171, %v170
    %s173 = scalar_lea.vmem %s0, 3
    %v174 = vld [vmem:[%s173] sm:$0x1]
    %175 = vrot.lane.b32.xlu0 %v174, 12
    %v176 = vpop.permute.xlu0 %175
    %vm177 = vcmask 130144
    %178 = vst.msk [vmem:[#allocation0] sm:$0x1] %vm177, %v176
    %s179 = scalar_lea.vmem %s0, 2
    %v180 = vld [vmem:[%s179] sm:$0x1]
    %181 = vrot.lane.b32.xlu0 %v180, 8
    %v182 = vpop.permute.xlu0 %181
    %vm183 = vcmask 97344
    %184 = vst.msk [vmem:[#allocation0] sm:$0x1] %vm183, %v182
    %s185 = scalar_lea.vmem %s0, 1
    %v186 = vld [vmem:[%s185] sm:$0x1]
    %187 = vrot.lane.b32.xlu0 %v186, 4
    %v188 = vpop.permute.xlu0 %187
    %vm189 = vcmask 64544
    %190 = vst.msk [vmem:[#allocation0] sm:$0x1] %vm189, %v188
    %s192 = sshllo.u32 0, 1
    %v194 = vld [vmem:[#allocation0] sm:%s192]
    %s195 = sshllo.u32 0, 1
    %196 = vst [vmem:[%s1] sm:%s195] %v194

// kernel: upsampling_layer_forward.3
$region0: #{upsampling_layer_forward.3}
  #allocation0 [shape = 'u32[]', space=smem, size = 0x4, offset = 0x4, fixed_abs, tag = 'smem constant byte address 0x4 - core index']
  #allocation1 [shape = 'u32[144,128]{1,0:T(1,128)}', space=vmem, size = 0x12000, scoped, tag = 'internal scratch']
  %s0 = inlined_call_operand.vmem [shape: f32[2,16,128], index: 0, kind: input, shape index: {}]
  %s1 = inlined_call_operand.vmem [shape: f32[2,128,128], index: 1, kind: input, shape index: {}]
  %s2 = inlined_call_operand.vmem [shape: f32[1,128], index: 2, kind: input, shape index: {}]
  %s3 = inlined_call_operand.vmem [shape: f32[2,16,2,128], index: 3, kind: output, shape index: {}]
  %s4 = sld [smem:[#allocation0]]
  $region45: #{upsampling_layer_forward.3} parent=0
    _
  %s6 = ssub.s32 1, %s4
  %s7 = scalar_select 0, %s6, %s4
  loop: start=0, step=1, limit=6
  $region2: #{upsampling_layer_forward.3} parent=0 // loop_pre_header
    _
  $region3: #{upsampling_layer_forward.3} parent=0 // loop_header
    %s9 = sphi 0, %s13
    %p10 = scmp.ge.s32.totalorder %s9, 6
    %s16 = sphi 0, %s28
    %s17 = sphi 0, %s24
    %s18 = sphi 0, %s16
    %s19 = sphi 0, %s17
    %s20 = sphi 0, %s18
    %s21 = sphi 0, %s19
    %s33 = sphi 0, %s35
    %s36 = sphi 0, %s33
    %s37 = sphi 0, %s36
    %s53 = sphi 0, %s37
    %s57 = sphi 0, %s57
    %s59 = sphi 0, %s57
    %s60 = sphi 0, %s59
    %s74 = sphi 0, %s60
    %s78 = sphi 0, %s78
    %s80 = sphi 0, %s78
    %s81 = sphi 0, %s80
    %s95 = sphi 0, %s81
    %s103 = sphi 0, %s105
    %s106 = sphi 0, %s103
    %s107 = sphi 0, %s106
    %s123 = sphi 0, %s107
  $region4: #{upsampling_layer_forward.3} parent=0 // loop_header_branch
    %12 = sbr.rel (%p10) target = $region8
  $region5: #{upsampling_layer_forward.3} parent=0 // loop_body
    %s14 = ssub.s32 %s9, 1
    %s15 = ssub.s32 %s9, 2
    %s22 = sadd.s32 1, %s17
    %p23 = scmp.ge.s32.totalorder %s22, 2
    %s24 = scalar_select %p23, 0, %s22
    %s25 = sadd.s32 1, %s16
    %s26 = scalar_select %p23, %s25, %s16
    %p27 = scmp.ge.s32.totalorder %s26, 2
    %s28 = scalar_select %p27, 0, %s26
    %s29 = ssub.s32 %s16, %s28
    %s30 = ssub.s32 %s17, %s24
    %s31 = sor.u32 %s29, %s30
    %p32 = scmp.eq.s32.totalorder %s31, 0
    %s34 = sadd.s32 %s33, 1
    %s35 = scalar_select %p32, %s33, %s34
    %p38 = pneg %p32
    %p39 = scmp.eq.s32.totalorder %s9, 3
    %p40 = por %p38, %p39
    %p41 = scmp.ne.s32.totalorder %s33, %s36
    %p42 = scmp.eq.s32.totalorder %s9, 0
    %p43 = por %p41, %p42
    %p44 = scmp.ne.s32.totalorder %s33, %s36
    %p45 = scmp.eq.s32.totalorder %s14, 3
    %p46 = por %p44, %p45
    %p47 = scmp.ne.s32.totalorder %s36, %s37
    %p48 = scmp.eq.s32.totalorder %s14, 0
    %p49 = por %p47, %p48
    %p50 = scmp.ne.s32.totalorder %s36, %s37
    %p51 = scmp.eq.s32.totalorder %s15, 3
    %p52 = por %p50, %p51
    %p54 = scmp.ne.s32.totalorder %s37, %s53
    %p55 = scmp.eq.s32.totalorder %s15, 0
    %p56 = por %p54, %p55
    %s58 = sadd.s32 %s57, 1
    %p61 = scmp.eq.s32.totalorder %s9, 3
    %p62 = scmp.ne.s32.totalorder %s57, %s59
    %p63 = scmp.eq.s32.totalorder %s9, 0
    %p64 = por %p62, %p63
    %p65 = scmp.ne.s32.totalorder %s57, %s59
    %p66 = scmp.eq.s32.totalorder %s14, 3
    %p67 = por %p65, %p66
    %p68 = scmp.ne.s32.totalorder %s59, %s60
    %p69 = scmp.eq.s32.totalorder %s14, 0
    %p70 = por %p68, %p69
    %p71 = scmp.ne.s32.totalorder %s59, %s60
    %p72 = scmp.eq.s32.totalorder %s15, 3
    %p73 = por %p71, %p72
    %p75 = scmp.ne.s32.totalorder %s60, %s74
    %p76 = scmp.eq.s32.totalorder %s15, 0
    %p77 = por %p75, %p76
    %s79 = sadd.s32 %s78, 1
    %p82 = scmp.eq.s32.totalorder %s9, 3
    %p83 = scmp.ne.s32.totalorder %s78, %s80
    %p84 = scmp.eq.s32.totalorder %s9, 0
    %p85 = por %p83, %p84
    %p86 = scmp.ne.s32.totalorder %s78, %s80
    %p87 = scmp.eq.s32.totalorder %s14, 3
    %p88 = por %p86, %p87
    %p89 = scmp.ne.s32.totalorder %s80, %s81
    %p90 = scmp.eq.s32.totalorder %s14, 0
    %p91 = por %p89, %p90
    %p92 = scmp.ne.s32.totalorder %s80, %s81
    %p93 = scmp.eq.s32.totalorder %s15, 3
    %p94 = por %p92, %p93
    %p96 = scmp.ne.s32.totalorder %s81, %s95
    %p97 = scmp.eq.s32.totalorder %s15, 0
    %p98 = por %p96, %p97
    %s99 = ssub.s32 %s16, %s28
    %s100 = ssub.s32 %s17, %s24
    %s101 = sor.u32 %s99, %s100
    %p102 = scmp.eq.s32.totalorder %s101, 0
    %s104 = sadd.s32 %s103, 1
    %s105 = scalar_select %p102, %s103, %s104
    %p108 = pneg %p102
    %p109 = scmp.eq.s32.totalorder %s9, 3
    %p110 = por %p108, %p109
    %p111 = scmp.ne.s32.totalorder %s103, %s106
    %p112 = scmp.eq.s32.totalorder %s9, 0
    %p113 = por %p111, %p112
    %p114 = scmp.ne.s32.totalorder %s103, %s106
    %p115 = scmp.eq.s32.totalorder %s14, 3
    %p116 = por %p114, %p115
    %p117 = scmp.ne.s32.totalorder %s106, %s107
    %p118 = scmp.eq.s32.totalorder %s14, 0
    %p119 = por %p117, %p118
    %p120 = scmp.ne.s32.totalorder %s106, %s107
    %p121 = scmp.eq.s32.totalorder %s15, 3
    %p122 = por %p120, %p121
    %p124 = scmp.ne.s32.totalorder %s107, %s123
    %p125 = scmp.eq.s32.totalorder %s15, 0
    %p126 = por %p124, %p125
    %p127 = scmp.le.s32.totalorder 1, %s9
    %p128 = scmp.lt.s32.totalorder %s9, 5
    %p129 = pnand %p127, %p128
    %p130 = pneg %p129
    // Predicated region
    $region9: #{upsampling_layer_forward.3} parent=5 // pred_check
      _
    $region10: #{upsampling_layer_forward.3} parent=5 // pred_check_branch
      %132 = sbr.rel (%p129) target = $region12
    $region11: #{upsampling_layer_forward.3} parent=5 // pred_region
      %s133 = ssub.s32 %s9, 1
      // Predicated region
      $region13: #{upsampling_layer_forward.3} parent=11 // pred_check
        %p134 = pneg %p70
      $region14: #{upsampling_layer_forward.3} parent=11 // pred_check_branch
        %136 = sbr.rel (%p134) target = $region16
      $region15: #{upsampling_layer_forward.3} parent=11 // pred_region
        _
      $region16: #{upsampling_layer_forward.3} parent=11 // pred_fallthru
        _
      // Predicated region
      $region17: #{upsampling_layer_forward.3} parent=11 // pred_check
        %p137 = pneg %p91
      $region18: #{upsampling_layer_forward.3} parent=11 // pred_check_branch
        %139 = sbr.rel (%p137) target = $region20
      $region19: #{upsampling_layer_forward.3} parent=11 // pred_region
        _
      $region20: #{upsampling_layer_forward.3} parent=11 // pred_fallthru
        _
    $region12: #{upsampling_layer_forward.3} parent=5 // pred_fallthru
      _
    %p140 = scmp.lt.s32.totalorder %s9, 4
    // Predicated region
    $region21: #{upsampling_layer_forward.3} parent=5 // pred_check
      %p141 = pneg %p140
    $region22: #{upsampling_layer_forward.3} parent=5 // pred_check_branch
      %143 = sbr.rel (%p141) target = $region24
    $region23: #{upsampling_layer_forward.3} parent=5 // pred_region
      // Predicated region
      $region25: #{upsampling_layer_forward.3} parent=23 // pred_check
        %p144 = pneg %p43
      $region26: #{upsampling_layer_forward.3} parent=23 // pred_check_branch
        %146 = sbr.rel (%p144) target = $region28
      $region27: #{upsampling_layer_forward.3} parent=23 // pred_region
        %p147 = scmp.lt.s32.totalorder %s16, 1
        %s148 = scalar_select %p147, %s16, 1
        %p149 = scmp.lt.s32.totalorder %s17, 1
        %s150 = scalar_select %p149, %s17, 1
        %s151 = smul.addr %s148, 2
        %s152 = sadd.s32 %s150, %s151
        %s153 = smul.addr %s152, 8
        %s154 = scalar_lea.vmem %s0, %s153
      $region28: #{upsampling_layer_forward.3} parent=23 // pred_fallthru
        _
    $region24: #{upsampling_layer_forward.3} parent=5 // pred_fallthru
      _
    %p155 = scmp.le.s32.totalorder 1, %s9
    %p156 = scmp.lt.s32.totalorder %s9, 5
    %p157 = pnand %p155, %p156
    %p158 = pneg %p157
    // Predicated region
    $region29: #{upsampling_layer_forward.3} parent=5 // pred_check
      _
    $region30: #{upsampling_layer_forward.3} parent=5 // pred_check_branch
      %160 = sbr.rel (%p157) target = $region32
    $region31: #{upsampling_layer_forward.3} parent=5 // pred_region
      %s161 = ssub.s32 %s9, 1
      %p162 = scmp.lt.s32.totalorder %s18, 1
      %s163 = scalar_select %p162, %s18, 1
      %p164 = scmp.lt.s32.totalorder %s19, 1
      %s165 = scalar_select %p164, %s19, 1
      %s166 = smul.addr %s163, 2
      %s167 = sadd.s32 %s165, %s166
      %s168 = smul.addr %s167, 8
      %s169 = scalar_lea.vmem %s0, %s168
      %p170 = pneg %p49
      %p171 = pneg %p46
      %p172 = pneg %p70
      %p173 = pneg %p67
      %p174 = pneg %p91
      %p175 = pneg %p88
      %p176 = pneg %p119
      %p177 = pneg %p116
      %s178 = smul.u32 8, %s19
      %p179 = scmp.lt.s32.totalorder %s18, 1
      %s180 = scalar_select %p179, %s18, 1
      %p181 = scmp.lt.s32.totalorder %s178, 15
      %s182 = scalar_select %p181, %s178, 15
      %s183 = smul.addr %s180, 16
      %s184 = sadd.s32 %s182, %s183
      %s185 = smul.addr %s184, 2
      %s186 = scalar_lea.vmem %s3, %s185
      %p187 = scmp.lt.s32.totalorder %s18, 1
      %s188 = scalar_select %p187, %s18, 1
      %p189 = scmp.lt.s32.totalorder %s19, 1
      %s190 = scalar_select %p189, %s19, 1
      %s191 = smul.addr %s188, 2
      %s192 = sadd.s32 %s190, %s191
      %s193 = smul.addr %s192, 8
      %s194 = scalar_lea.vmem %s0, %s193
      %s195 = smul.u32 8, %s19
      %p196 = scmp.lt.s32.totalorder %s18, 1
      %s197 = scalar_select %p196, %s18, 1
      %p198 = scmp.lt.s32.totalorder %s195, 15
      %s199 = scalar_select %p198, %s195, 15
      %s200 = smul.addr %s197, 16
      %s201 = sadd.s32 %s199, %s200
      %s202 = smul.addr %s201, 2
      %s203 = scalar_lea.vmem %s3, %s202
      %s204 = smul.u32 8, %s19
      %v205 = vld [vmem:[%s194] sm:$0xff]
      %v206 = vld [vmem:[%s2] sm:$0x1]
      %v207 = vld [vmem:[%s1] sm:$0xff]
      %v208 = vld [vmem:[%s1 + $0x8] sm:$0xff]
      %v209 = vld [vmem:[%s1 + $0x10] sm:$0xff]
      %v210 = vld [vmem:[%s1 + $0x18] sm:$0xff]
      %v211 = vld [vmem:[%s1 + $0x20] sm:$0xff]
      %v212 = vld [vmem:[%s1 + $0x28] sm:$0xff]
      %v213 = vld [vmem:[%s1 + $0x30] sm:$0xff]
      %v214 = vld [vmem:[%s1 + $0x38] sm:$0xff]
      %v215 = vld [vmem:[%s1 + $0x40] sm:$0xff]
      %v216 = vld [vmem:[%s1 + $0x48] sm:$0xff]
      %v217 = vld [vmem:[%s1 + $0x50] sm:$0xff]
      %v218 = vld [vmem:[%s1 + $0x58] sm:$0xff]
      %v219 = vld [vmem:[%s1 + $0x60] sm:$0xff]
      %v220 = vld [vmem:[%s1 + $0x68] sm:$0xff]
      %v221 = vld [vmem:[%s1 + $0x70] sm:$0xff]
      %v222 = vld [vmem:[%s1 + $0x78] sm:$0xff]
      %v224 = vlaneseq
      %v225 = vshrl.u32 %v224, 7
      %v226 = vsub.s32 0, %v225
      %v227 = vrot.slane %v206, %v226
      %229 = vmatprep.subr.mxu0 0.0
      %230 = vmatpush1.msra.mxu0 %v207
      %231 = vmatprep.subr.mxu0 0.0
      %232 = vmatpush1.msra.mxu0 %v208
      %233 = vmatprep.subr.mxu0 0.0
      %234 = vmatpush1.msra.mxu0 %v209
      %235 = vmatprep.subr.mxu0 0.0
      %236 = vmatpush1.msra.mxu0 %v210
      %237 = vmatprep.subr.mxu0 0.0
      %238 = vmatpush1.msra.mxu0 %v211
      %239 = vmatprep.subr.mxu0 0.0
      %240 = vmatpush1.msra.mxu0 %v212
      %241 = vmatprep.subr.mxu0 0.0
      %242 = vmatpush1.msra.mxu0 %v213
      %243 = vmatprep.subr.mxu0 0.0
      %244 = vmatpush1.msra.mxu0 %v214
      %245 = vmatprep.subr.mxu0 0.0
      %246 = vmatpush1.msra.mxu0 %v215
      %247 = vmatprep.subr.mxu0 0.0
      %248 = vmatpush1.msra.mxu0 %v216
      %249 = vmatprep.subr.mxu0 0.0
      %250 = vmatpush1.msra.mxu0 %v217
      %251 = vmatprep.subr.mxu0 0.0
      %252 = vmatpush1.msra.mxu0 %v218
      %253 = vmatprep.subr.mxu0 0.0
      %254 = vmatpush1.msra.mxu0 %v219
      %255 = vmatprep.subr.mxu0 0.0
      %256 = vmatpush1.msra.mxu0 %v220
      %257 = vmatprep.subr.mxu0 0.0
      %258 = vmatpush1.msra.mxu0 %v221
      %259 = vmatprep.subr.mxu0 0.0
      %260 = vmatpush1.msra.mxu0 %v222
      %261 = vmatprep.subr.mxu0 0.0
      %262 = vmatpush1.msra.mxu0 0.0
      %263 = vmatprep.subr.mxu0 0.0
      %264 = vmatpush1.msra.mxu0 0.0
      %265 = vmatprep.subr.mxu0 0.0
      %266 = vmatpush1.msra.mxu0 0.0
      %267 = vmatprep.subr.mxu0 0.0
      %268 = vmatpush1.msra.mxu0 0.0
      %269 = vmatprep.subr.mxu0 0.0
      %270 = vmatpush1.msra.mxu0 0.0
      %271 = vmatprep.subr.mxu0 0.0
      %272 = vmatpush1.msra.mxu0 0.0
      %273 = vmatprep.subr.mxu0 0.0
      %274 = vmatpush1.msra.mxu0 0.0
      %275 = vmatprep.subr.mxu0 0.0
      %276 = vmatpush1.msra.mxu0 0.0
      %277 = vmatprep.subr.mxu0 0.0
      %278 = vmatpush1.msra.mxu0 0.0
      %279 = vmatprep.subr.mxu0 0.0
      %280 = vmatpush1.msra.mxu0 0.0
      %281 = vmatprep.subr.mxu0 0.0
      %282 = vmatpush1.msra.mxu0 0.0
      %283 = vmatprep.subr.mxu0 0.0
      %284 = vmatpush1.msra.mxu0 0.0
      %285 = vmatprep.subr.mxu0 0.0
      %286 = vmatpush1.msra.mxu0 0.0
      %287 = vmatprep.subr.mxu0 0.0
      %288 = vmatpush1.msra.mxu0 0.0
      %289 = vmatprep.subr.mxu0 0.0
      %290 = vmatpush1.msra.mxu0 0.0
      %291 = vmatprep.subr.mxu0 0.0
      %292 = vmatpush1.msra.mxu0 0.0
      %293 = vmatprep.mubr.f32.mxu0 0.0
      %294 = vmatmul.mubr.f32.gmra.mrb[0].mxu0 %v205
      %v295 = vpop.f32.mrb[0].mxu0
      %v296 = vadd.f32 %v227, %v295
      %v297 = vpop.f32.mrb[0].mxu0
      %298 = vdwg.mxu0
      %v300 = vcombine.high %v296, %v296
      %v302 = vunpack.c.l.s4 1966171168
      %v303 = vunpack.c.0.s8 %v302
      %v304 = vlaneseq
      %v305 = vshrl.u32 %v304, 7
      %v306 = vsub.s32 %v303, %v305
      %v307 = vrot.slane %v296, %v306
      %v309 = vunpack.c.l.s4 1966171168
      %v310 = vunpack.c.0.s8 %v309
      %v311 = vlaneseq
      %v312 = vshrl.u32 %v311, 7
      %v313 = vsub.s32 %v310, %v312
      %v314 = vrot.slane %v300, %v313
      %v315 = vcombine.high %v307, %v307
      %v316 = vcombine.high %v314, %v314
      %v318 = vunpack.c.l.s4 1966171168
      %v319 = vunpack.c.0.s8 %v318
      %v320 = vlaneseq
      %v321 = vshrl.u32 %v320, 7
      %v322 = vsub.s32 %v319, %v321
      %v323 = vrot.slane %v307, %v322
      %v325 = vunpack.c.l.s4 1966171168
      %v326 = vunpack.c.0.s8 %v325
      %v327 = vlaneseq
      %v328 = vshrl.u32 %v327, 7
      %v329 = vsub.s32 %v326, %v328
      %v330 = vrot.slane %v314, %v329
      %v332 = vunpack.c.l.s4 1966171168
      %v333 = vunpack.c.0.s8 %v332
      %v334 = vlaneseq
      %v335 = vshrl.u32 %v334, 7
      %v336 = vsub.s32 %v333, %v335
      %v337 = vrot.slane %v315, %v336
      %v339 = vunpack.c.l.s4 1966171168
      %v340 = vunpack.c.0.s8 %v339
      %v341 = vlaneseq
      %v342 = vshrl.u32 %v341, 7
      %v343 = vsub.s32 %v340, %v342
      %v344 = vrot.slane %v316, %v343
      %v345 = vcombine.high %v323, %v323
      %v346 = vcombine.high %v330, %v330
      %v347 = vcombine.high %v337, %v337
      %v348 = vcombine.high %v344, %v344
      %357 = vst [vmem:[%s203] sm:$0x1] %v323
      %358 = vst [vmem:[%s203 + $0x2] sm:$0x1] %v337
      %359 = vst [vmem:[%s203 + $0x4] sm:$0x1] %v345
      %360 = vst [vmem:[%s203 + $0x6] sm:$0x1] %v347
      %361 = vst [vmem:[%s203 + $0x8] sm:$0x1] %v330
      %362 = vst [vmem:[%s203 + $0xa] sm:$0x1] %v344
      %363 = vst [vmem:[%s203 + $0xc] sm:$0x1] %v346
      %364 = vst [vmem:[%s203 + $0xe] sm:$0x1] %v348
      %s365 = scalar_lea.vmem %s1, 128
      %v366 = vld [vmem:[%s365] sm:$0xff]
      %v367 = vld [vmem:[%s365 + $0x8] sm:$0xff]
      %v368 = vld [vmem:[%s365 + $0x10] sm:$0xff]
      %v369 = vld [vmem:[%s365 + $0x18] sm:$0xff]
      %v370 = vld [vmem:[%s365 + $0x20] sm:$0xff]
      %v371 = vld [vmem:[%s365 + $0x28] sm:$0xff]
      %v372 = vld [vmem:[%s365 + $0x30] sm:$0xff]
      %v373 = vld [vmem:[%s365 + $0x38] sm:$0xff]
      %v374 = vld [vmem:[%s365 + $0x40] sm:$0xff]
      %v375 = vld [vmem:[%s365 + $0x48] sm:$0xff]
      %v376 = vld [vmem:[%s365 + $0x50] sm:$0xff]
      %v377 = vld [vmem:[%s365 + $0x58] sm:$0xff]
      %v378 = vld [vmem:[%s365 + $0x60] sm:$0xff]
      %v379 = vld [vmem:[%s365 + $0x68] sm:$0xff]
      %v380 = vld [vmem:[%s365 + $0x70] sm:$0xff]
      %v381 = vld [vmem:[%s365 + $0x78] sm:$0xff]
      %382 = vmatprep.subr.mxu0 0.0
      %383 = vmatpush1.msra.mxu0 %v366
      %384 = vmatprep.subr.mxu0 0.0
      %385 = vmatpush1.msra.mxu0 %v367
      %386 = vmatprep.subr.mxu0 0.0
      %387 = vmatpush1.msra.mxu0 %v368
      %388 = vmatprep.subr.mxu0 0.0
      %389 = vmatpush1.msra.mxu0 %v369
      %390 = vmatprep.subr.mxu0 0.0
      %391 = vmatpush1.msra.mxu0 %v370
      %392 = vmatprep.subr.mxu0 0.0
      %393 = vmatpush1.msra.mxu0 %v371
      %394 = vmatprep.subr.mxu0 0.0
      %395 = vmatpush1.msra.mxu0 %v372
      %396 = vmatprep.subr.mxu0 0.0
      %397 = vmatpush1.msra.mxu0 %v373
      %398 = vmatprep.subr.mxu0 0.0
      %399 = vmatpush1.msra.mxu0 %v374
      %400 = vmatprep.subr.mxu0 0.0
      %401 = vmatpush1.msra.mxu0 %v375
      %402 = vmatprep.subr.mxu0 0.0
      %403 = vmatpush1.msra.mxu0 %v376
      %404 = vmatprep.subr.mxu0 0.0
      %405 = vmatpush1.msra.mxu0 %v377
      %406 = vmatprep.subr.mxu0 0.0
      %407 = vmatpush1.msra.mxu0 %v378
      %408 = vmatprep.subr.mxu0 0.0
      %409 = vmatpush1.msra.mxu0 %v379
      %410 = vmatprep.subr.mxu0 0.0
      %411 = vmatpush1.msra.mxu0 %v380
      %412 = vmatprep.subr.mxu0 0.0
      %413 = vmatpush1.msra.mxu0 %v381
      %414 = vmatprep.subr.mxu0 0.0
      %415 = vmatpush1.msra.mxu0 0.0
      %416 = vmatprep.subr.mxu0 0.0
      %417 = vmatpush1.msra.mxu0 0.0
      %418 = vmatprep.subr.mxu0 0.0
      %419 = vmatpush1.msra.mxu0 0.0
      %420 = vmatprep.subr.mxu0 0.0
      %421 = vmatpush1.msra.mxu0 0.0
      %422 = vmatprep.subr.mxu0 0.0
      %423 = vmatpush1.msra.mxu0 0.0
      %424 = vmatprep.subr.mxu0 0.0
      %425 = vmatpush1.msra.mxu0 0.0
      %426 = vmatprep.subr.mxu0 0.0
      %427 = vmatpush1.msra.mxu0 0.0
      %428 = vmatprep.subr.mxu0 0.0
      %429 = vmatpush1.msra.mxu0 0.0
      %430 = vmatprep.subr.mxu0 0.0
      %431 = vmatpush1.msra.mxu0 0.0
      %432 = vmatprep.subr.mxu0 0.0
      %433 = vmatpush1.msra.mxu0 0.0
      %434 = vmatprep.subr.mxu0 0.0
      %435 = vmatpush1.msra.mxu0 0.0
      %436 = vmatprep.subr.mxu0 0.0
      %437 = vmatpush1.msra.mxu0 0.0
      %438 = vmatprep.subr.mxu0 0.0
      %439 = vmatpush1.msra.mxu0 0.0
      %440 = vmatprep.subr.mxu0 0.0
      %441 = vmatpush1.msra.mxu0 0.0
      %442 = vmatprep.subr.mxu0 0.0
      %443 = vmatpush1.msra.mxu0 0.0
      %444 = vmatprep.subr.mxu0 0.0
      %445 = vmatpush1.msra.mxu0 0.0
      %446 = vmatprep.mubr.f32.mxu0 0.0
      %447 = vmatmul.mubr.f32.gmra.mrb[0].mxu0 %v205
      %v448 = vpop.f32.mrb[0].mxu0
      %v449 = vadd.f32 %v227, %v448
      %v450 = vpop.f32.mrb[0].mxu0
      %451 = vdwg.mxu0
      %v453 = vcombine.high %v449, %v449
      %v455 = vunpack.c.l.s4 1966171168
      %v456 = vunpack.c.0.s8 %v455
      %v457 = vlaneseq
      %v458 = vshrl.u32 %v457, 7
      %v459 = vsub.s32 %v456, %v458
      %v460 = vrot.slane %v449, %v459
      %v462 = vunpack.c.l.s4 1966171168
      %v463 = vunpack.c.0.s8 %v462
      %v464 = vlaneseq
      %v465 = vshrl.u32 %v464, 7
      %v466 = vsub.s32 %v463, %v465
      %v467 = vrot.slane %v453, %v466
      %v468 = vcombine.high %v460, %v460
      %v469 = vcombine.high %v467, %v467
      %v471 = vunpack.c.l.s4 1966171168
      %v472 = vunpack.c.0.s8 %v471
      %v473 = vlaneseq
      %v474 = vshrl.u32 %v473, 7
      %v475 = vsub.s32 %v472, %v474
      %v476 = vrot.slane %v460, %v475
      %v478 = vunpack.c.l.s4 1966171168
      %v479 = vunpack.c.0.s8 %v478
      %v480 = vlaneseq
      %v481 = vshrl.u32 %v480, 7
      %v482 = vsub.s32 %v479, %v481
      %v483 = vrot.slane %v467, %v482
      %v485 = vunpack.c.l.s4 1966171168
      %v486 = vunpack.c.0.s8 %v485
      %v487 = vlaneseq
      %v488 = vshrl.u32 %v487, 7
      %v489 = vsub.s32 %v486, %v488
      %v490 = vrot.slane %v468, %v489
      %v492 = vunpack.c.l.s4 1966171168
      %v493 = vunpack.c.0.s8 %v492
      %v494 = vlaneseq
      %v495 = vshrl.u32 %v494, 7
      %v496 = vsub.s32 %v493, %v495
      %v497 = vrot.slane %v469, %v496
      %v498 = vcombine.high %v476, %v476
      %v499 = vcombine.high %v483, %v483
      %v500 = vcombine.high %v490, %v490
      %v501 = vcombine.high %v497, %v497
      %510 = vst [vmem:[%s203 + $0x1] sm:$0x1] %v476
      %511 = vst [vmem:[%s203 + $0x3] sm:$0x1] %v490
      %512 = vst [vmem:[%s203 + $0x5] sm:$0x1] %v498
      %513 = vst [vmem:[%s203 + $0x7] sm:$0x1] %v500
      %514 = vst [vmem:[%s203 + $0x9] sm:$0x1] %v483
      %515 = vst [vmem:[%s203 + $0xb] sm:$0x1] %v497
      %516 = vst [vmem:[%s203 + $0xd] sm:$0x1] %v499
      %517 = vst [vmem:[%s203 + $0xf] sm:$0x1] %v501
      %s518 = smul.u32 8, %s19
      %p519 = scmp.lt.s32.totalorder %s18, 1
      %s520 = scalar_select %p519, %s18, 1
      %p521 = scmp.lt.s32.totalorder %s518, 15
      %s522 = scalar_select %p521, %s518, 15
      %s523 = smul.addr %s520, 16
      %s524 = sadd.s32 %s522, %s523
      %s525 = smul.addr %s524, 2
      %s526 = scalar_lea.vmem %s3, %s525
      // Predicated region
      $region33: #{upsampling_layer_forward.3} parent=31 // pred_check
        %p527 = pneg %p116
      $region34: #{upsampling_layer_forward.3} parent=31 // pred_check_branch
        %529 = sbr.rel (%p527) target = $region36
      $region35: #{upsampling_layer_forward.3} parent=31 // pred_region
        %s530 = smul.u32 8, %s19
      $region36: #{upsampling_layer_forward.3} parent=31 // pred_fallthru
        _
    $region32: #{upsampling_layer_forward.3} parent=5 // pred_fallthru
      _
    %p531 = scmp.le.s32.totalorder 2, %s9
    // Predicated region
    $region37: #{upsampling_layer_forward.3} parent=5 // pred_check
      %p532 = pneg %p531
    $region38: #{upsampling_layer_forward.3} parent=5 // pred_check_branch
      %534 = sbr.rel (%p532) target = $region40
    $region39: #{upsampling_layer_forward.3} parent=5 // pred_region
      %s535 = ssub.s32 %s9, 2
      // Predicated region
      $region41: #{upsampling_layer_forward.3} parent=39 // pred_check
        %p536 = pneg %p122
      $region42: #{upsampling_layer_forward.3} parent=39 // pred_check_branch
        %538 = sbr.rel (%p536) target = $region44
      $region43: #{upsampling_layer_forward.3} parent=39 // pred_region
        %s539 = smul.u32 8, %s21
        %p540 = scmp.lt.s32.totalorder %s20, 1
        %s541 = scalar_select %p540, %s20, 1
        %p542 = scmp.lt.s32.totalorder %s539, 15
        %s543 = scalar_select %p542, %s539, 15
        %s544 = smul.addr %s541, 16
        %s545 = sadd.s32 %s543, %s544
        %s546 = smul.addr %s545, 2
        %s547 = scalar_lea.vmem %s3, %s546
      $region44: #{upsampling_layer_forward.3} parent=39 // pred_fallthru
        _
    $region40: #{upsampling_layer_forward.3} parent=5 // pred_fallthru
      _
  $region6: #{upsampling_layer_forward.3} parent=0 // loop_footer
    %s13 = sadd.s32 1, %s9
  $region7: #{upsampling_layer_forward.3} parent=0 // loop_footer_branch
    %8 = sbr.rel target = $region3
  $region8: #{upsampling_layer_forward.3} parent=0 // loop_exit
    _

// kernel: upsampling_layer_forward.4
$region0: #{upsampling_layer_forward.4}
  #allocation0 [shape = 'u32[]', space=smem, size = 0x4, offset = 0x4, fixed_abs, tag = 'smem constant byte address 0x4 - core index']
  #allocation1 [shape = 'u32[144,128]{1,0:T(1,128)}', space=vmem, size = 0x12000, scoped, tag = 'internal scratch']
  %s0 = inlined_call_operand.vmem [shape: f32[2,32,128], index: 0, kind: input, shape index: {}, may-alias: {0,1,2}]
  %s1 = inlined_call_operand.vmem [shape: f32[2,32,128], index: 1, kind: input, shape index: {}, may-alias: {0,1,2}]
  %s2 = inlined_call_operand.vmem [shape: f32[2,32,128], index: 2, kind: input, shape index: {}, may-alias: {0,1,2}]
  %s3 = inlined_call_operand.vmem [shape: f32[2,32,128], index: 3, kind: input, shape index: {}, may-alias: {3,4,5}]
  %s4 = inlined_call_operand.vmem [shape: f32[2,32,128], index: 4, kind: input, shape index: {}, may-alias: {3,4,5}]
  %s5 = inlined_call_operand.vmem [shape: f32[2,32,128], index: 5, kind: input, shape index: {}, may-alias: {3,4,5}]
  %s6 = inlined_call_operand.vmem [shape: f32[3,128,128], index: 6, kind: input, shape index: {}]
  %s7 = inlined_call_operand.vmem [shape: f32[3,128,128], index: 7, kind: input, shape index: {}]
  %s8 = inlined_call_operand.vmem [shape: f32[1,128], index: 8, kind: input, shape index: {}]
  %s9 = inlined_call_operand.vmem [shape: f32[1,128], index: 9, kind: input, shape index: {}]
  %s10 = inlined_call_operand.vmem [shape: f32[2,32,128], index: 10, kind: output, shape index: {}]
  %s11 = sld [smem:[#allocation0]]
  $region73: #{upsampling_layer_forward.4} parent=0
    _
  %s13 = ssub.s32 1, %s11
  %s14 = scalar_select 0, %s13, %s11
  loop: start=0, step=1, limit=6
  $region2: #{upsampling_layer_forward.4} parent=0 // loop_pre_header
    _
  $region3: #{upsampling_layer_forward.4} parent=0 // loop_header
    %s16 = sphi 0, %s20
    %p17 = scmp.ge.s32.totalorder %s16, 6
    %s23 = sphi 0, %s35
    %s24 = sphi 0, %s31
    %s25 = sphi 0, %s23
    %s26 = sphi 0, %s24
    %s27 = sphi 0, %s25
    %s28 = sphi 0, %s26
    %s40 = sphi 0, %s42
    %s43 = sphi 0, %s40
    %s44 = sphi 0, %s43
    %s60 = sphi 0, %s44
    %s76 = sphi 0, %s78
    %s79 = sphi 0, %s76
    %s80 = sphi 0, %s79
    %s96 = sphi 0, %s80
    %s112 = sphi 0, %s114
    %s115 = sphi 0, %s112
    %s116 = sphi 0, %s115
    %s132 = sphi 0, %s116
    %s140 = sphi 0, %s142
    %s143 = sphi 0, %s140
    %s144 = sphi 0, %s143
    %s160 = sphi 0, %s144
    %s176 = sphi 0, %s178
    %s179 = sphi 0, %s176
    %s180 = sphi 0, %s179
    %s196 = sphi 0, %s180
    %s212 = sphi 0, %s214
    %s215 = sphi 0, %s212
    %s216 = sphi 0, %s215
    %s232 = sphi 0, %s216
    %s236 = sphi 0, %s236
    %s238 = sphi 0, %s236
    %s239 = sphi 0, %s238
    %s253 = sphi 0, %s239
    %s257 = sphi 0, %s257
    %s259 = sphi 0, %s257
    %s260 = sphi 0, %s259
    %s274 = sphi 0, %s260
    %s278 = sphi 0, %s278
    %s280 = sphi 0, %s278
    %s281 = sphi 0, %s280
    %s295 = sphi 0, %s281
    %s299 = sphi 0, %s299
    %s301 = sphi 0, %s299
    %s302 = sphi 0, %s301
    %s316 = sphi 0, %s302
    %s324 = sphi 0, %s326
    %s327 = sphi 0, %s324
    %s328 = sphi 0, %s327
    %s344 = sphi 0, %s328
  $region4: #{upsampling_layer_forward.4} parent=0 // loop_header_branch
    %19 = sbr.rel (%p17) target = $region8
  $region5: #{upsampling_layer_forward.4} parent=0 // loop_body
    %s21 = ssub.s32 %s16, 1
    %s22 = ssub.s32 %s16, 2
    %s29 = sadd.s32 1, %s24
    %p30 = scmp.ge.s32.totalorder %s29, 2
    %s31 = scalar_select %p30, 0, %s29
    %s32 = sadd.s32 1, %s23
    %s33 = scalar_select %p30, %s32, %s23
    %p34 = scmp.ge.s32.totalorder %s33, 2
    %s35 = scalar_select %p34, 0, %s33
    %s36 = ssub.s32 %s23, %s35
    %s37 = ssub.s32 %s24, %s31
    %s38 = sor.u32 %s36, %s37
    %p39 = scmp.eq.s32.totalorder %s38, 0
    %s41 = sadd.s32 %s40, 1
    %s42 = scalar_select %p39, %s40, %s41
    %p45 = pneg %p39
    %p46 = scmp.eq.s32.totalorder %s16, 3
    %p47 = por %p45, %p46
    %p48 = scmp.ne.s32.totalorder %s40, %s43
    %p49 = scmp.eq.s32.totalorder %s16, 0
    %p50 = por %p48, %p49
    %p51 = scmp.ne.s32.totalorder %s40, %s43
    %p52 = scmp.eq.s32.totalorder %s21, 3
    %p53 = por %p51, %p52
    %p54 = scmp.ne.s32.totalorder %s43, %s44
    %p55 = scmp.eq.s32.totalorder %s21, 0
    %p56 = por %p54, %p55
    %p57 = scmp.ne.s32.totalorder %s43, %s44
    %p58 = scmp.eq.s32.totalorder %s22, 3
    %p59 = por %p57, %p58
    %p61 = scmp.ne.s32.totalorder %s44, %s60
    %p62 = scmp.eq.s32.totalorder %s22, 0
    %p63 = por %p61, %p62
    %s64 = smul.u32 %s24, 2
    %s65 = ssub.s32 %s64, 1
    %p66 = scmp.gt.s32.totalorder %s65, 0
    %s67 = scalar_select %p66, %s65, 0
    %s68 = smul.u32 %s31, 2
    %s69 = ssub.s32 %s68, 1
    %p70 = scmp.gt.s32.totalorder %s69, 0
    %s71 = scalar_select %p70, %s69, 0
    %s72 = ssub.s32 %s23, %s35
    %s73 = ssub.s32 %s67, %s71
    %s74 = sor.u32 %s72, %s73
    %p75 = scmp.eq.s32.totalorder %s74, 0
    %s77 = sadd.s32 %s76, 1
    %s78 = scalar_select %p75, %s76, %s77
    %p81 = pneg %p75
    %p82 = scmp.eq.s32.totalorder %s16, 3
    %p83 = por %p81, %p82
    %p84 = scmp.ne.s32.totalorder %s76, %s79
    %p85 = scmp.eq.s32.totalorder %s16, 0
    %p86 = por %p84, %p85
    %p87 = scmp.ne.s32.totalorder %s76, %s79
    %p88 = scmp.eq.s32.totalorder %s21, 3
    %p89 = por %p87, %p88
    %p90 = scmp.ne.s32.totalorder %s79, %s80
    %p91 = scmp.eq.s32.totalorder %s21, 0
    %p92 = por %p90, %p91
    %p93 = scmp.ne.s32.totalorder %s79, %s80
    %p94 = scmp.eq.s32.totalorder %s22, 3
    %p95 = por %p93, %p94
    %p97 = scmp.ne.s32.totalorder %s80, %s96
    %p98 = scmp.eq.s32.totalorder %s22, 0
    %p99 = por %p97, %p98
    %s100 = smul.u32 %s24, 2
    %s101 = sadd.s32 %s100, 2
    %p102 = scmp.lt.s32.totalorder %s101, 3
    %s103 = scalar_select %p102, %s101, 3
    %s104 = smul.u32 %s31, 2
    %s105 = sadd.s32 %s104, 2
    %p106 = scmp.lt.s32.totalorder %s105, 3
    %s107 = scalar_select %p106, %s105, 3
    %s108 = ssub.s32 %s23, %s35
    %s109 = ssub.s32 %s103, %s107
    %s110 = sor.u32 %s108, %s109
    %p111 = scmp.eq.s32.totalorder %s110, 0
    %s113 = sadd.s32 %s112, 1
    %s114 = scalar_select %p111, %s112, %s113
    %p117 = pneg %p111
    %p118 = scmp.eq.s32.totalorder %s16, 3
    %p119 = por %p117, %p118
    %p120 = scmp.ne.s32.totalorder %s112, %s115
    %p121 = scmp.eq.s32.totalorder %s16, 0
    %p122 = por %p120, %p121
    %p123 = scmp.ne.s32.totalorder %s112, %s115
    %p124 = scmp.eq.s32.totalorder %s21, 3
    %p125 = por %p123, %p124
    %p126 = scmp.ne.s32.totalorder %s115, %s116
    %p127 = scmp.eq.s32.totalorder %s21, 0
    %p128 = por %p126, %p127
    %p129 = scmp.ne.s32.totalorder %s115, %s116
    %p130 = scmp.eq.s32.totalorder %s22, 3
    %p131 = por %p129, %p130
    %p133 = scmp.ne.s32.totalorder %s116, %s132
    %p134 = scmp.eq.s32.totalorder %s22, 0
    %p135 = por %p133, %p134
    %s136 = ssub.s32 %s23, %s35
    %s137 = ssub.s32 %s24, %s31
    %s138 = sor.u32 %s136, %s137
    %p139 = scmp.eq.s32.totalorder %s138, 0
    %s141 = sadd.s32 %s140, 1
    %s142 = scalar_select %p139, %s140, %s141
    %p145 = pneg %p139
    %p146 = scmp.eq.s32.totalorder %s16, 3
    %p147 = por %p145, %p146
    %p148 = scmp.ne.s32.totalorder %s140, %s143
    %p149 = scmp.eq.s32.totalorder %s16, 0
    %p150 = por %p148, %p149
    %p151 = scmp.ne.s32.totalorder %s140, %s143
    %p152 = scmp.eq.s32.totalorder %s21, 3
    %p153 = por %p151, %p152
    %p154 = scmp.ne.s32.totalorder %s143, %s144
    %p155 = scmp.eq.s32.totalorder %s21, 0
    %p156 = por %p154, %p155
    %p157 = scmp.ne.s32.totalorder %s143, %s144
    %p158 = scmp.eq.s32.totalorder %s22, 3
    %p159 = por %p157, %p158
    %p161 = scmp.ne.s32.totalorder %s144, %s160
    %p162 = scmp.eq.s32.totalorder %s22, 0
    %p163 = por %p161, %p162
    %s164 = smul.u32 %s24, 2
    %s165 = ssub.s32 %s164, 1
    %p166 = scmp.gt.s32.totalorder %s165, 0
    %s167 = scalar_select %p166, %s165, 0
    %s168 = smul.u32 %s31, 2
    %s169 = ssub.s32 %s168, 1
    %p170 = scmp.gt.s32.totalorder %s169, 0
    %s171 = scalar_select %p170, %s169, 0
    %s172 = ssub.s32 %s23, %s35
    %s173 = ssub.s32 %s167, %s171
    %s174 = sor.u32 %s172, %s173
    %p175 = scmp.eq.s32.totalorder %s174, 0
    %s177 = sadd.s32 %s176, 1
    %s178 = scalar_select %p175, %s176, %s177
    %p181 = pneg %p175
    %p182 = scmp.eq.s32.totalorder %s16, 3
    %p183 = por %p181, %p182
    %p184 = scmp.ne.s32.totalorder %s176, %s179
    %p185 = scmp.eq.s32.totalorder %s16, 0
    %p186 = por %p184, %p185
    %p187 = scmp.ne.s32.totalorder %s176, %s179
    %p188 = scmp.eq.s32.totalorder %s21, 3
    %p189 = por %p187, %p188
    %p190 = scmp.ne.s32.totalorder %s179, %s180
    %p191 = scmp.eq.s32.totalorder %s21, 0
    %p192 = por %p190, %p191
    %p193 = scmp.ne.s32.totalorder %s179, %s180
    %p194 = scmp.eq.s32.totalorder %s22, 3
    %p195 = por %p193, %p194
    %p197 = scmp.ne.s32.totalorder %s180, %s196
    %p198 = scmp.eq.s32.totalorder %s22, 0
    %p199 = por %p197, %p198
    %s200 = smul.u32 %s24, 2
    %s201 = sadd.s32 %s200, 2
    %p202 = scmp.lt.s32.totalorder %s201, 3
    %s203 = scalar_select %p202, %s201, 3
    %s204 = smul.u32 %s31, 2
    %s205 = sadd.s32 %s204, 2
    %p206 = scmp.lt.s32.totalorder %s205, 3
    %s207 = scalar_select %p206, %s205, 3
    %s208 = ssub.s32 %s23, %s35
    %s209 = ssub.s32 %s203, %s207
    %s210 = sor.u32 %s208, %s209
    %p211 = scmp.eq.s32.totalorder %s210, 0
    %s213 = sadd.s32 %s212, 1
    %s214 = scalar_select %p211, %s212, %s213
    %p217 = pneg %p211
    %p218 = scmp.eq.s32.totalorder %s16, 3
    %p219 = por %p217, %p218
    %p220 = scmp.ne.s32.totalorder %s212, %s215
    %p221 = scmp.eq.s32.totalorder %s16, 0
    %p222 = por %p220, %p221
    %p223 = scmp.ne.s32.totalorder %s212, %s215
    %p224 = scmp.eq.s32.totalorder %s21, 3
    %p225 = por %p223, %p224
    %p226 = scmp.ne.s32.totalorder %s215, %s216
    %p227 = scmp.eq.s32.totalorder %s21, 0
    %p228 = por %p226, %p227
    %p229 = scmp.ne.s32.totalorder %s215, %s216
    %p230 = scmp.eq.s32.totalorder %s22, 3
    %p231 = por %p229, %p230
    %p233 = scmp.ne.s32.totalorder %s216, %s232
    %p234 = scmp.eq.s32.totalorder %s22, 0
    %p235 = por %p233, %p234
    %s237 = sadd.s32 %s236, 1
    %p240 = scmp.eq.s32.totalorder %s16, 3
    %p241 = scmp.ne.s32.totalorder %s236, %s238
    %p242 = scmp.eq.s32.totalorder %s16, 0
    %p243 = por %p241, %p242
    %p244 = scmp.ne.s32.totalorder %s236, %s238
    %p245 = scmp.eq.s32.totalorder %s21, 3
    %p246 = por %p244, %p245
    %p247 = scmp.ne.s32.totalorder %s238, %s239
    %p248 = scmp.eq.s32.totalorder %s21, 0
    %p249 = por %p247, %p248
    %p250 = scmp.ne.s32.totalorder %s238, %s239
    %p251 = scmp.eq.s32.totalorder %s22, 3
    %p252 = por %p250, %p251
    %p254 = scmp.ne.s32.totalorder %s239, %s253
    %p255 = scmp.eq.s32.totalorder %s22, 0
    %p256 = por %p254, %p255
    %s258 = sadd.s32 %s257, 1
    %p261 = scmp.eq.s32.totalorder %s16, 3
    %p262 = scmp.ne.s32.totalorder %s257, %s259
    %p263 = scmp.eq.s32.totalorder %s16, 0
    %p264 = por %p262, %p263
    %p265 = scmp.ne.s32.totalorder %s257, %s259
    %p266 = scmp.eq.s32.totalorder %s21, 3
    %p267 = por %p265, %p266
    %p268 = scmp.ne.s32.totalorder %s259, %s260
    %p269 = scmp.eq.s32.totalorder %s21, 0
    %p270 = por %p268, %p269
    %p271 = scmp.ne.s32.totalorder %s259, %s260
    %p272 = scmp.eq.s32.totalorder %s22, 3
    %p273 = por %p271, %p272
    %p275 = scmp.ne.s32.totalorder %s260, %s274
    %p276 = scmp.eq.s32.totalorder %s22, 0
    %p277 = por %p275, %p276
    %s279 = sadd.s32 %s278, 1
    %p282 = scmp.eq.s32.totalorder %s16, 3
    %p283 = scmp.ne.s32.totalorder %s278, %s280
    %p284 = scmp.eq.s32.totalorder %s16, 0
    %p285 = por %p283, %p284
    %p286 = scmp.ne.s32.totalorder %s278, %s280
    %p287 = scmp.eq.s32.totalorder %s21, 3
    %p288 = por %p286, %p287
    %p289 = scmp.ne.s32.totalorder %s280, %s281
    %p290 = scmp.eq.s32.totalorder %s21, 0
    %p291 = por %p289, %p290
    %p292 = scmp.ne.s32.totalorder %s280, %s281
    %p293 = scmp.eq.s32.totalorder %s22, 3
    %p294 = por %p292, %p293
    %p296 = scmp.ne.s32.totalorder %s281, %s295
    %p297 = scmp.eq.s32.totalorder %s22, 0
    %p298 = por %p296, %p297
    %s300 = sadd.s32 %s299, 1
    %p303 = scmp.eq.s32.totalorder %s16, 3
    %p304 = scmp.ne.s32.totalorder %s299, %s301
    %p305 = scmp.eq.s32.totalorder %s16, 0
    %p306 = por %p304, %p305
    %p307 = scmp.ne.s32.totalorder %s299, %s301
    %p308 = scmp.eq.s32.totalorder %s21, 3
    %p309 = por %p307, %p308
    %p310 = scmp.ne.s32.totalorder %s301, %s302
    %p311 = scmp.eq.s32.totalorder %s21, 0
    %p312 = por %p310, %p311
    %p313 = scmp.ne.s32.totalorder %s301, %s302
    %p314 = scmp.eq.s32.totalorder %s22, 3
    %p315 = por %p313, %p314
    %p317 = scmp.ne.s32.totalorder %s302, %s316
    %p318 = scmp.eq.s32.totalorder %s22, 0
    %p319 = por %p317, %p318
    %s320 = ssub.s32 %s23, %s35
    %s321 = ssub.s32 %s24, %s31
    %s322 = sor.u32 %s320, %s321
    %p323 = scmp.eq.s32.totalorder %s322, 0
    %s325 = sadd.s32 %s324, 1
    %s326 = scalar_select %p323, %s324, %s325
    %p329 = pneg %p323
    %p330 = scmp.eq.s32.totalorder %s16, 3
    %p331 = por %p329, %p330
    %p332 = scmp.ne.s32.totalorder %s324, %s327
    %p333 = scmp.eq.s32.totalorder %s16, 0
    %p334 = por %p332, %p333
    %p335 = scmp.ne.s32.totalorder %s324, %s327
    %p336 = scmp.eq.s32.totalorder %s21, 3
    %p337 = por %p335, %p336
    %p338 = scmp.ne.s32.totalorder %s327, %s328
    %p339 = scmp.eq.s32.totalorder %s21, 0
    %p340 = por %p338, %p339
    %p341 = scmp.ne.s32.totalorder %s327, %s328
    %p342 = scmp.eq.s32.totalorder %s22, 3
    %p343 = por %p341, %p342
    %p345 = scmp.ne.s32.totalorder %s328, %s344
    %p346 = scmp.eq.s32.totalorder %s22, 0
    %p347 = por %p345, %p346
    %p348 = scmp.le.s32.totalorder 1, %s16
    %p349 = scmp.lt.s32.totalorder %s16, 5
    %p350 = pnand %p348, %p349
    %p351 = pneg %p350
    // Predicated region
    $region9: #{upsampling_layer_forward.4} parent=5 // pred_check
      _
    $region10: #{upsampling_layer_forward.4} parent=5 // pred_check_branch
      %353 = sbr.rel (%p350) target = $region12
    $region11: #{upsampling_layer_forward.4} parent=5 // pred_region
      %s354 = ssub.s32 %s16, 1
      // Predicated region
      $region13: #{upsampling_layer_forward.4} parent=11 // pred_check
        %p355 = pneg %p249
      $region14: #{upsampling_layer_forward.4} parent=11 // pred_check_branch
        %357 = sbr.rel (%p355) target = $region16
      $region15: #{upsampling_layer_forward.4} parent=11 // pred_region
        _
      $region16: #{upsampling_layer_forward.4} parent=11 // pred_fallthru
        _
      // Predicated region
      $region17: #{upsampling_layer_forward.4} parent=11 // pred_check
        %p358 = pneg %p270
      $region18: #{upsampling_layer_forward.4} parent=11 // pred_check_branch
        %360 = sbr.rel (%p358) target = $region20
      $region19: #{upsampling_layer_forward.4} parent=11 // pred_region
        _
      $region20: #{upsampling_layer_forward.4} parent=11 // pred_fallthru
        _
      // Predicated region
      $region21: #{upsampling_layer_forward.4} parent=11 // pred_check
        %p361 = pneg %p291
      $region22: #{upsampling_layer_forward.4} parent=11 // pred_check_branch
        %363 = sbr.rel (%p361) target = $region24
      $region23: #{upsampling_layer_forward.4} parent=11 // pred_region
        _
      $region24: #{upsampling_layer_forward.4} parent=11 // pred_fallthru
        _
      // Predicated region
      $region25: #{upsampling_layer_forward.4} parent=11 // pred_check
        %p364 = pneg %p312
      $region26: #{upsampling_layer_forward.4} parent=11 // pred_check_branch
        %366 = sbr.rel (%p364) target = $region28
      $region27: #{upsampling_layer_forward.4} parent=11 // pred_region
        _
      $region28: #{upsampling_layer_forward.4} parent=11 // pred_fallthru
        _
    $region12: #{upsampling_layer_forward.4} parent=5 // pred_fallthru
      _
    %p367 = scmp.lt.s32.totalorder %s16, 4
    // Predicated region
    $region29: #{upsampling_layer_forward.4} parent=5 // pred_check
      %p368 = pneg %p367
    $region30: #{upsampling_layer_forward.4} parent=5 // pred_check_branch
      %370 = sbr.rel (%p368) target = $region32
    $region31: #{upsampling_layer_forward.4} parent=5 // pred_region
      // Predicated region
      $region33: #{upsampling_layer_forward.4} parent=31 // pred_check
        %p371 = pneg %p50
      $region34: #{upsampling_layer_forward.4} parent=31 // pred_check_branch
        %373 = sbr.rel (%p371) target = $region36
      $region35: #{upsampling_layer_forward.4} parent=31 // pred_region
        %s374 = smul.u32 2, %s24
        %p375 = scmp.lt.s32.totalorder %s23, 1
        %s376 = scalar_select %p375, %s23, 1
        %p377 = scmp.lt.s32.totalorder %s374, 3
        %s378 = scalar_select %p377, %s374, 3
        %s379 = smul.addr %s376, 4
        %s380 = sadd.s32 %s378, %s379
        %s381 = smul.addr %s380, 8
        %s382 = scalar_lea.vmem %s0, %s381
        %s383 = smul.u32 2, %s24
      $region36: #{upsampling_layer_forward.4} parent=31 // pred_fallthru
        _
      // Predicated region
      $region37: #{upsampling_layer_forward.4} parent=31 // pred_check
        %p384 = pneg %p86
      $region38: #{upsampling_layer_forward.4} parent=31 // pred_check_branch
        %386 = sbr.rel (%p384) target = $region40
      $region39: #{upsampling_layer_forward.4} parent=31 // pred_region
        %s387 = smul.u32 %s24, 2
        %s388 = ssub.s32 %s387, 1
        %p389 = scmp.gt.s32.totalorder %s388, 0
        %s390 = scalar_select %p389, %s388, 0
        %p391 = scmp.lt.s32.totalorder %s23, 1
        %s392 = scalar_select %p391, %s23, 1
        %p393 = scmp.lt.s32.totalorder %s390, 3
        %s394 = scalar_select %p393, %s390, 3
        %s395 = smul.addr %s392, 4
        %s396 = sadd.s32 %s394, %s395
        %s397 = smul.addr %s396, 8
        %s398 = scalar_lea.vmem %s1, %s397
        %s399 = smul.u32 %s24, 2
        %s400 = ssub.s32 %s399, 1
        %p401 = scmp.gt.s32.totalorder %s400, 0
        %s402 = scalar_select %p401, %s400, 0
      $region40: #{upsampling_layer_forward.4} parent=31 // pred_fallthru
        _
      // Predicated region
      $region41: #{upsampling_layer_forward.4} parent=31 // pred_check
        %p403 = pneg %p122
      $region42: #{upsampling_layer_forward.4} parent=31 // pred_check_branch
        %405 = sbr.rel (%p403) target = $region44
      $region43: #{upsampling_layer_forward.4} parent=31 // pred_region
        %s406 = smul.u32 %s24, 2
        %s407 = sadd.s32 %s406, 2
        %p408 = scmp.lt.s32.totalorder %s407, 3
        %s409 = scalar_select %p408, %s407, 3
        %p410 = scmp.lt.s32.totalorder %s23, 1
        %s411 = scalar_select %p410, %s23, 1
        %p412 = scmp.lt.s32.totalorder %s409, 3
        %s413 = scalar_select %p412, %s409, 3
        %s414 = smul.addr %s411, 4
        %s415 = sadd.s32 %s413, %s414
        %s416 = smul.addr %s415, 8
        %s417 = scalar_lea.vmem %s2, %s416
        %s418 = smul.u32 %s24, 2
        %s419 = sadd.s32 %s418, 2
        %p420 = scmp.lt.s32.totalorder %s419, 3
        %s421 = scalar_select %p420, %s419, 3
      $region44: #{upsampling_layer_forward.4} parent=31 // pred_fallthru
        _
      // Predicated region
      $region45: #{upsampling_layer_forward.4} parent=31 // pred_check
        %p422 = pneg %p150
      $region46: #{upsampling_layer_forward.4} parent=31 // pred_check_branch
        %424 = sbr.rel (%p422) target = $region48
      $region47: #{upsampling_layer_forward.4} parent=31 // pred_region
        %s425 = smul.u32 2, %s24
        %p426 = scmp.lt.s32.totalorder %s23, 1
        %s427 = scalar_select %p426, %s23, 1
        %p428 = scmp.lt.s32.totalorder %s425, 3
        %s429 = scalar_select %p428, %s425, 3
        %s430 = smul.addr %s427, 4
        %s431 = sadd.s32 %s429, %s430
        %s432 = smul.addr %s431, 8
        %s433 = scalar_lea.vmem %s3, %s432
        %s434 = smul.u32 2, %s24
      $region48: #{upsampling_layer_forward.4} parent=31 // pred_fallthru
        _
      // Predicated region
      $region49: #{upsampling_layer_forward.4} parent=31 // pred_check
        %p435 = pneg %p186
      $region50: #{upsampling_layer_forward.4} parent=31 // pred_check_branch
        %437 = sbr.rel (%p435) target = $region52
      $region51: #{upsampling_layer_forward.4} parent=31 // pred_region
        %s438 = smul.u32 %s24, 2
        %s439 = ssub.s32 %s438, 1
        %p440 = scmp.gt.s32.totalorder %s439, 0
        %s441 = scalar_select %p440, %s439, 0
        %p442 = scmp.lt.s32.totalorder %s23, 1
        %s443 = scalar_select %p442, %s23, 1
        %p444 = scmp.lt.s32.totalorder %s441, 3
        %s445 = scalar_select %p444, %s441, 3
        %s446 = smul.addr %s443, 4
        %s447 = sadd.s32 %s445, %s446
        %s448 = smul.addr %s447, 8
        %s449 = scalar_lea.vmem %s4, %s448
        %s450 = smul.u32 %s24, 2
        %s451 = ssub.s32 %s450, 1
        %p452 = scmp.gt.s32.totalorder %s451, 0
        %s453 = scalar_select %p452, %s451, 0
      $region52: #{upsampling_layer_forward.4} parent=31 // pred_fallthru
        _
      // Predicated region
      $region53: #{upsampling_layer_forward.4} parent=31 // pred_check
        %p454 = pneg %p222
      $region54: #{upsampling_layer_forward.4} parent=31 // pred_check_branch
        %456 = sbr.rel (%p454) target = $region56
      $region55: #{upsampling_layer_forward.4} parent=31 // pred_region
        %s457 = smul.u32 %s24, 2
        %s458 = sadd.s32 %s457, 2
        %p459 = scmp.lt.s32.totalorder %s458, 3
        %s460 = scalar_select %p459, %s458, 3
        %p461 = scmp.lt.s32.totalorder %s23, 1
        %s462 = scalar_select %p461, %s23, 1
        %p463 = scmp.lt.s32.totalorder %s460, 3
        %s464 = scalar_select %p463, %s460, 3
        %s465 = smul.addr %s462, 4
        %s466 = sadd.s32 %s464, %s465
        %s467 = smul.addr %s466, 8
        %s468 = scalar_lea.vmem %s5, %s467
        %s469 = smul.u32 %s24, 2
        %s470 = sadd.s32 %s469, 2
        %p471 = scmp.lt.s32.totalorder %s470, 3
        %s472 = scalar_select %p471, %s470, 3
      $region56: #{upsampling_layer_forward.4} parent=31 // pred_fallthru
        _
    $region32: #{upsampling_layer_forward.4} parent=5 // pred_fallthru
      _
    %p473 = scmp.le.s32.totalorder 1, %s16
    %p474 = scmp.lt.s32.totalorder %s16, 5
    %p475 = pnand %p473, %p474
    %p476 = pneg %p475
    // Predicated region
    $region57: #{upsampling_layer_forward.4} parent=5 // pred_check
      _
    $region58: #{upsampling_layer_forward.4} parent=5 // pred_check_branch
      %478 = sbr.rel (%p475) target = $region60
    $region59: #{upsampling_layer_forward.4} parent=5 // pred_region
      %s479 = ssub.s32 %s16, 1
      %s480 = smul.u32 2, %s26
      %p481 = scmp.lt.s32.totalorder %s25, 1
      %s482 = scalar_select %p481, %s25, 1
      %p483 = scmp.lt.s32.totalorder %s480, 3
      %s484 = scalar_select %p483, %s480, 3
      %s485 = smul.addr %s482, 4
      %s486 = sadd.s32 %s484, %s485
      %s487 = smul.addr %s486, 8
      %s488 = scalar_lea.vmem %s0, %s487
      %p489 = pneg %p56
      %p490 = pneg %p53
      %s491 = smul.u32 %s26, 2
      %s492 = ssub.s32 %s491, 1
      %p493 = scmp.gt.s32.totalorder %s492, 0
      %s494 = scalar_select %p493, %s492, 0
      %p495 = scmp.lt.s32.totalorder %s25, 1
      %s496 = scalar_select %p495, %s25, 1
      %p497 = scmp.lt.s32.totalorder %s494, 3
      %s498 = scalar_select %p497, %s494, 3
      %s499 = smul.addr %s496, 4
      %s500 = sadd.s32 %s498, %s499
      %s501 = smul.addr %s500, 8
      %s502 = scalar_lea.vmem %s1, %s501
      %p503 = pneg %p92
      %p504 = pneg %p89
      %s505 = smul.u32 %s26, 2
      %s506 = sadd.s32 %s505, 2
      %p507 = scmp.lt.s32.totalorder %s506, 3
      %s508 = scalar_select %p507, %s506, 3
      %p509 = scmp.lt.s32.totalorder %s25, 1
      %s510 = scalar_select %p509, %s25, 1
      %p511 = scmp.lt.s32.totalorder %s508, 3
      %s512 = scalar_select %p511, %s508, 3
      %s513 = smul.addr %s510, 4
      %s514 = sadd.s32 %s512, %s513
      %s515 = smul.addr %s514, 8
      %s516 = scalar_lea.vmem %s2, %s515
      %p517 = pneg %p128
      %p518 = pneg %p125
      %s519 = smul.u32 2, %s26
      %p520 = scmp.lt.s32.totalorder %s25, 1
      %s521 = scalar_select %p520, %s25, 1
      %p522 = scmp.lt.s32.totalorder %s519, 3
      %s523 = scalar_select %p522, %s519, 3
      %s524 = smul.addr %s521, 4
      %s525 = sadd.s32 %s523, %s524
      %s526 = smul.addr %s525, 8
      %s527 = scalar_lea.vmem %s3, %s526
      %p528 = pneg %p156
      %p529 = pneg %p153
      %s530 = smul.u32 %s26, 2
      %s531 = ssub.s32 %s530, 1
      %p532 = scmp.gt.s32.totalorder %s531, 0
      %s533 = scalar_select %p532, %s531, 0
      %p534 = scmp.lt.s32.totalorder %s25, 1
      %s535 = scalar_select %p534, %s25, 1
      %p536 = scmp.lt.s32.totalorder %s533, 3
      %s537 = scalar_select %p536, %s533, 3
      %s538 = smul.addr %s535, 4
      %s539 = sadd.s32 %s537, %s538
      %s540 = smul.addr %s539, 8
      %s541 = scalar_lea.vmem %s4, %s540
      %p542 = pneg %p192
      %p543 = pneg %p189
      %s544 = smul.u32 %s26, 2
      %s545 = sadd.s32 %s544, 2
      %p546 = scmp.lt.s32.totalorder %s545, 3
      %s547 = scalar_select %p546, %s545, 3
      %p548 = scmp.lt.s32.totalorder %s25, 1
      %s549 = scalar_select %p548, %s25, 1
      %p550 = scmp.lt.s32.totalorder %s547, 3
      %s551 = scalar_select %p550, %s547, 3
      %s552 = smul.addr %s549, 4
      %s553 = sadd.s32 %s551, %s552
      %s554 = smul.addr %s553, 8
      %s555 = scalar_lea.vmem %s5, %s554
      %p556 = pneg %p228
      %p557 = pneg %p225
      %p558 = pneg %p249
      %p559 = pneg %p246
      %p560 = pneg %p270
      %p561 = pneg %p267
      %p562 = pneg %p291
      %p563 = pneg %p288
      %p564 = pneg %p312
      %p565 = pneg %p309
      %p566 = pneg %p340
      %p567 = pneg %p337
      %s568 = smul.u32 2, %s26
      %p569 = scmp.lt.s32.totalorder %s25, 1
      %s570 = scalar_select %p569, %s25, 1
      %p571 = scmp.lt.s32.totalorder %s568, 3
      %s572 = scalar_select %p571, %s568, 3
      %s573 = smul.addr %s570, 4
      %s574 = sadd.s32 %s572, %s573
      %s575 = smul.addr %s574, 8
      %s576 = scalar_lea.vmem %s10, %s575
      %s577 = smul.u32 2, %s26
      %p578 = scmp.lt.s32.totalorder %s25, 1
      %s579 = scalar_select %p578, %s25, 1
      %p580 = scmp.lt.s32.totalorder %s577, 3
      %s581 = scalar_select %p580, %s577, 3
      %s582 = smul.addr %s579, 4
      %s583 = sadd.s32 %s581, %s582
      %s584 = smul.addr %s583, 8
      %s585 = scalar_lea.vmem %s0, %s584
      %s586 = smul.u32 2, %s26
      %s587 = smul.u32 %s26, 2
      %s588 = ssub.s32 %s587, 1
      %p589 = scmp.gt.s32.totalorder %s588, 0
      %s590 = scalar_select %p589, %s588, 0
      %p591 = scmp.lt.s32.totalorder %s25, 1
      %s592 = scalar_select %p591, %s25, 1
      %p593 = scmp.lt.s32.totalorder %s590, 3
      %s594 = scalar_select %p593, %s590, 3
      %s595 = smul.addr %s592, 4
      %s596 = sadd.s32 %s594, %s595
      %s597 = smul.addr %s596, 8
      %s598 = scalar_lea.vmem %s1, %s597
      %s599 = smul.u32 %s26, 2
      %s600 = ssub.s32 %s599, 1
      %p601 = scmp.gt.s32.totalorder %s600, 0
      %s602 = scalar_select %p601, %s600, 0
      %s603 = smul.u32 %s26, 2
      %s604 = sadd.s32 %s603, 2
      %p605 = scmp.lt.s32.totalorder %s604, 3
      %s606 = scalar_select %p605, %s604, 3
      %p607 = scmp.lt.s32.totalorder %s25, 1
      %s608 = scalar_select %p607, %s25, 1
      %p609 = scmp.lt.s32.totalorder %s606, 3
      %s610 = scalar_select %p609, %s606, 3
      %s611 = smul.addr %s608, 4
      %s612 = sadd.s32 %s610, %s611
      %s613 = smul.addr %s612, 8
      %s614 = scalar_lea.vmem %s2, %s613
      %s615 = smul.u32 %s26, 2
      %s616 = sadd.s32 %s615, 2
      %p617 = scmp.lt.s32.totalorder %s616, 3
      %s618 = scalar_select %p617, %s616, 3
      %s619 = smul.u32 2, %s26
      %p620 = scmp.lt.s32.totalorder %s25, 1
      %s621 = scalar_select %p620, %s25, 1
      %p622 = scmp.lt.s32.totalorder %s619, 3
      %s623 = scalar_select %p622, %s619, 3
      %s624 = smul.addr %s621, 4
      %s625 = sadd.s32 %s623, %s624
      %s626 = smul.addr %s625, 8
      %s627 = scalar_lea.vmem %s3, %s626
      %s628 = smul.u32 2, %s26
      %s629 = smul.u32 %s26, 2
      %s630 = ssub.s32 %s629, 1
      %p631 = scmp.gt.s32.totalorder %s630, 0
      %s632 = scalar_select %p631, %s630, 0
      %p633 = scmp.lt.s32.totalorder %s25, 1
      %s634 = scalar_select %p633, %s25, 1
      %p635 = scmp.lt.s32.totalorder %s632, 3
      %s636 = scalar_select %p635, %s632, 3
      %s637 = smul.addr %s634, 4
      %s638 = sadd.s32 %s636, %s637
      %s639 = smul.addr %s638, 8
      %s640 = scalar_lea.vmem %s4, %s639
      %s641 = smul.u32 %s26, 2
      %s642 = ssub.s32 %s641, 1
      %p643 = scmp.gt.s32.totalorder %s642, 0
      %s644 = scalar_select %p643, %s642, 0
      %s645 = smul.u32 %s26, 2
      %s646 = sadd.s32 %s645, 2
      %p647 = scmp.lt.s32.totalorder %s646, 3
      %s648 = scalar_select %p647, %s646, 3
      %p649 = scmp.lt.s32.totalorder %s25, 1
      %s650 = scalar_select %p649, %s25, 1
      %p651 = scmp.lt.s32.totalorder %s648, 3
      %s652 = scalar_select %p651, %s648, 3
      %s653 = smul.addr %s650, 4
      %s654 = sadd.s32 %s652, %s653
      %s655 = smul.addr %s654, 8
      %s656 = scalar_lea.vmem %s5, %s655
      %s657 = smul.u32 %s26, 2
      %s658 = sadd.s32 %s657, 2
      %p659 = scmp.lt.s32.totalorder %s658, 3
      %s660 = scalar_select %p659, %s658, 3
      %s661 = smul.u32 2, %s26
      %p662 = scmp.lt.s32.totalorder %s25, 1
      %s663 = scalar_select %p662, %s25, 1
      %p664 = scmp.lt.s32.totalorder %s661, 3
      %s665 = scalar_select %p664, %s661, 3
      %s666 = smul.addr %s663, 4
      %s667 = sadd.s32 %s665, %s666
      %s668 = smul.addr %s667, 8
      %s669 = scalar_lea.vmem %s10, %s668
      %s670 = smul.u32 2, %s26
      %p671 = scmp.gt.s32.totalorder %s26, 0
      %s672 = scalar_select %p671, 1, 0
      %s673 = scvt.s32.f32 %s672
      %p674 = scmp.lt.s32.totalorder %s26, 1
      %s675 = scalar_select %p674, 1, 0
      %s676 = scvt.s32.f32 %s675
      %v677 = vld [vmem:[%s585] sm:$0xff]
      %v678 = vld [vmem:[%s585 + $0x8] sm:$0xff]
      %v679 = vld [vmem:[%s598 + $0x7] sm:$0x1]
      %v680 = vstv %s673
      %v681 = vmul.f32 %v679, %v680
      %v682 = vld [vmem:[%s614] sm:$0x1]
      %v683 = vstv %s676
      %v684 = vmul.f32 %v682, %v683
      %vm687 = vcmask 1040384
      %v688 = vrot.slane %v677, 7
      %v689 = vrot.slane %v678, 7
      %v690 = vsel %vm687, %v688, %v689
      %v695 = vrot.slane %v684, 7
      %v697 = vsel %vm687, %v681, %v688
      %v698 = vsel %vm687, %v689, %v695
      %v699 = vld [vmem:[%s6] sm:$0xff]
      %v700 = vld [vmem:[%s6 + $0x8] sm:$0xff]
      %v701 = vld [vmem:[%s6 + $0x10] sm:$0xff]
      %v702 = vld [vmem:[%s6 + $0x18] sm:$0xff]
      %v703 = vld [vmem:[%s6 + $0x20] sm:$0xff]
      %v704 = vld [vmem:[%s6 + $0x28] sm:$0xff]
      %v705 = vld [vmem:[%s6 + $0x30] sm:$0xff]
      %v706 = vld [vmem:[%s6 + $0x38] sm:$0xff]
      %v707 = vld [vmem:[%s6 + $0x40] sm:$0xff]
      %v708 = vld [vmem:[%s6 + $0x48] sm:$0xff]
      %v709 = vld [vmem:[%s6 + $0x50] sm:$0xff]
      %v710 = vld [vmem:[%s6 + $0x58] sm:$0xff]
      %v711 = vld [vmem:[%s6 + $0x60] sm:$0xff]
      %v712 = vld [vmem:[%s6 + $0x68] sm:$0xff]
      %v713 = vld [vmem:[%s6 + $0x70] sm:$0xff]
      %v714 = vld [vmem:[%s6 + $0x78] sm:$0xff]
      %s715 = scalar_lea.vmem %s6, 128
      %v716 = vld [vmem:[%s715] sm:$0xff]
      %v717 = vld [vmem:[%s715 + $0x8] sm:$0xff]
      %v718 = vld [vmem:[%s715 + $0x10] sm:$0xff]
      %v719 = vld [vmem:[%s715 + $0x18] sm:$0xff]
      %v720 = vld [vmem:[%s715 + $0x20] sm:$0xff]
      %v721 = vld [vmem:[%s715 + $0x28] sm:$0xff]
      %v722 = vld [vmem:[%s715 + $0x30] sm:$0xff]
      %v723 = vld [vmem:[%s715 + $0x38] sm:$0xff]
      %v724 = vld [vmem:[%s715 + $0x40] sm:$0xff]
      %v725 = vld [vmem:[%s715 + $0x48] sm:$0xff]
      %v726 = vld [vmem:[%s715 + $0x50] sm:$0xff]
      %v727 = vld [vmem:[%s715 + $0x58] sm:$0xff]
      %v728 = vld [vmem:[%s715 + $0x60] sm:$0xff]
      %v729 = vld [vmem:[%s715 + $0x68] sm:$0xff]
      %v730 = vld [vmem:[%s715 + $0x70] sm:$0xff]
      %v731 = vld [vmem:[%s715 + $0x78] sm:$0xff]
      %vm734 = vcmask 1046528
      %v735 = vrot.slane %v697, 1
      %v736 = vrot.slane %v690, 1
      %v737 = vsel %vm734, %v735, %v736
      %v738 = vrot.slane %v698, 1
      %v739 = vsel %vm734, %v736, %v738
      %742 = vmatprep.subr.mxu0 0.0
      %743 = vmatpush1.msra.mxu0 %v716
      %744 = vmatprep.subr.mxu0 0.0
      %745 = vmatpush1.msra.mxu0 %v717
      %746 = vmatprep.subr.mxu0 0.0
      %747 = vmatpush1.msra.mxu0 %v718
      %748 = vmatprep.subr.mxu0 0.0
      %749 = vmatpush1.msra.mxu0 %v719
      %750 = vmatprep.subr.mxu0 0.0
      %751 = vmatpush1.msra.mxu0 %v720
      %752 = vmatprep.subr.mxu0 0.0
      %753 = vmatpush1.msra.mxu0 %v721
      %754 = vmatprep.subr.mxu0 0.0
      %755 = vmatpush1.msra.mxu0 %v722
      %756 = vmatprep.subr.mxu0 0.0
      %757 = vmatpush1.msra.mxu0 %v723
      %758 = vmatprep.subr.mxu0 0.0
      %759 = vmatpush1.msra.mxu0 %v724
      %760 = vmatprep.subr.mxu0 0.0
      %761 = vmatpush1.msra.mxu0 %v725
      %762 = vmatprep.subr.mxu0 0.0
      %763 = vmatpush1.msra.mxu0 %v726
      %764 = vmatprep.subr.mxu0 0.0
      %765 = vmatpush1.msra.mxu0 %v727
      %766 = vmatprep.subr.mxu0 0.0
      %767 = vmatpush1.msra.mxu0 %v728
      %768 = vmatprep.subr.mxu0 0.0
      %769 = vmatpush1.msra.mxu0 %v729
      %770 = vmatprep.subr.mxu0 0.0
      %771 = vmatpush1.msra.mxu0 %v730
      %772 = vmatprep.subr.mxu0 0.0
      %773 = vmatpush1.msra.mxu0 %v731
      %774 = vmatprep.subr.mxu0 0.0
      %775 = vmatpush1.msra.mxu0 0.0
      %776 = vmatprep.subr.mxu0 0.0
      %777 = vmatpush1.msra.mxu0 0.0
      %778 = vmatprep.subr.mxu0 0.0
      %779 = vmatpush1.msra.mxu0 0.0
      %780 = vmatprep.subr.mxu0 0.0
      %781 = vmatpush1.msra.mxu0 0.0
      %782 = vmatprep.subr.mxu0 0.0
      %783 = vmatpush1.msra.mxu0 0.0
      %784 = vmatprep.subr.mxu0 0.0
      %785 = vmatpush1.msra.mxu0 0.0
      %786 = vmatprep.subr.mxu0 0.0
      %787 = vmatpush1.msra.mxu0 0.0
      %788 = vmatprep.subr.mxu0 0.0
      %789 = vmatpush1.msra.mxu0 0.0
      %790 = vmatprep.subr.mxu0 0.0
      %791 = vmatpush1.msra.mxu0 0.0
      %792 = vmatprep.subr.mxu0 0.0
      %793 = vmatpush1.msra.mxu0 0.0
      %794 = vmatprep.subr.mxu0 0.0
      %795 = vmatpush1.msra.mxu0 0.0
      %796 = vmatprep.subr.mxu0 0.0
      %797 = vmatpush1.msra.mxu0 0.0
      %798 = vmatprep.subr.mxu0 0.0
      %799 = vmatpush1.msra.mxu0 0.0
      %800 = vmatprep.subr.mxu0 0.0
      %801 = vmatpush1.msra.mxu0 0.0
      %802 = vmatprep.subr.mxu0 0.0
      %803 = vmatpush1.msra.mxu0 0.0
      %804 = vmatprep.subr.mxu0 0.0
      %805 = vmatpush1.msra.mxu0 0.0
      %806 = vmatprep.mubr.f32.mxu0 0.0
      %807 = vmatmul.mubr.f32.gmra.mrb[0].mxu0 %v737
      %v808 = vpop.f32.mrb[0].mxu0
      %v809 = vadd.f32 0.0, %v808
      %v810 = vpop.f32.mrb[0].mxu0
      %811 = vmatprep.mubr.f32.mxu0 0.0
      %812 = vmatmul.mubr.f32.gmra.mrb[0].mxu0 %v739
      %v813 = vpop.f32.mrb[0].mxu0
      %v814 = vadd.f32 0.0, %v813
      %v815 = vpop.f32.mrb[0].mxu0
      %816 = vdwg.mxu0
      %817 = vmatprep.subr.mxu0 0.0
      %818 = vmatpush1.msra.mxu0 %v699
      %819 = vmatprep.subr.mxu0 0.0
      %820 = vmatpush1.msra.mxu0 %v700
      %821 = vmatprep.subr.mxu0 0.0
      %822 = vmatpush1.msra.mxu0 %v701
      %823 = vmatprep.subr.mxu0 0.0
      %824 = vmatpush1.msra.mxu0 %v702
      %825 = vmatprep.subr.mxu0 0.0
      %826 = vmatpush1.msra.mxu0 %v703
      %827 = vmatprep.subr.mxu0 0.0
      %828 = vmatpush1.msra.mxu0 %v704
      %829 = vmatprep.subr.mxu0 0.0
      %830 = vmatpush1.msra.mxu0 %v705
      %831 = vmatprep.subr.mxu0 0.0
      %832 = vmatpush1.msra.mxu0 %v706
      %833 = vmatprep.subr.mxu0 0.0
      %834 = vmatpush1.msra.mxu0 %v707
      %835 = vmatprep.subr.mxu0 0.0
      %836 = vmatpush1.msra.mxu0 %v708
      %837 = vmatprep.subr.mxu0 0.0
      %838 = vmatpush1.msra.mxu0 %v709
      %839 = vmatprep.subr.mxu0 0.0
      %840 = vmatpush1.msra.mxu0 %v710
      %841 = vmatprep.subr.mxu0 0.0
      %842 = vmatpush1.msra.mxu0 %v711
      %843 = vmatprep.subr.mxu0 0.0
      %844 = vmatpush1.msra.mxu0 %v712
      %845 = vmatprep.subr.mxu0 0.0
      %846 = vmatpush1.msra.mxu0 %v713
      %847 = vmatprep.subr.mxu0 0.0
      %848 = vmatpush1.msra.mxu0 %v714
      %849 = vmatprep.subr.mxu0 0.0
      %850 = vmatpush1.msra.mxu0 0.0
      %851 = vmatprep.subr.mxu0 0.0
      %852 = vmatpush1.msra.mxu0 0.0
      %853 = vmatprep.subr.mxu0 0.0
      %854 = vmatpush1.msra.mxu0 0.0
      %855 = vmatprep.subr.mxu0 0.0
      %856 = vmatpush1.msra.mxu0 0.0
      %857 = vmatprep.subr.mxu0 0.0
      %858 = vmatpush1.msra.mxu0 0.0
      %859 = vmatprep.subr.mxu0 0.0
      %860 = vmatpush1.msra.mxu0 0.0
      %861 = vmatprep.subr.mxu0 0.0
      %862 = vmatpush1.msra.mxu0 0.0
      %863 = vmatprep.subr.mxu0 0.0
      %864 = vmatpush1.msra.mxu0 0.0
      %865 = vmatprep.subr.mxu0 0.0
      %866 = vmatpush1.msra.mxu0 0.0
      %867 = vmatprep.subr.mxu0 0.0
      %868 = vmatpush1.msra.mxu0 0.0
      %869 = vmatprep.subr.mxu0 0.0
      %870 = vmatpush1.msra.mxu0 0.0
      %871 = vmatprep.subr.mxu0 0.0
      %872 = vmatpush1.msra.mxu0 0.0
      %873 = vmatprep.subr.mxu0 0.0
      %874 = vmatpush1.msra.mxu0 0.0
      %875 = vmatprep.subr.mxu0 0.0
      %876 = vmatpush1.msra.mxu0 0.0
      %877 = vmatprep.subr.mxu0 0.0
      %878 = vmatpush1.msra.mxu0 0.0
      %879 = vmatprep.subr.mxu0 0.0
      %880 = vmatpush1.msra.mxu0 0.0
      %881 = vmatprep.mubr.f32.mxu0 0.0
      %882 = vmatmul.mubr.f32.gmra.mrb[0].mxu0 %v697
      %v883 = vpop.f32.mrb[0].mxu0
      %v884 = vadd.f32 %v809, %v883
      %v885 = vpop.f32.mrb[0].mxu0
      %886 = vmatprep.mubr.f32.mxu0 0.0
      %887 = vmatmul.mubr.f32.gmra.mrb[0].mxu0 %v690
      %v888 = vpop.f32.mrb[0].mxu0
      %v889 = vadd.f32 %v814, %v888
      %v890 = vpop.f32.mrb[0].mxu0
      %891 = vdwg.mxu0
      %s892 = scalar_lea.vmem %s6, 256
      %v893 = vld [vmem:[%s892] sm:$0xff]
      %v894 = vld [vmem:[%s892 + $0x8] sm:$0xff]
      %v895 = vld [vmem:[%s892 + $0x10] sm:$0xff]
      %v896 = vld [vmem:[%s892 + $0x18] sm:$0xff]
      %v897 = vld [vmem:[%s892 + $0x20] sm:$0xff]
      %v898 = vld [vmem:[%s892 + $0x28] sm:$0xff]
      %v899 = vld [vmem:[%s892 + $0x30] sm:$0xff]
      %v900 = vld [vmem:[%s892 + $0x38] sm:$0xff]
      %v901 = vld [vmem:[%s892 + $0x40] sm:$0xff]
      %v902 = vld [vmem:[%s892 + $0x48] sm:$0xff]
      %v903 = vld [vmem:[%s892 + $0x50] sm:$0xff]
      %v904 = vld [vmem:[%s892 + $0x58] sm:$0xff]
      %v905 = vld [vmem:[%s892 + $0x60] sm:$0xff]
      %v906 = vld [vmem:[%s892 + $0x68] sm:$0xff]
      %v907 = vld [vmem:[%s892 + $0x70] sm:$0xff]
      %v908 = vld [vmem:[%s892 + $0x78] sm:$0xff]
      %vm909 = vcmask 1045504
      %v910 = vrot.slane %v697, 2
      %v911 = vrot.slane %v690, 2
      %v912 = vsel %vm909, %v910, %v911
      %v913 = vrot.slane %v698, 2
      %v914 = vsel %vm909, %v911, %v913
      %917 = vmatprep.subr.mxu0 0.0
      %918 = vmatpush1.msra.mxu0 %v893
      %919 = vmatprep.subr.mxu0 0.0
      %920 = vmatpush1.msra.mxu0 %v894
      %921 = vmatprep.subr.mxu0 0.0
      %922 = vmatpush1.msra.mxu0 %v895
      %923 = vmatprep.subr.mxu0 0.0
      %924 = vmatpush1.msra.mxu0 %v896
      %925 = vmatprep.subr.mxu0 0.0
      %926 = vmatpush1.msra.mxu0 %v897
      %927 = vmatprep.subr.mxu0 0.0
      %928 = vmatpush1.msra.mxu0 %v898
      %929 = vmatprep.subr.mxu0 0.0
      %930 = vmatpush1.msra.mxu0 %v899
      %931 = vmatprep.subr.mxu0 0.0
      %932 = vmatpush1.msra.mxu0 %v900
      %933 = vmatprep.subr.mxu0 0.0
      %934 = vmatpush1.msra.mxu0 %v901
      %935 = vmatprep.subr.mxu0 0.0
      %936 = vmatpush1.msra.mxu0 %v902
      %937 = vmatprep.subr.mxu0 0.0
      %938 = vmatpush1.msra.mxu0 %v903
      %939 = vmatprep.subr.mxu0 0.0
      %940 = vmatpush1.msra.mxu0 %v904
      %941 = vmatprep.subr.mxu0 0.0
      %942 = vmatpush1.msra.mxu0 %v905
      %943 = vmatprep.subr.mxu0 0.0
      %944 = vmatpush1.msra.mxu0 %v906
      %945 = vmatprep.subr.mxu0 0.0
      %946 = vmatpush1.msra.mxu0 %v907
      %947 = vmatprep.subr.mxu0 0.0
      %948 = vmatpush1.msra.mxu0 %v908
      %949 = vmatprep.subr.mxu0 0.0
      %950 = vmatpush1.msra.mxu0 0.0
      %951 = vmatprep.subr.mxu0 0.0
      %952 = vmatpush1.msra.mxu0 0.0
      %953 = vmatprep.subr.mxu0 0.0
      %954 = vmatpush1.msra.mxu0 0.0
      %955 = vmatprep.subr.mxu0 0.0
      %956 = vmatpush1.msra.mxu0 0.0
      %957 = vmatprep.subr.mxu0 0.0
      %958 = vmatpush1.msra.mxu0 0.0
      %959 = vmatprep.subr.mxu0 0.0
      %960 = vmatpush1.msra.mxu0 0.0
      %961 = vmatprep.subr.mxu0 0.0
      %962 = vmatpush1.msra.mxu0 0.0
      %963 = vmatprep.subr.mxu0 0.0
      %964 = vmatpush1.msra.mxu0 0.0
      %965 = vmatprep.subr.mxu0 0.0
      %966 = vmatpush1.msra.mxu0 0.0
      %967 = vmatprep.subr.mxu0 0.0
      %968 = vmatpush1.msra.mxu0 0.0
      %969 = vmatprep.subr.mxu0 0.0
      %970 = vmatpush1.msra.mxu0 0.0
      %971 = vmatprep.subr.mxu0 0.0
      %972 = vmatpush1.msra.mxu0 0.0
      %973 = vmatprep.subr.mxu0 0.0
      %974 = vmatpush1.msra.mxu0 0.0
      %975 = vmatprep.subr.mxu0 0.0
      %976 = vmatpush1.msra.mxu0 0.0
      %977 = vmatprep.subr.mxu0 0.0
      %978 = vmatpush1.msra.mxu0 0.0
      %979 = vmatprep.subr.mxu0 0.0
      %980 = vmatpush1.msra.mxu0 0.0
      %981 = vmatprep.mubr.f32.mxu0 0.0
      %982 = vmatmul.mubr.f32.gmra.mrb[0].mxu0 %v912
      %v983 = vpop.f32.mrb[0].mxu0
      %v984 = vadd.f32 0.0, %v983
      %v985 = vpop.f32.mrb[0].mxu0
      %986 = vmatprep.mubr.f32.mxu0 0.0
      %987 = vmatmul.mubr.f32.gmra.mrb[0].mxu0 %v914
      %v988 = vpop.f32.mrb[0].mxu0
      %v989 = vadd.f32 0.0, %v988
      %v990 = vpop.f32.mrb[0].mxu0
      %991 = vdwg.mxu0
      %v992 = vadd.f32 %v884, %v984
      %v993 = vadd.f32 %v889, %v989
      %v994 = vld [vmem:[%s627] sm:$0xff]
      %v995 = vld [vmem:[%s627 + $0x8] sm:$0xff]
      %v996 = vld [vmem:[%s640 + $0x7] sm:$0x1]
      %v997 = vmul.f32 %v996, %v680
      %v998 = vld [vmem:[%s656] sm:$0x1]
      %v999 = vmul.f32 %v998, %v683
      %v1002 = vrot.slane %v994, 7
      %v1003 = vrot.slane %v995, 7
      %v1004 = vsel %vm687, %v1002, %v1003
      %v1009 = vrot.slane %v999, 7
      %v1011 = vsel %vm687, %v997, %v1002
      %v1012 = vsel %vm687, %v1003, %v1009
      %v1013 = vld [vmem:[%s7] sm:$0xff]
      %v1014 = vld [vmem:[%s7 + $0x8] sm:$0xff]
      %v1015 = vld [vmem:[%s7 + $0x10] sm:$0xff]
      %v1016 = vld [vmem:[%s7 + $0x18] sm:$0xff]
      %v1017 = vld [vmem:[%s7 + $0x20] sm:$0xff]
      %v1018 = vld [vmem:[%s7 + $0x28] sm:$0xff]
      %v1019 = vld [vmem:[%s7 + $0x30] sm:$0xff]
      %v1020 = vld [vmem:[%s7 + $0x38] sm:$0xff]
      %v1021 = vld [vmem:[%s7 + $0x40] sm:$0xff]
      %v1022 = vld [vmem:[%s7 + $0x48] sm:$0xff]
      %v1023 = vld [vmem:[%s7 + $0x50] sm:$0xff]
      %v1024 = vld [vmem:[%s7 + $0x58] sm:$0xff]
      %v1025 = vld [vmem:[%s7 + $0x60] sm:$0xff]
      %v1026 = vld [vmem:[%s7 + $0x68] sm:$0xff]
      %v1027 = vld [vmem:[%s7 + $0x70] sm:$0xff]
      %v1028 = vld [vmem:[%s7 + $0x78] sm:$0xff]
      %1029 = vmatprep.subr.mxu0 0.0
      %1030 = vmatpush1.msra.mxu0 %v1013
      %1031 = vmatprep.subr.mxu0 0.0
      %1032 = vmatpush1.msra.mxu0 %v1014
      %1033 = vmatprep.subr.mxu0 0.0
      %1034 = vmatpush1.msra.mxu0 %v1015
      %1035 = vmatprep.subr.mxu0 0.0
      %1036 = vmatpush1.msra.mxu0 %v1016
      %1037 = vmatprep.subr.mxu0 0.0
      %1038 = vmatpush1.msra.mxu0 %v1017
      %1039 = vmatprep.subr.mxu0 0.0
      %1040 = vmatpush1.msra.mxu0 %v1018
      %1041 = vmatprep.subr.mxu0 0.0
      %1042 = vmatpush1.msra.mxu0 %v1019
      %1043 = vmatprep.subr.mxu0 0.0
      %1044 = vmatpush1.msra.mxu0 %v1020
      %1045 = vmatprep.subr.mxu0 0.0
      %1046 = vmatpush1.msra.mxu0 %v1021
      %1047 = vmatprep.subr.mxu0 0.0
      %1048 = vmatpush1.msra.mxu0 %v1022
      %1049 = vmatprep.subr.mxu0 0.0
      %1050 = vmatpush1.msra.mxu0 %v1023
      %1051 = vmatprep.subr.mxu0 0.0
      %1052 = vmatpush1.msra.mxu0 %v1024
      %1053 = vmatprep.subr.mxu0 0.0
      %1054 = vmatpush1.msra.mxu0 %v1025
      %1055 = vmatprep.subr.mxu0 0.0
      %1056 = vmatpush1.msra.mxu0 %v1026
      %1057 = vmatprep.subr.mxu0 0.0
      %1058 = vmatpush1.msra.mxu0 %v1027
      %1059 = vmatprep.subr.mxu0 0.0
      %1060 = vmatpush1.msra.mxu0 %v1028
      %1061 = vmatprep.subr.mxu0 0.0
      %1062 = vmatpush1.msra.mxu0 0.0
      %1063 = vmatprep.subr.mxu0 0.0
      %1064 = vmatpush1.msra.mxu0 0.0
      %1065 = vmatprep.subr.mxu0 0.0
      %1066 = vmatpush1.msra.mxu0 0.0
      %1067 = vmatprep.subr.mxu0 0.0
      %1068 = vmatpush1.msra.mxu0 0.0
      %1069 = vmatprep.subr.mxu0 0.0
      %1070 = vmatpush1.msra.mxu0 0.0
      %1071 = vmatprep.subr.mxu0 0.0
      %1072 = vmatpush1.msra.mxu0 0.0
      %1073 = vmatprep.subr.mxu0 0.0
      %1074 = vmatpush1.msra.mxu0 0.0
      %1075 = vmatprep.subr.mxu0 0.0
      %1076 = vmatpush1.msra.mxu0 0.0
      %1077 = vmatprep.subr.mxu0 0.0
      %1078 = vmatpush1.msra.mxu0 0.0
      %1079 = vmatprep.subr.mxu0 0.0
      %1080 = vmatpush1.msra.mxu0 0.0
      %1081 = vmatprep.subr.mxu0 0.0
      %1082 = vmatpush1.msra.mxu0 0.0
      %1083 = vmatprep.subr.mxu0 0.0
      %1084 = vmatpush1.msra.mxu0 0.0
      %1085 = vmatprep.subr.mxu0 0.0
      %1086 = vmatpush1.msra.mxu0 0.0
      %1087 = vmatprep.subr.mxu0 0.0
      %1088 = vmatpush1.msra.mxu0 0.0
      %1089 = vmatprep.subr.mxu0 0.0
      %1090 = vmatpush1.msra.mxu0 0.0
      %1091 = vmatprep.subr.mxu0 0.0
      %1092 = vmatpush1.msra.mxu0 0.0
      %1093 = vmatprep.mubr.f32.mxu0 0.0
      %1094 = vmatmul.mubr.f32.gmra.mrb[0].mxu0 %v1011
      %v1095 = vpop.f32.mrb[0].mxu0
      %v1096 = vadd.f32 0.0, %v1095
      %v1097 = vpop.f32.mrb[0].mxu0
      %1098 = vmatprep.mubr.f32.mxu0 0.0
      %1099 = vmatmul.mubr.f32.gmra.mrb[0].mxu0 %v1004
      %v1100 = vpop.f32.mrb[0].mxu0
      %v1101 = vadd.f32 0.0, %v1100
      %v1102 = vpop.f32.mrb[0].mxu0
      %1103 = vdwg.mxu0
      %v1104 = vadd.f32 %v992, %v1096
      %v1105 = vadd.f32 %v993, %v1101
      %s1106 = scalar_lea.vmem %s7, 128
      %v1107 = vld [vmem:[%s1106] sm:$0xff]
      %v1108 = vld [vmem:[%s1106 + $0x8] sm:$0xff]
      %v1109 = vld [vmem:[%s1106 + $0x10] sm:$0xff]
      %v1110 = vld [vmem:[%s1106 + $0x18] sm:$0xff]
      %v1111 = vld [vmem:[%s1106 + $0x20] sm:$0xff]
      %v1112 = vld [vmem:[%s1106 + $0x28] sm:$0xff]
      %v1113 = vld [vmem:[%s1106 + $0x30] sm:$0xff]
      %v1114 = vld [vmem:[%s1106 + $0x38] sm:$0xff]
      %v1115 = vld [vmem:[%s1106 + $0x40] sm:$0xff]
      %v1116 = vld [vmem:[%s1106 + $0x48] sm:$0xff]
      %v1117 = vld [vmem:[%s1106 + $0x50] sm:$0xff]
      %v1118 = vld [vmem:[%s1106 + $0x58] sm:$0xff]
      %v1119 = vld [vmem:[%s1106 + $0x60] sm:$0xff]
      %v1120 = vld [vmem:[%s1106 + $0x68] sm:$0xff]
      %v1121 = vld [vmem:[%s1106 + $0x70] sm:$0xff]
      %v1122 = vld [vmem:[%s1106 + $0x78] sm:$0xff]
      %v1125 = vrot.slane %v1011, 1
      %v1126 = vrot.slane %v1004, 1
      %v1127 = vsel %vm734, %v1125, %v1126
      %v1128 = vrot.slane %v1012, 1
      %v1129 = vsel %vm734, %v1126, %v1128
      %1132 = vmatprep.subr.mxu0 0.0
      %1133 = vmatpush1.msra.mxu0 %v1107
      %1134 = vmatprep.subr.mxu0 0.0
      %1135 = vmatpush1.msra.mxu0 %v1108
      %1136 = vmatprep.subr.mxu0 0.0
      %1137 = vmatpush1.msra.mxu0 %v1109
      %1138 = vmatprep.subr.mxu0 0.0
      %1139 = vmatpush1.msra.mxu0 %v1110
      %1140 = vmatprep.subr.mxu0 0.0
      %1141 = vmatpush1.msra.mxu0 %v1111
      %1142 = vmatprep.subr.mxu0 0.0
      %1143 = vmatpush1.msra.mxu0 %v1112
      %1144 = vmatprep.subr.mxu0 0.0
      %1145 = vmatpush1.msra.mxu0 %v1113
      %1146 = vmatprep.subr.mxu0 0.0
      %1147 = vmatpush1.msra.mxu0 %v1114
      %1148 = vmatprep.subr.mxu0 0.0
      %1149 = vmatpush1.msra.mxu0 %v1115
      %1150 = vmatprep.subr.mxu0 0.0
      %1151 = vmatpush1.msra.mxu0 %v1116
      %1152 = vmatprep.subr.mxu0 0.0
      %1153 = vmatpush1.msra.mxu0 %v1117
      %1154 = vmatprep.subr.mxu0 0.0
      %1155 = vmatpush1.msra.mxu0 %v1118
      %1156 = vmatprep.subr.mxu0 0.0
      %1157 = vmatpush1.msra.mxu0 %v1119
      %1158 = vmatprep.subr.mxu0 0.0
      %1159 = vmatpush1.msra.mxu0 %v1120
      %1160 = vmatprep.subr.mxu0 0.0
      %1161 = vmatpush1.msra.mxu0 %v1121
      %1162 = vmatprep.subr.mxu0 0.0
      %1163 = vmatpush1.msra.mxu0 %v1122
      %1164 = vmatprep.subr.mxu0 0.0
      %1165 = vmatpush1.msra.mxu0 0.0
      %1166 = vmatprep.subr.mxu0 0.0
      %1167 = vmatpush1.msra.mxu0 0.0
      %1168 = vmatprep.subr.mxu0 0.0
      %1169 = vmatpush1.msra.mxu0 0.0
      %1170 = vmatprep.subr.mxu0 0.0
      %1171 = vmatpush1.msra.mxu0 0.0
      %1172 = vmatprep.subr.mxu0 0.0
      %1173 = vmatpush1.msra.mxu0 0.0
      %1174 = vmatprep.subr.mxu0 0.0
      %1175 = vmatpush1.msra.mxu0 0.0
      %1176 = vmatprep.subr.mxu0 0.0
      %1177 = vmatpush1.msra.mxu0 0.0
      %1178 = vmatprep.subr.mxu0 0.0
      %1179 = vmatpush1.msra.mxu0 0.0
      %1180 = vmatprep.subr.mxu0 0.0
      %1181 = vmatpush1.msra.mxu0 0.0
      %1182 = vmatprep.subr.mxu0 0.0
      %1183 = vmatpush1.msra.mxu0 0.0
      %1184 = vmatprep.subr.mxu0 0.0
      %1185 = vmatpush1.msra.mxu0 0.0
      %1186 = vmatprep.subr.mxu0 0.0
      %1187 = vmatpush1.msra.mxu0 0.0
      %1188 = vmatprep.subr.mxu0 0.0
      %1189 = vmatpush1.msra.mxu0 0.0
      %1190 = vmatprep.subr.mxu0 0.0
      %1191 = vmatpush1.msra.mxu0 0.0
      %1192 = vmatprep.subr.mxu0 0.0
      %1193 = vmatpush1.msra.mxu0 0.0
      %1194 = vmatprep.subr.mxu0 0.0
      %1195 = vmatpush1.msra.mxu0 0.0
      %1196 = vmatprep.mubr.f32.mxu0 0.0
      %1197 = vmatmul.mubr.f32.gmra.mrb[0].mxu0 %v1127
      %v1198 = vpop.f32.mrb[0].mxu0
      %v1199 = vadd.f32 0.0, %v1198
      %v1200 = vpop.f32.mrb[0].mxu0
      %1201 = vmatprep.mubr.f32.mxu0 0.0
      %1202 = vmatmul.mubr.f32.gmra.mrb[0].mxu0 %v1129
      %v1203 = vpop.f32.mrb[0].mxu0
      %v1204 = vadd.f32 0.0, %v1203
      %v1205 = vpop.f32.mrb[0].mxu0
      %1206 = vdwg.mxu0
      %v1207 = vadd.f32 %v1104, %v1199
      %v1208 = vadd.f32 %v1105, %v1204
      %s1209 = scalar_lea.vmem %s7, 256
      %v1210 = vld [vmem:[%s1209] sm:$0xff]
      %v1211 = vld [vmem:[%s1209 + $0x8] sm:$0xff]
      %v1212 = vld [vmem:[%s1209 + $0x10] sm:$0xff]
      %v1213 = vld [vmem:[%s1209 + $0x18] sm:$0xff]
      %v1214 = vld [vmem:[%s1209 + $0x20] sm:$0xff]
      %v1215 = vld [vmem:[%s1209 + $0x28] sm:$0xff]
      %v1216 = vld [vmem:[%s1209 + $0x30] sm:$0xff]
      %v1217 = vld [vmem:[%s1209 + $0x38] sm:$0xff]
      %v1218 = vld [vmem:[%s1209 + $0x40] sm:$0xff]
      %v1219 = vld [vmem:[%s1209 + $0x48] sm:$0xff]
      %v1220 = vld [vmem:[%s1209 + $0x50] sm:$0xff]
      %v1221 = vld [vmem:[%s1209 + $0x58] sm:$0xff]
      %v1222 = vld [vmem:[%s1209 + $0x60] sm:$0xff]
      %v1223 = vld [vmem:[%s1209 + $0x68] sm:$0xff]
      %v1224 = vld [vmem:[%s1209 + $0x70] sm:$0xff]
      %v1225 = vld [vmem:[%s1209 + $0x78] sm:$0xff]
      %v1226 = vrot.slane %v1011, 2
      %v1227 = vrot.slane %v1004, 2
      %v1228 = vsel %vm909, %v1226, %v1227
      %v1229 = vrot.slane %v1012, 2
      %v1230 = vsel %vm909, %v1227, %v1229
      %1233 = vmatprep.subr.mxu0 0.0
      %1234 = vmatpush1.msra.mxu0 %v1210
      %1235 = vmatprep.subr.mxu0 0.0
      %1236 = vmatpush1.msra.mxu0 %v1211
      %1237 = vmatprep.subr.mxu0 0.0
      %1238 = vmatpush1.msra.mxu0 %v1212
      %1239 = vmatprep.subr.mxu0 0.0
      %1240 = vmatpush1.msra.mxu0 %v1213
      %1241 = vmatprep.subr.mxu0 0.0
      %1242 = vmatpush1.msra.mxu0 %v1214
      %1243 = vmatprep.subr.mxu0 0.0
      %1244 = vmatpush1.msra.mxu0 %v1215
      %1245 = vmatprep.subr.mxu0 0.0
      %1246 = vmatpush1.msra.mxu0 %v1216
      %1247 = vmatprep.subr.mxu0 0.0
      %1248 = vmatpush1.msra.mxu0 %v1217
      %1249 = vmatprep.subr.mxu0 0.0
      %1250 = vmatpush1.msra.mxu0 %v1218
      %1251 = vmatprep.subr.mxu0 0.0
      %1252 = vmatpush1.msra.mxu0 %v1219
      %1253 = vmatprep.subr.mxu0 0.0
      %1254 = vmatpush1.msra.mxu0 %v1220
      %1255 = vmatprep.subr.mxu0 0.0
      %1256 = vmatpush1.msra.mxu0 %v1221
      %1257 = vmatprep.subr.mxu0 0.0
      %1258 = vmatpush1.msra.mxu0 %v1222
      %1259 = vmatprep.subr.mxu0 0.0
      %1260 = vmatpush1.msra.mxu0 %v1223
      %1261 = vmatprep.subr.mxu0 0.0
      %1262 = vmatpush1.msra.mxu0 %v1224
      %1263 = vmatprep.subr.mxu0 0.0
      %1264 = vmatpush1.msra.mxu0 %v1225
      %1265 = vmatprep.subr.mxu0 0.0
      %1266 = vmatpush1.msra.mxu0 0.0
      %1267 = vmatprep.subr.mxu0 0.0
      %1268 = vmatpush1.msra.mxu0 0.0
      %1269 = vmatprep.subr.mxu0 0.0
      %1270 = vmatpush1.msra.mxu0 0.0
      %1271 = vmatprep.subr.mxu0 0.0
      %1272 = vmatpush1.msra.mxu0 0.0
      %1273 = vmatprep.subr.mxu0 0.0
      %1274 = vmatpush1.msra.mxu0 0.0
      %1275 = vmatprep.subr.mxu0 0.0
      %1276 = vmatpush1.msra.mxu0 0.0
      %1277 = vmatprep.subr.mxu0 0.0
      %1278 = vmatpush1.msra.mxu0 0.0
      %1279 = vmatprep.subr.mxu0 0.0
      %1280 = vmatpush1.msra.mxu0 0.0
      %1281 = vmatprep.subr.mxu0 0.0
      %1282 = vmatpush1.msra.mxu0 0.0
      %1283 = vmatprep.subr.mxu0 0.0
      %1284 = vmatpush1.msra.mxu0 0.0
      %1285 = vmatprep.subr.mxu0 0.0
      %1286 = vmatpush1.msra.mxu0 0.0
      %1287 = vmatprep.subr.mxu0 0.0
      %1288 = vmatpush1.msra.mxu0 0.0
      %1289 = vmatprep.subr.mxu0 0.0
      %1290 = vmatpush1.msra.mxu0 0.0
      %1291 = vmatprep.subr.mxu0 0.0
      %1292 = vmatpush1.msra.mxu0 0.0
      %1293 = vmatprep.subr.mxu0 0.0
      %1294 = vmatpush1.msra.mxu0 0.0
      %1295 = vmatprep.subr.mxu0 0.0
      %1296 = vmatpush1.msra.mxu0 0.0
      %1297 = vmatprep.mubr.f32.mxu0 0.0
      %1298 = vmatmul.mubr.f32.gmra.mrb[0].mxu0 %v1228
      %v1299 = vpop.f32.mrb[0].mxu0
      %v1300 = vadd.f32 0.0, %v1299
      %v1301 = vpop.f32.mrb[0].mxu0
      %1302 = vmatprep.mubr.f32.mxu0 0.0
      %1303 = vmatmul.mubr.f32.gmra.mrb[0].mxu0 %v1230
      %v1304 = vpop.f32.mrb[0].mxu0
      %v1305 = vadd.f32 0.0, %v1304
      %v1306 = vpop.f32.mrb[0].mxu0
      %1307 = vdwg.mxu0
      %v1308 = vadd.f32 %v1207, %v1300
      %v1309 = vadd.f32 %v1208, %v1305
      %v1310 = vld [vmem:[%s8] sm:$0x1]
      %v1312 = vlaneseq
      %v1313 = vshrl.u32 %v1312, 7
      %v1314 = vsub.s32 0, %v1313
      %v1315 = vrot.slane %v1310, %v1314
      %v1317 = vmul.f32 %v1308, %v1315
      %v1318 = vmul.f32 %v1309, %v1315
      %v1319 = vld [vmem:[%s9] sm:$0x1]
      %v1321 = vlaneseq
      %v1322 = vshrl.u32 %v1321, 7
      %v1323 = vsub.s32 0, %v1322
      %v1324 = vrot.slane %v1319, %v1323
      %v1326 = vadd.f32 %v1317, %v1324
      %v1327 = vadd.f32 %v1318, %v1324
      %v1328 = vmul.f32 %v1326, 0.5
      %v1329 = vmul.f32 %v1327, 0.5
      %v1330 = vtanh.pop %v1328
      %v1331 = vtanh.pop %v1329
      %v1332 = vmul.f32 %v1326, 1.442695
      %v1333 = vpow.pop %v1332
      %v1334 = vmul.f32 %v1327, 1.442695
      %v1335 = vpow.pop %v1334
      %v1336 = vadd.f32 %v1333, 1.0
      %v1337 = vadd.f32 %v1335, 1.0
      %v1338 = vmul.f32 %v1330, %v1336
      %v1339 = vmul.f32 %v1331, %v1337
      %vm1340 = vcmp.gt.f32.partialorder %v1326, 0.0
      %vm1341 = vcmp.gt.f32.partialorder %v1327, 0.0
      %v1342 = vsel %vm1340, %v1326, %v1338
      %v1343 = vsel %vm1341, %v1327, %v1339
      %1344 = vst [vmem:[%s669] sm:$0xff] %v1342
      %1345 = vst [vmem:[%s669 + $0x8] sm:$0xff] %v1343
      %s1346 = smul.u32 2, %s26
      %p1347 = scmp.lt.s32.totalorder %s25, 1
      %s1348 = scalar_select %p1347, %s25, 1
      %p1349 = scmp.lt.s32.totalorder %s1346, 3
      %s1350 = scalar_select %p1349, %s1346, 3
      %s1351 = smul.addr %s1348, 4
      %s1352 = sadd.s32 %s1350, %s1351
      %s1353 = smul.addr %s1352, 8
      %s1354 = scalar_lea.vmem %s10, %s1353
      // Predicated region
      $region61: #{upsampling_layer_forward.4} parent=59 // pred_check
        %p1355 = pneg %p337
      $region62: #{upsampling_layer_forward.4} parent=59 // pred_check_branch
        %1357 = sbr.rel (%p1355) target = $region64
      $region63: #{upsampling_layer_forward.4} parent=59 // pred_region
        %s1358 = smul.u32 2, %s26
      $region64: #{upsampling_layer_forward.4} parent=59 // pred_fallthru
        _
    $region60: #{upsampling_layer_forward.4} parent=5 // pred_fallthru
      _
    %p1359 = scmp.le.s32.totalorder 2, %s16
    // Predicated region
    $region65: #{upsampling_layer_forward.4} parent=5 // pred_check
      %p1360 = pneg %p1359
    $region66: #{upsampling_layer_forward.4} parent=5 // pred_check_branch
      %1362 = sbr.rel (%p1360) target = $region68
    $region67: #{upsampling_layer_forward.4} parent=5 // pred_region
      %s1363 = ssub.s32 %s16, 2
      // Predicated region
      $region69: #{upsampling_layer_forward.4} parent=67 // pred_check
        %p1364 = pneg %p343
      $region70: #{upsampling_layer_forward.4} parent=67 // pred_check_branch
        %1366 = sbr.rel (%p1364) target = $region72
      $region71: #{upsampling_layer_forward.4} parent=67 // pred_region
        %s1367 = smul.u32 2, %s28
        %p1368 = scmp.lt.s32.totalorder %s27, 1
        %s1369 = scalar_select %p1368, %s27, 1
        %p1370 = scmp.lt.s32.totalorder %s1367, 3
        %s1371 = scalar_select %p1370, %s1367, 3
        %s1372 = smul.addr %s1369, 4
        %s1373 = sadd.s32 %s1371, %s1372
        %s1374 = smul.addr %s1373, 8
        %s1375 = scalar_lea.vmem %s10, %s1374
      $region72: #{upsampling_layer_forward.4} parent=67 // pred_fallthru
        _
    $region68: #{upsampling_layer_forward.4} parent=5 // pred_fallthru
      _
  $region6: #{upsampling_layer_forward.4} parent=0 // loop_footer
    %s20 = sadd.s32 1, %s16
  $region7: #{upsampling_layer_forward.4} parent=0 // loop_footer_branch
    %15 = sbr.rel target = $region3
  $region8: #{upsampling_layer_forward.4} parent=0 // loop_exit
    _

// kernel: upsampling_layer_forward.5
$region0: #{upsampling_layer_forward.5}
  #allocation0 [shape = 'u32[]', space=smem, size = 0x4, offset = 0x4, fixed_abs, tag = 'smem constant byte address 0x4 - core index']
  #allocation1 [shape = 'u32[144,128]{1,0:T(1,128)}', space=vmem, size = 0x12000, scoped, tag = 'internal scratch']
  %s0 = inlined_call_operand.vmem [shape: f32[2,32,128], index: 0, kind: input, shape index: {}, may-alias: {0,1,2}]
  %s1 = inlined_call_operand.vmem [shape: f32[2,32,128], index: 1, kind: input, shape index: {}, may-alias: {0,1,2}]
  %s2 = inlined_call_operand.vmem [shape: f32[2,32,128], index: 2, kind: input, shape index: {}, may-alias: {0,1,2}]
  %s3 = inlined_call_operand.vmem [shape: f32[3,128,128], index: 3, kind: input, shape index: {}]
  %s4 = inlined_call_operand.vmem [shape: f32[1,128], index: 4, kind: input, shape index: {}]
  %s5 = inlined_call_operand.vmem [shape: f32[1,128], index: 5, kind: input, shape index: {}]
  %s6 = inlined_call_operand.vmem [shape: f32[2,32,128], index: 6, kind: output, shape index: {}]
  %s7 = sld [smem:[#allocation0]]
  $region57: #{upsampling_layer_forward.5} parent=0
    _
  %s9 = ssub.s32 1, %s7
  %s10 = scalar_select 0, %s9, %s7
  loop: start=0, step=1, limit=6
  $region2: #{upsampling_layer_forward.5} parent=0 // loop_pre_header
    _
  $region3: #{upsampling_layer_forward.5} parent=0 // loop_header
    %s12 = sphi 0, %s16
    %p13 = scmp.ge.s32.totalorder %s12, 6
    %s19 = sphi 0, %s31
    %s20 = sphi 0, %s27
    %s21 = sphi 0, %s19
    %s22 = sphi 0, %s20
    %s23 = sphi 0, %s21
    %s24 = sphi 0, %s22
    %s36 = sphi 0, %s38
    %s39 = sphi 0, %s36
    %s40 = sphi 0, %s39
    %s56 = sphi 0, %s40
    %s72 = sphi 0, %s74
    %s75 = sphi 0, %s72
    %s76 = sphi 0, %s75
    %s92 = sphi 0, %s76
    %s108 = sphi 0, %s110
    %s111 = sphi 0, %s108
    %s112 = sphi 0, %s111
    %s128 = sphi 0, %s112
    %s132 = sphi 0, %s132
    %s134 = sphi 0, %s132
    %s135 = sphi 0, %s134
    %s149 = sphi 0, %s135
    %s153 = sphi 0, %s153
    %s155 = sphi 0, %s153
    %s156 = sphi 0, %s155
    %s170 = sphi 0, %s156
    %s174 = sphi 0, %s174
    %s176 = sphi 0, %s174
    %s177 = sphi 0, %s176
    %s191 = sphi 0, %s177
    %s199 = sphi 0, %s201
    %s202 = sphi 0, %s199
    %s203 = sphi 0, %s202
    %s219 = sphi 0, %s203
  $region4: #{upsampling_layer_forward.5} parent=0 // loop_header_branch
    %15 = sbr.rel (%p13) target = $region8
  $region5: #{upsampling_layer_forward.5} parent=0 // loop_body
    %s17 = ssub.s32 %s12, 1
    %s18 = ssub.s32 %s12, 2
    %s25 = sadd.s32 1, %s20
    %p26 = scmp.ge.s32.totalorder %s25, 2
    %s27 = scalar_select %p26, 0, %s25
    %s28 = sadd.s32 1, %s19
    %s29 = scalar_select %p26, %s28, %s19
    %p30 = scmp.ge.s32.totalorder %s29, 2
    %s31 = scalar_select %p30, 0, %s29
    %s32 = ssub.s32 %s19, %s31
    %s33 = ssub.s32 %s20, %s27
    %s34 = sor.u32 %s32, %s33
    %p35 = scmp.eq.s32.totalorder %s34, 0
    %s37 = sadd.s32 %s36, 1
    %s38 = scalar_select %p35, %s36, %s37
    %p41 = pneg %p35
    %p42 = scmp.eq.s32.totalorder %s12, 3
    %p43 = por %p41, %p42
    %p44 = scmp.ne.s32.totalorder %s36, %s39
    %p45 = scmp.eq.s32.totalorder %s12, 0
    %p46 = por %p44, %p45
    %p47 = scmp.ne.s32.totalorder %s36, %s39
    %p48 = scmp.eq.s32.totalorder %s17, 3
    %p49 = por %p47, %p48
    %p50 = scmp.ne.s32.totalorder %s39, %s40
    %p51 = scmp.eq.s32.totalorder %s17, 0
    %p52 = por %p50, %p51
    %p53 = scmp.ne.s32.totalorder %s39, %s40
    %p54 = scmp.eq.s32.totalorder %s18, 3
    %p55 = por %p53, %p54
    %p57 = scmp.ne.s32.totalorder %s40, %s56
    %p58 = scmp.eq.s32.totalorder %s18, 0
    %p59 = por %p57, %p58
    %s60 = smul.u32 %s20, 2
    %s61 = ssub.s32 %s60, 1
    %p62 = scmp.gt.s32.totalorder %s61, 0
    %s63 = scalar_select %p62, %s61, 0
    %s64 = smul.u32 %s27, 2
    %s65 = ssub.s32 %s64, 1
    %p66 = scmp.gt.s32.totalorder %s65, 0
    %s67 = scalar_select %p66, %s65, 0
    %s68 = ssub.s32 %s19, %s31
    %s69 = ssub.s32 %s63, %s67
    %s70 = sor.u32 %s68, %s69
    %p71 = scmp.eq.s32.totalorder %s70, 0
    %s73 = sadd.s32 %s72, 1
    %s74 = scalar_select %p71, %s72, %s73
    %p77 = pneg %p71
    %p78 = scmp.eq.s32.totalorder %s12, 3
    %p79 = por %p77, %p78
    %p80 = scmp.ne.s32.totalorder %s72, %s75
    %p81 = scmp.eq.s32.totalorder %s12, 0
    %p82 = por %p80, %p81
    %p83 = scmp.ne.s32.totalorder %s72, %s75
    %p84 = scmp.eq.s32.totalorder %s17, 3
    %p85 = por %p83, %p84
    %p86 = scmp.ne.s32.totalorder %s75, %s76
    %p87 = scmp.eq.s32.totalorder %s17, 0
    %p88 = por %p86, %p87
    %p89 = scmp.ne.s32.totalorder %s75, %s76
    %p90 = scmp.eq.s32.totalorder %s18, 3
    %p91 = por %p89, %p90
    %p93 = scmp.ne.s32.totalorder %s76, %s92
    %p94 = scmp.eq.s32.totalorder %s18, 0
    %p95 = por %p93, %p94
    %s96 = smul.u32 %s20, 2
    %s97 = sadd.s32 %s96, 2
    %p98 = scmp.lt.s32.totalorder %s97, 3
    %s99 = scalar_select %p98, %s97, 3
    %s100 = smul.u32 %s27, 2
    %s101 = sadd.s32 %s100, 2
    %p102 = scmp.lt.s32.totalorder %s101, 3
    %s103 = scalar_select %p102, %s101, 3
    %s104 = ssub.s32 %s19, %s31
    %s105 = ssub.s32 %s99, %s103
    %s106 = sor.u32 %s104, %s105
    %p107 = scmp.eq.s32.totalorder %s106, 0
    %s109 = sadd.s32 %s108, 1
    %s110 = scalar_select %p107, %s108, %s109
    %p113 = pneg %p107
    %p114 = scmp.eq.s32.totalorder %s12, 3
    %p115 = por %p113, %p114
    %p116 = scmp.ne.s32.totalorder %s108, %s111
    %p117 = scmp.eq.s32.totalorder %s12, 0
    %p118 = por %p116, %p117
    %p119 = scmp.ne.s32.totalorder %s108, %s111
    %p120 = scmp.eq.s32.totalorder %s17, 3
    %p121 = por %p119, %p120
    %p122 = scmp.ne.s32.totalorder %s111, %s112
    %p123 = scmp.eq.s32.totalorder %s17, 0
    %p124 = por %p122, %p123
    %p125 = scmp.ne.s32.totalorder %s111, %s112
    %p126 = scmp.eq.s32.totalorder %s18, 3
    %p127 = por %p125, %p126
    %p129 = scmp.ne.s32.totalorder %s112, %s128
    %p130 = scmp.eq.s32.totalorder %s18, 0
    %p131 = por %p129, %p130
    %s133 = sadd.s32 %s132, 1
    %p136 = scmp.eq.s32.totalorder %s12, 3
    %p137 = scmp.ne.s32.totalorder %s132, %s134
    %p138 = scmp.eq.s32.totalorder %s12, 0
    %p139 = por %p137, %p138
    %p140 = scmp.ne.s32.totalorder %s132, %s134
    %p141 = scmp.eq.s32.totalorder %s17, 3
    %p142 = por %p140, %p141
    %p143 = scmp.ne.s32.totalorder %s134, %s135
    %p144 = scmp.eq.s32.totalorder %s17, 0
    %p145 = por %p143, %p144
    %p146 = scmp.ne.s32.totalorder %s134, %s135
    %p147 = scmp.eq.s32.totalorder %s18, 3
    %p148 = por %p146, %p147
    %p150 = scmp.ne.s32.totalorder %s135, %s149
    %p151 = scmp.eq.s32.totalorder %s18, 0
    %p152 = por %p150, %p151
    %s154 = sadd.s32 %s153, 1
    %p157 = scmp.eq.s32.totalorder %s12, 3
    %p158 = scmp.ne.s32.totalorder %s153, %s155
    %p159 = scmp.eq.s32.totalorder %s12, 0
    %p160 = por %p158, %p159
    %p161 = scmp.ne.s32.totalorder %s153, %s155
    %p162 = scmp.eq.s32.totalorder %s17, 3
    %p163 = por %p161, %p162
    %p164 = scmp.ne.s32.totalorder %s155, %s156
    %p165 = scmp.eq.s32.totalorder %s17, 0
    %p166 = por %p164, %p165
    %p167 = scmp.ne.s32.totalorder %s155, %s156
    %p168 = scmp.eq.s32.totalorder %s18, 3
    %p169 = por %p167, %p168
    %p171 = scmp.ne.s32.totalorder %s156, %s170
    %p172 = scmp.eq.s32.totalorder %s18, 0
    %p173 = por %p171, %p172
    %s175 = sadd.s32 %s174, 1
    %p178 = scmp.eq.s32.totalorder %s12, 3
    %p179 = scmp.ne.s32.totalorder %s174, %s176
    %p180 = scmp.eq.s32.totalorder %s12, 0
    %p181 = por %p179, %p180
    %p182 = scmp.ne.s32.totalorder %s174, %s176
    %p183 = scmp.eq.s32.totalorder %s17, 3
    %p184 = por %p182, %p183
    %p185 = scmp.ne.s32.totalorder %s176, %s177
    %p186 = scmp.eq.s32.totalorder %s17, 0
    %p187 = por %p185, %p186
    %p188 = scmp.ne.s32.totalorder %s176, %s177
    %p189 = scmp.eq.s32.totalorder %s18, 3
    %p190 = por %p188, %p189
    %p192 = scmp.ne.s32.totalorder %s177, %s191
    %p193 = scmp.eq.s32.totalorder %s18, 0
    %p194 = por %p192, %p193
    %s195 = ssub.s32 %s19, %s31
    %s196 = ssub.s32 %s20, %s27
    %s197 = sor.u32 %s195, %s196
    %p198 = scmp.eq.s32.totalorder %s197, 0
    %s200 = sadd.s32 %s199, 1
    %s201 = scalar_select %p198, %s199, %s200
    %p204 = pneg %p198
    %p205 = scmp.eq.s32.totalorder %s12, 3
    %p206 = por %p204, %p205
    %p207 = scmp.ne.s32.totalorder %s199, %s202
    %p208 = scmp.eq.s32.totalorder %s12, 0
    %p209 = por %p207, %p208
    %p210 = scmp.ne.s32.totalorder %s199, %s202
    %p211 = scmp.eq.s32.totalorder %s17, 3
    %p212 = por %p210, %p211
    %p213 = scmp.ne.s32.totalorder %s202, %s203
    %p214 = scmp.eq.s32.totalorder %s17, 0
    %p215 = por %p213, %p214
    %p216 = scmp.ne.s32.totalorder %s202, %s203
    %p217 = scmp.eq.s32.totalorder %s18, 3
    %p218 = por %p216, %p217
    %p220 = scmp.ne.s32.totalorder %s203, %s219
    %p221 = scmp.eq.s32.totalorder %s18, 0
    %p222 = por %p220, %p221
    %p223 = scmp.le.s32.totalorder 1, %s12
    %p224 = scmp.lt.s32.totalorder %s12, 5
    %p225 = pnand %p223, %p224
    %p226 = pneg %p225
    // Predicated region
    $region9: #{upsampling_layer_forward.5} parent=5 // pred_check
      _
    $region10: #{upsampling_layer_forward.5} parent=5 // pred_check_branch
      %228 = sbr.rel (%p225) target = $region12
    $region11: #{upsampling_layer_forward.5} parent=5 // pred_region
      %s229 = ssub.s32 %s12, 1
      // Predicated region
      $region13: #{upsampling_layer_forward.5} parent=11 // pred_check
        %p230 = pneg %p145
      $region14: #{upsampling_layer_forward.5} parent=11 // pred_check_branch
        %232 = sbr.rel (%p230) target = $region16
      $region15: #{upsampling_layer_forward.5} parent=11 // pred_region
        _
      $region16: #{upsampling_layer_forward.5} parent=11 // pred_fallthru
        _
      // Predicated region
      $region17: #{upsampling_layer_forward.5} parent=11 // pred_check
        %p233 = pneg %p166
      $region18: #{upsampling_layer_forward.5} parent=11 // pred_check_branch
        %235 = sbr.rel (%p233) target = $region20
      $region19: #{upsampling_layer_forward.5} parent=11 // pred_region
        _
      $region20: #{upsampling_layer_forward.5} parent=11 // pred_fallthru
        _
      // Predicated region
      $region21: #{upsampling_layer_forward.5} parent=11 // pred_check
        %p236 = pneg %p187
      $region22: #{upsampling_layer_forward.5} parent=11 // pred_check_branch
        %238 = sbr.rel (%p236) target = $region24
      $region23: #{upsampling_layer_forward.5} parent=11 // pred_region
        _
      $region24: #{upsampling_layer_forward.5} parent=11 // pred_fallthru
        _
    $region12: #{upsampling_layer_forward.5} parent=5 // pred_fallthru
      _
    %p239 = scmp.lt.s32.totalorder %s12, 4
    // Predicated region
    $region25: #{upsampling_layer_forward.5} parent=5 // pred_check
      %p240 = pneg %p239
    $region26: #{upsampling_layer_forward.5} parent=5 // pred_check_branch
      %242 = sbr.rel (%p240) target = $region28
    $region27: #{upsampling_layer_forward.5} parent=5 // pred_region
      // Predicated region
      $region29: #{upsampling_layer_forward.5} parent=27 // pred_check
        %p243 = pneg %p46
      $region30: #{upsampling_layer_forward.5} parent=27 // pred_check_branch
        %245 = sbr.rel (%p243) target = $region32
      $region31: #{upsampling_layer_forward.5} parent=27 // pred_region
        %s246 = smul.u32 2, %s20
        %p247 = scmp.lt.s32.totalorder %s19, 1
        %s248 = scalar_select %p247, %s19, 1
        %p249 = scmp.lt.s32.totalorder %s246, 3
        %s250 = scalar_select %p249, %s246, 3
        %s251 = smul.addr %s248, 4
        %s252 = sadd.s32 %s250, %s251
        %s253 = smul.addr %s252, 8
        %s254 = scalar_lea.vmem %s0, %s253
        %s255 = smul.u32 2, %s20
      $region32: #{upsampling_layer_forward.5} parent=27 // pred_fallthru
        _
      // Predicated region
      $region33: #{upsampling_layer_forward.5} parent=27 // pred_check
        %p256 = pneg %p82
      $region34: #{upsampling_layer_forward.5} parent=27 // pred_check_branch
        %258 = sbr.rel (%p256) target = $region36
      $region35: #{upsampling_layer_forward.5} parent=27 // pred_region
        %s259 = smul.u32 %s20, 2
        %s260 = ssub.s32 %s259, 1
        %p261 = scmp.gt.s32.totalorder %s260, 0
        %s262 = scalar_select %p261, %s260, 0
        %p263 = scmp.lt.s32.totalorder %s19, 1
        %s264 = scalar_select %p263, %s19, 1
        %p265 = scmp.lt.s32.totalorder %s262, 3
        %s266 = scalar_select %p265, %s262, 3
        %s267 = smul.addr %s264, 4
        %s268 = sadd.s32 %s266, %s267
        %s269 = smul.addr %s268, 8
        %s270 = scalar_lea.vmem %s1, %s269
        %s271 = smul.u32 %s20, 2
        %s272 = ssub.s32 %s271, 1
        %p273 = scmp.gt.s32.totalorder %s272, 0
        %s274 = scalar_select %p273, %s272, 0
      $region36: #{upsampling_layer_forward.5} parent=27 // pred_fallthru
        _
      // Predicated region
      $region37: #{upsampling_layer_forward.5} parent=27 // pred_check
        %p275 = pneg %p118
      $region38: #{upsampling_layer_forward.5} parent=27 // pred_check_branch
        %277 = sbr.rel (%p275) target = $region40
      $region39: #{upsampling_layer_forward.5} parent=27 // pred_region
        %s278 = smul.u32 %s20, 2
        %s279 = sadd.s32 %s278, 2
        %p280 = scmp.lt.s32.totalorder %s279, 3
        %s281 = scalar_select %p280, %s279, 3
        %p282 = scmp.lt.s32.totalorder %s19, 1
        %s283 = scalar_select %p282, %s19, 1
        %p284 = scmp.lt.s32.totalorder %s281, 3
        %s285 = scalar_select %p284, %s281, 3
        %s286 = smul.addr %s283, 4
        %s287 = sadd.s32 %s285, %s286
        %s288 = smul.addr %s287, 8
        %s289 = scalar_lea.vmem %s2, %s288
        %s290 = smul.u32 %s20, 2
        %s291 = sadd.s32 %s290, 2
        %p292 = scmp.lt.s32.totalorder %s291, 3
        %s293 = scalar_select %p292, %s291, 3
      $region40: #{upsampling_layer_forward.5} parent=27 // pred_fallthru
        _
    $region28: #{upsampling_layer_forward.5} parent=5 // pred_fallthru
      _
    %p294 = scmp.le.s32.totalorder 1, %s12
    %p295 = scmp.lt.s32.totalorder %s12, 5
    %p296 = pnand %p294, %p295
    %p297 = pneg %p296
    // Predicated region
    $region41: #{upsampling_layer_forward.5} parent=5 // pred_check
      _
    $region42: #{upsampling_layer_forward.5} parent=5 // pred_check_branch
      %299 = sbr.rel (%p296) target = $region44
    $region43: #{upsampling_layer_forward.5} parent=5 // pred_region
      %s300 = ssub.s32 %s12, 1
      %s301 = smul.u32 2, %s22
      %p302 = scmp.lt.s32.totalorder %s21, 1
      %s303 = scalar_select %p302, %s21, 1
      %p304 = scmp.lt.s32.totalorder %s301, 3
      %s305 = scalar_select %p304, %s301, 3
      %s306 = smul.addr %s303, 4
      %s307 = sadd.s32 %s305, %s306
      %s308 = smul.addr %s307, 8
      %s309 = scalar_lea.vmem %s0, %s308
      %p310 = pneg %p52
      %p311 = pneg %p49
      %s312 = smul.u32 %s22, 2
      %s313 = ssub.s32 %s312, 1
      %p314 = scmp.gt.s32.totalorder %s313, 0
      %s315 = scalar_select %p314, %s313, 0
      %p316 = scmp.lt.s32.totalorder %s21, 1
      %s317 = scalar_select %p316, %s21, 1
      %p318 = scmp.lt.s32.totalorder %s315, 3
      %s319 = scalar_select %p318, %s315, 3
      %s320 = smul.addr %s317, 4
      %s321 = sadd.s32 %s319, %s320
      %s322 = smul.addr %s321, 8
      %s323 = scalar_lea.vmem %s1, %s322
      %p324 = pneg %p88
      %p325 = pneg %p85
      %s326 = smul.u32 %s22, 2
      %s327 = sadd.s32 %s326, 2
      %p328 = scmp.lt.s32.totalorder %s327, 3
      %s329 = scalar_select %p328, %s327, 3
      %p330 = scmp.lt.s32.totalorder %s21, 1
      %s331 = scalar_select %p330, %s21, 1
      %p332 = scmp.lt.s32.totalorder %s329, 3
      %s333 = scalar_select %p332, %s329, 3
      %s334 = smul.addr %s331, 4
      %s335 = sadd.s32 %s333, %s334
      %s336 = smul.addr %s335, 8
      %s337 = scalar_lea.vmem %s2, %s336
      %p338 = pneg %p124
      %p339 = pneg %p121
      %p340 = pneg %p145
      %p341 = pneg %p142
      %p342 = pneg %p166
      %p343 = pneg %p163
      %p344 = pneg %p187
      %p345 = pneg %p184
      %p346 = pneg %p215
      %p347 = pneg %p212
      %s348 = smul.u32 2, %s22
      %p349 = scmp.lt.s32.totalorder %s21, 1
      %s350 = scalar_select %p349, %s21, 1
      %p351 = scmp.lt.s32.totalorder %s348, 3
      %s352 = scalar_select %p351, %s348, 3
      %s353 = smul.addr %s350, 4
      %s354 = sadd.s32 %s352, %s353
      %s355 = smul.addr %s354, 8
      %s356 = scalar_lea.vmem %s6, %s355
      %s357 = smul.u32 2, %s22
      %p358 = scmp.lt.s32.totalorder %s21, 1
      %s359 = scalar_select %p358, %s21, 1
      %p360 = scmp.lt.s32.totalorder %s357, 3
      %s361 = scalar_select %p360, %s357, 3
      %s362 = smul.addr %s359, 4
      %s363 = sadd.s32 %s361, %s362
      %s364 = smul.addr %s363, 8
      %s365 = scalar_lea.vmem %s0, %s364
      %s366 = smul.u32 2, %s22
      %s367 = smul.u32 %s22, 2
      %s368 = ssub.s32 %s367, 1
      %p369 = scmp.gt.s32.totalorder %s368, 0
      %s370 = scalar_select %p369, %s368, 0
      %p371 = scmp.lt.s32.totalorder %s21, 1
      %s372 = scalar_select %p371, %s21, 1
      %p373 = scmp.lt.s32.totalorder %s370, 3
      %s374 = scalar_select %p373, %s370, 3
      %s375 = smul.addr %s372, 4
      %s376 = sadd.s32 %s374, %s375
      %s377 = smul.addr %s376, 8
      %s378 = scalar_lea.vmem %s1, %s377
      %s379 = smul.u32 %s22, 2
      %s380 = ssub.s32 %s379, 1
      %p381 = scmp.gt.s32.totalorder %s380, 0
      %s382 = scalar_select %p381, %s380, 0
      %s383 = smul.u32 %s22, 2
      %s384 = sadd.s32 %s383, 2
      %p385 = scmp.lt.s32.totalorder %s384, 3
      %s386 = scalar_select %p385, %s384, 3
      %p387 = scmp.lt.s32.totalorder %s21, 1
      %s388 = scalar_select %p387, %s21, 1
      %p389 = scmp.lt.s32.totalorder %s386, 3
      %s390 = scalar_select %p389, %s386, 3
      %s391 = smul.addr %s388, 4
      %s392 = sadd.s32 %s390, %s391
      %s393 = smul.addr %s392, 8
      %s394 = scalar_lea.vmem %s2, %s393
      %s395 = smul.u32 %s22, 2
      %s396 = sadd.s32 %s395, 2
      %p397 = scmp.lt.s32.totalorder %s396, 3
      %s398 = scalar_select %p397, %s396, 3
      %s399 = smul.u32 2, %s22
      %p400 = scmp.lt.s32.totalorder %s21, 1
      %s401 = scalar_select %p400, %s21, 1
      %p402 = scmp.lt.s32.totalorder %s399, 3
      %s403 = scalar_select %p402, %s399, 3
      %s404 = smul.addr %s401, 4
      %s405 = sadd.s32 %s403, %s404
      %s406 = smul.addr %s405, 8
      %s407 = scalar_lea.vmem %s6, %s406
      %s408 = smul.u32 2, %s22
      %p409 = scmp.gt.s32.totalorder %s22, 0
      %s410 = scalar_select %p409, 1, 0
      %s411 = scvt.s32.f32 %s410
      %p412 = scmp.lt.s32.totalorder %s22, 1
      %s413 = scalar_select %p412, 1, 0
      %s414 = scvt.s32.f32 %s413
      %v415 = vld [vmem:[%s365] sm:$0xff]
      %v416 = vld [vmem:[%s365 + $0x8] sm:$0xff]
      %v417 = vld [vmem:[%s378 + $0x7] sm:$0x1]
      %v418 = vstv %s411
      %v419 = vmul.f32 %v417, %v418
      %v420 = vld [vmem:[%s394] sm:$0x1]
      %v421 = vstv %s414
      %v422 = vmul.f32 %v420, %v421
      %vm425 = vcmask 1040384
      %v426 = vrot.slane %v415, 7
      %v427 = vrot.slane %v416, 7
      %v428 = vsel %vm425, %v426, %v427
      %v433 = vrot.slane %v422, 7
      %v435 = vsel %vm425, %v419, %v426
      %v436 = vsel %vm425, %v427, %v433
      %v437 = vld [vmem:[%s3] sm:$0xff]
      %v438 = vld [vmem:[%s3 + $0x8] sm:$0xff]
      %v439 = vld [vmem:[%s3 + $0x10] sm:$0xff]
      %v440 = vld [vmem:[%s3 + $0x18] sm:$0xff]
      %v441 = vld [vmem:[%s3 + $0x20] sm:$0xff]
      %v442 = vld [vmem:[%s3 + $0x28] sm:$0xff]
      %v443 = vld [vmem:[%s3 + $0x30] sm:$0xff]
      %v444 = vld [vmem:[%s3 + $0x38] sm:$0xff]
      %v445 = vld [vmem:[%s3 + $0x40] sm:$0xff]
      %v446 = vld [vmem:[%s3 + $0x48] sm:$0xff]
      %v447 = vld [vmem:[%s3 + $0x50] sm:$0xff]
      %v448 = vld [vmem:[%s3 + $0x58] sm:$0xff]
      %v449 = vld [vmem:[%s3 + $0x60] sm:$0xff]
      %v450 = vld [vmem:[%s3 + $0x68] sm:$0xff]
      %v451 = vld [vmem:[%s3 + $0x70] sm:$0xff]
      %v452 = vld [vmem:[%s3 + $0x78] sm:$0xff]
      %s453 = scalar_lea.vmem %s3, 128
      %v454 = vld [vmem:[%s453] sm:$0xff]
      %v455 = vld [vmem:[%s453 + $0x8] sm:$0xff]
      %v456 = vld [vmem:[%s453 + $0x10] sm:$0xff]
      %v457 = vld [vmem:[%s453 + $0x18] sm:$0xff]
      %v458 = vld [vmem:[%s453 + $0x20] sm:$0xff]
      %v459 = vld [vmem:[%s453 + $0x28] sm:$0xff]
      %v460 = vld [vmem:[%s453 + $0x30] sm:$0xff]
      %v461 = vld [vmem:[%s453 + $0x38] sm:$0xff]
      %v462 = vld [vmem:[%s453 + $0x40] sm:$0xff]
      %v463 = vld [vmem:[%s453 + $0x48] sm:$0xff]
      %v464 = vld [vmem:[%s453 + $0x50] sm:$0xff]
      %v465 = vld [vmem:[%s453 + $0x58] sm:$0xff]
      %v466 = vld [vmem:[%s453 + $0x60] sm:$0xff]
      %v467 = vld [vmem:[%s453 + $0x68] sm:$0xff]
      %v468 = vld [vmem:[%s453 + $0x70] sm:$0xff]
      %v469 = vld [vmem:[%s453 + $0x78] sm:$0xff]
      %vm472 = vcmask 1046528
      %v473 = vrot.slane %v435, 1
      %v474 = vrot.slane %v428, 1
      %v475 = vsel %vm472, %v473, %v474
      %v476 = vrot.slane %v436, 1
      %v477 = vsel %vm472, %v474, %v476
      %480 = vmatprep.subr.mxu0 0.0
      %481 = vmatpush1.msra.mxu0 %v454
      %482 = vmatprep.subr.mxu0 0.0
      %483 = vmatpush1.msra.mxu0 %v455
      %484 = vmatprep.subr.mxu0 0.0
      %485 = vmatpush1.msra.mxu0 %v456
      %486 = vmatprep.subr.mxu0 0.0
      %487 = vmatpush1.msra.mxu0 %v457
      %488 = vmatprep.subr.mxu0 0.0
      %489 = vmatpush1.msra.mxu0 %v458
      %490 = vmatprep.subr.mxu0 0.0
      %491 = vmatpush1.msra.mxu0 %v459
      %492 = vmatprep.subr.mxu0 0.0
      %493 = vmatpush1.msra.mxu0 %v460
      %494 = vmatprep.subr.mxu0 0.0
      %495 = vmatpush1.msra.mxu0 %v461
      %496 = vmatprep.subr.mxu0 0.0
      %497 = vmatpush1.msra.mxu0 %v462
      %498 = vmatprep.subr.mxu0 0.0
      %499 = vmatpush1.msra.mxu0 %v463
      %500 = vmatprep.subr.mxu0 0.0
      %501 = vmatpush1.msra.mxu0 %v464
      %502 = vmatprep.subr.mxu0 0.0
      %503 = vmatpush1.msra.mxu0 %v465
      %504 = vmatprep.subr.mxu0 0.0
      %505 = vmatpush1.msra.mxu0 %v466
      %506 = vmatprep.subr.mxu0 0.0
      %507 = vmatpush1.msra.mxu0 %v467
      %508 = vmatprep.subr.mxu0 0.0
      %509 = vmatpush1.msra.mxu0 %v468
      %510 = vmatprep.subr.mxu0 0.0
      %511 = vmatpush1.msra.mxu0 %v469
      %512 = vmatprep.subr.mxu0 0.0
      %513 = vmatpush1.msra.mxu0 0.0
      %514 = vmatprep.subr.mxu0 0.0
      %515 = vmatpush1.msra.mxu0 0.0
      %516 = vmatprep.subr.mxu0 0.0
      %517 = vmatpush1.msra.mxu0 0.0
      %518 = vmatprep.subr.mxu0 0.0
      %519 = vmatpush1.msra.mxu0 0.0
      %520 = vmatprep.subr.mxu0 0.0
      %521 = vmatpush1.msra.mxu0 0.0
      %522 = vmatprep.subr.mxu0 0.0
      %523 = vmatpush1.msra.mxu0 0.0
      %524 = vmatprep.subr.mxu0 0.0
      %525 = vmatpush1.msra.mxu0 0.0
      %526 = vmatprep.subr.mxu0 0.0
      %527 = vmatpush1.msra.mxu0 0.0
      %528 = vmatprep.subr.mxu0 0.0
      %529 = vmatpush1.msra.mxu0 0.0
      %530 = vmatprep.subr.mxu0 0.0
      %531 = vmatpush1.msra.mxu0 0.0
      %532 = vmatprep.subr.mxu0 0.0
      %533 = vmatpush1.msra.mxu0 0.0
      %534 = vmatprep.subr.mxu0 0.0
      %535 = vmatpush1.msra.mxu0 0.0
      %536 = vmatprep.subr.mxu0 0.0
      %537 = vmatpush1.msra.mxu0 0.0
      %538 = vmatprep.subr.mxu0 0.0
      %539 = vmatpush1.msra.mxu0 0.0
      %540 = vmatprep.subr.mxu0 0.0
      %541 = vmatpush1.msra.mxu0 0.0
      %542 = vmatprep.subr.mxu0 0.0
      %543 = vmatpush1.msra.mxu0 0.0
      %544 = vmatprep.mubr.f32.mxu0 0.0
      %545 = vmatmul.mubr.f32.gmra.mrb[0].mxu0 %v475
      %v546 = vpop.f32.mrb[0].mxu0
      %v547 = vadd.f32 0.0, %v546
      %v548 = vpop.f32.mrb[0].mxu0
      %549 = vmatprep.mubr.f32.mxu0 0.0
      %550 = vmatmul.mubr.f32.gmra.mrb[0].mxu0 %v477
      %v551 = vpop.f32.mrb[0].mxu0
      %v552 = vadd.f32 0.0, %v551
      %v553 = vpop.f32.mrb[0].mxu0
      %554 = vdwg.mxu0
      %555 = vmatprep.subr.mxu0 0.0
      %556 = vmatpush1.msra.mxu0 %v437
      %557 = vmatprep.subr.mxu0 0.0
      %558 = vmatpush1.msra.mxu0 %v438
      %559 = vmatprep.subr.mxu0 0.0
      %560 = vmatpush1.msra.mxu0 %v439
      %561 = vmatprep.subr.mxu0 0.0
      %562 = vmatpush1.msra.mxu0 %v440
      %563 = vmatprep.subr.mxu0 0.0
      %564 = vmatpush1.msra.mxu0 %v441
      %565 = vmatprep.subr.mxu0 0.0
      %566 = vmatpush1.msra.mxu0 %v442
      %567 = vmatprep.subr.mxu0 0.0
      %568 = vmatpush1.msra.mxu0 %v443
      %569 = vmatprep.subr.mxu0 0.0
      %570 = vmatpush1.msra.mxu0 %v444
      %571 = vmatprep.subr.mxu0 0.0
      %572 = vmatpush1.msra.mxu0 %v445
      %573 = vmatprep.subr.mxu0 0.0
      %574 = vmatpush1.msra.mxu0 %v446
      %575 = vmatprep.subr.mxu0 0.0
      %576 = vmatpush1.msra.mxu0 %v447
      %577 = vmatprep.subr.mxu0 0.0
      %578 = vmatpush1.msra.mxu0 %v448
      %579 = vmatprep.subr.mxu0 0.0
      %580 = vmatpush1.msra.mxu0 %v449
      %581 = vmatprep.subr.mxu0 0.0
      %582 = vmatpush1.msra.mxu0 %v450
      %583 = vmatprep.subr.mxu0 0.0
      %584 = vmatpush1.msra.mxu0 %v451
      %585 = vmatprep.subr.mxu0 0.0
      %586 = vmatpush1.msra.mxu0 %v452
      %587 = vmatprep.subr.mxu0 0.0
      %588 = vmatpush1.msra.mxu0 0.0
      %589 = vmatprep.subr.mxu0 0.0
      %590 = vmatpush1.msra.mxu0 0.0
      %591 = vmatprep.subr.mxu0 0.0
      %592 = vmatpush1.msra.mxu0 0.0
      %593 = vmatprep.subr.mxu0 0.0
      %594 = vmatpush1.msra.mxu0 0.0
      %595 = vmatprep.subr.mxu0 0.0
      %596 = vmatpush1.msra.mxu0 0.0
      %597 = vmatprep.subr.mxu0 0.0
      %598 = vmatpush1.msra.mxu0 0.0
      %599 = vmatprep.subr.mxu0 0.0
      %600 = vmatpush1.msra.mxu0 0.0
      %601 = vmatprep.subr.mxu0 0.0
      %602 = vmatpush1.msra.mxu0 0.0
      %603 = vmatprep.subr.mxu0 0.0
      %604 = vmatpush1.msra.mxu0 0.0
      %605 = vmatprep.subr.mxu0 0.0
      %606 = vmatpush1.msra.mxu0 0.0
      %607 = vmatprep.subr.mxu0 0.0
      %608 = vmatpush1.msra.mxu0 0.0
      %609 = vmatprep.subr.mxu0 0.0
      %610 = vmatpush1.msra.mxu0 0.0
      %611 = vmatprep.subr.mxu0 0.0
      %612 = vmatpush1.msra.mxu0 0.0
      %613 = vmatprep.subr.mxu0 0.0
      %614 = vmatpush1.msra.mxu0 0.0
      %615 = vmatprep.subr.mxu0 0.0
      %616 = vmatpush1.msra.mxu0 0.0
      %617 = vmatprep.subr.mxu0 0.0
      %618 = vmatpush1.msra.mxu0 0.0
      %619 = vmatprep.mubr.f32.mxu0 0.0
      %620 = vmatmul.mubr.f32.gmra.mrb[0].mxu0 %v435
      %v621 = vpop.f32.mrb[0].mxu0
      %v622 = vadd.f32 %v547, %v621
      %v623 = vpop.f32.mrb[0].mxu0
      %624 = vmatprep.mubr.f32.mxu0 0.0
      %625 = vmatmul.mubr.f32.gmra.mrb[0].mxu0 %v428
      %v626 = vpop.f32.mrb[0].mxu0
      %v627 = vadd.f32 %v552, %v626
      %v628 = vpop.f32.mrb[0].mxu0
      %629 = vdwg.mxu0
      %s630 = scalar_lea.vmem %s3, 256
      %v631 = vld [vmem:[%s630] sm:$0xff]
      %v632 = vld [vmem:[%s630 + $0x8] sm:$0xff]
      %v633 = vld [vmem:[%s630 + $0x10] sm:$0xff]
      %v634 = vld [vmem:[%s630 + $0x18] sm:$0xff]
      %v635 = vld [vmem:[%s630 + $0x20] sm:$0xff]
      %v636 = vld [vmem:[%s630 + $0x28] sm:$0xff]
      %v637 = vld [vmem:[%s630 + $0x30] sm:$0xff]
      %v638 = vld [vmem:[%s630 + $0x38] sm:$0xff]
      %v639 = vld [vmem:[%s630 + $0x40] sm:$0xff]
      %v640 = vld [vmem:[%s630 + $0x48] sm:$0xff]
      %v641 = vld [vmem:[%s630 + $0x50] sm:$0xff]
      %v642 = vld [vmem:[%s630 + $0x58] sm:$0xff]
      %v643 = vld [vmem:[%s630 + $0x60] sm:$0xff]
      %v644 = vld [vmem:[%s630 + $0x68] sm:$0xff]
      %v645 = vld [vmem:[%s630 + $0x70] sm:$0xff]
      %v646 = vld [vmem:[%s630 + $0x78] sm:$0xff]
      %vm647 = vcmask 1045504
      %v648 = vrot.slane %v435, 2
      %v649 = vrot.slane %v428, 2
      %v650 = vsel %vm647, %v648, %v649
      %v651 = vrot.slane %v436, 2
      %v652 = vsel %vm647, %v649, %v651
      %655 = vmatprep.subr.mxu0 0.0
      %656 = vmatpush1.msra.mxu0 %v631
      %657 = vmatprep.subr.mxu0 0.0
      %658 = vmatpush1.msra.mxu0 %v632
      %659 = vmatprep.subr.mxu0 0.0
      %660 = vmatpush1.msra.mxu0 %v633
      %661 = vmatprep.subr.mxu0 0.0
      %662 = vmatpush1.msra.mxu0 %v634
      %663 = vmatprep.subr.mxu0 0.0
      %664 = vmatpush1.msra.mxu0 %v635
      %665 = vmatprep.subr.mxu0 0.0
      %666 = vmatpush1.msra.mxu0 %v636
      %667 = vmatprep.subr.mxu0 0.0
      %668 = vmatpush1.msra.mxu0 %v637
      %669 = vmatprep.subr.mxu0 0.0
      %670 = vmatpush1.msra.mxu0 %v638
      %671 = vmatprep.subr.mxu0 0.0
      %672 = vmatpush1.msra.mxu0 %v639
      %673 = vmatprep.subr.mxu0 0.0
      %674 = vmatpush1.msra.mxu0 %v640
      %675 = vmatprep.subr.mxu0 0.0
      %676 = vmatpush1.msra.mxu0 %v641
      %677 = vmatprep.subr.mxu0 0.0
      %678 = vmatpush1.msra.mxu0 %v642
      %679 = vmatprep.subr.mxu0 0.0
      %680 = vmatpush1.msra.mxu0 %v643
      %681 = vmatprep.subr.mxu0 0.0
      %682 = vmatpush1.msra.mxu0 %v644
      %683 = vmatprep.subr.mxu0 0.0
      %684 = vmatpush1.msra.mxu0 %v645
      %685 = vmatprep.subr.mxu0 0.0
      %686 = vmatpush1.msra.mxu0 %v646
      %687 = vmatprep.subr.mxu0 0.0
      %688 = vmatpush1.msra.mxu0 0.0
      %689 = vmatprep.subr.mxu0 0.0
      %690 = vmatpush1.msra.mxu0 0.0
      %691 = vmatprep.subr.mxu0 0.0
      %692 = vmatpush1.msra.mxu0 0.0
      %693 = vmatprep.subr.mxu0 0.0
      %694 = vmatpush1.msra.mxu0 0.0
      %695 = vmatprep.subr.mxu0 0.0
      %696 = vmatpush1.msra.mxu0 0.0
      %697 = vmatprep.subr.mxu0 0.0
      %698 = vmatpush1.msra.mxu0 0.0
      %699 = vmatprep.subr.mxu0 0.0
      %700 = vmatpush1.msra.mxu0 0.0
      %701 = vmatprep.subr.mxu0 0.0
      %702 = vmatpush1.msra.mxu0 0.0
      %703 = vmatprep.subr.mxu0 0.0
      %704 = vmatpush1.msra.mxu0 0.0
      %705 = vmatprep.subr.mxu0 0.0
      %706 = vmatpush1.msra.mxu0 0.0
      %707 = vmatprep.subr.mxu0 0.0
      %708 = vmatpush1.msra.mxu0 0.0
      %709 = vmatprep.subr.mxu0 0.0
      %710 = vmatpush1.msra.mxu0 0.0
      %711 = vmatprep.subr.mxu0 0.0
      %712 = vmatpush1.msra.mxu0 0.0
      %713 = vmatprep.subr.mxu0 0.0
      %714 = vmatpush1.msra.mxu0 0.0
      %715 = vmatprep.subr.mxu0 0.0
      %716 = vmatpush1.msra.mxu0 0.0
      %717 = vmatprep.subr.mxu0 0.0
      %718 = vmatpush1.msra.mxu0 0.0
      %719 = vmatprep.mubr.f32.mxu0 0.0
      %720 = vmatmul.mubr.f32.gmra.mrb[0].mxu0 %v650
      %v721 = vpop.f32.mrb[0].mxu0
      %v722 = vadd.f32 0.0, %v721
      %v723 = vpop.f32.mrb[0].mxu0
      %724 = vmatprep.mubr.f32.mxu0 0.0
      %725 = vmatmul.mubr.f32.gmra.mrb[0].mxu0 %v652
      %v726 = vpop.f32.mrb[0].mxu0
      %v727 = vadd.f32 0.0, %v726
      %v728 = vpop.f32.mrb[0].mxu0
      %729 = vdwg.mxu0
      %v730 = vadd.f32 %v622, %v722
      %v731 = vadd.f32 %v627, %v727
      %v732 = vld [vmem:[%s4] sm:$0x1]
      %v734 = vlaneseq
      %v735 = vshrl.u32 %v734, 7
      %v736 = vsub.s32 0, %v735
      %v737 = vrot.slane %v732, %v736
      %v739 = vmul.f32 %v730, %v737
      %v740 = vmul.f32 %v731, %v737
      %v741 = vld [vmem:[%s5] sm:$0x1]
      %v743 = vlaneseq
      %v744 = vshrl.u32 %v743, 7
      %v745 = vsub.s32 0, %v744
      %v746 = vrot.slane %v741, %v745
      %v748 = vadd.f32 %v739, %v746
      %v749 = vadd.f32 %v740, %v746
      %v750 = vmul.f32 %v748, 0.5
      %v751 = vmul.f32 %v749, 0.5
      %v752 = vtanh.pop %v750
      %v753 = vtanh.pop %v751
      %v754 = vmul.f32 %v748, 1.442695
      %v755 = vpow.pop %v754
      %v756 = vmul.f32 %v749, 1.442695
      %v757 = vpow.pop %v756
      %v758 = vadd.f32 %v755, 1.0
      %v759 = vadd.f32 %v757, 1.0
      %v760 = vmul.f32 %v752, %v758
      %v761 = vmul.f32 %v753, %v759
      %vm762 = vcmp.gt.f32.partialorder %v748, 0.0
      %vm763 = vcmp.gt.f32.partialorder %v749, 0.0
      %v764 = vsel %vm762, %v748, %v760
      %v765 = vsel %vm763, %v749, %v761
      %766 = vst [vmem:[%s407] sm:$0xff] %v764
      %767 = vst [vmem:[%s407 + $0x8] sm:$0xff] %v765
      %s768 = smul.u32 2, %s22
      %p769 = scmp.lt.s32.totalorder %s21, 1
      %s770 = scalar_select %p769, %s21, 1
      %p771 = scmp.lt.s32.totalorder %s768, 3
      %s772 = scalar_select %p771, %s768, 3
      %s773 = smul.addr %s770, 4
      %s774 = sadd.s32 %s772, %s773
      %s775 = smul.addr %s774, 8
      %s776 = scalar_lea.vmem %s6, %s775
      // Predicated region
      $region45: #{upsampling_layer_forward.5} parent=43 // pred_check
        %p777 = pneg %p212
      $region46: #{upsampling_layer_forward.5} parent=43 // pred_check_branch
        %779 = sbr.rel (%p777) target = $region48
      $region47: #{upsampling_layer_forward.5} parent=43 // pred_region
        %s780 = smul.u32 2, %s22
      $region48: #{upsampling_layer_forward.5} parent=43 // pred_fallthru
        _
    $region44: #{upsampling_layer_forward.5} parent=5 // pred_fallthru
      _
    %p781 = scmp.le.s32.totalorder 2, %s12
    // Predicated region
    $region49: #{upsampling_layer_forward.5} parent=5 // pred_check
      %p782 = pneg %p781
    $region50: #{upsampling_layer_forward.5} parent=5 // pred_check_branch
      %784 = sbr.rel (%p782) target = $region52
    $region51: #{upsampling_layer_forward.5} parent=5 // pred_region
      %s785 = ssub.s32 %s12, 2
      // Predicated region
      $region53: #{upsampling_layer_forward.5} parent=51 // pred_check
        %p786 = pneg %p218
      $region54: #{upsampling_layer_forward.5} parent=51 // pred_check_branch
        %788 = sbr.rel (%p786) target = $region56
      $region55: #{upsampling_layer_forward.5} parent=51 // pred_region
        %s789 = smul.u32 2, %s24
        %p790 = scmp.lt.s32.totalorder %s23, 1
        %s791 = scalar_select %p790, %s23, 1
        %p792 = scmp.lt.s32.totalorder %s789, 3
        %s793 = scalar_select %p792, %s789, 3
        %s794 = smul.addr %s791, 4
        %s795 = sadd.s32 %s793, %s794
        %s796 = smul.addr %s795, 8
        %s797 = scalar_lea.vmem %s6, %s796
      $region56: #{upsampling_layer_forward.5} parent=51 // pred_fallthru
        _
    $region52: #{upsampling_layer_forward.5} parent=5 // pred_fallthru
      _
  $region6: #{upsampling_layer_forward.5} parent=0 // loop_footer
    %s16 = sadd.s32 1, %s12
  $region7: #{upsampling_layer_forward.5} parent=0 // loop_footer_branch
    %11 = sbr.rel target = $region3
  $region8: #{upsampling_layer_forward.5} parent=0 // loop_exit
    _

</llo_original>
